<compile_context>
chip_gen: v7x
topology: tpu7x:2x2x1
jax: 0.10.0
libtpu: 0.0.40
codegen_flags: <defaults>
</compile_context>

<pallas_src>
import functools

import numpy as np
import jax
import jax.numpy as jnp
from jax.experimental import pallas as pl
from jax.experimental.pallas import tpu as pltpu


def _rup(n, m):
    return ((n + m - 1) // m) * m


def _row_tile(m, target=256):
    """Largest multiple-of-8 divisor of m that is <= target, preferring >= 2 tiles."""
    cap = min(target, m // 2) if m >= 16 else m
    best = None
    t = 8
    while t <= cap:
        if m % t == 0:
            best = t
        t += 8
    return best if best is not None else m


# --------------------------- kernel 1: LN + 1x1 conv --------------------------

def _ln_matmul_kernel(c_real, x_ref, g_ref, b_ref, w_ref, o_ref):
    x = x_ref[...]                                             # (TM, CP) f32
    inv_c = 1.0 / c_real                                       # padded lanes are zero,
    mean = jnp.sum(x, axis=-1, keepdims=True) * inv_c          # so sums / real count
    ex2 = jnp.sum(x * x, axis=-1, keepdims=True) * inv_c       # give exact LN stats
    var = ex2 - mean * mean
    y = (x - mean) * jax.lax.rsqrt(var + 1e-5) * g_ref[...] + b_ref[...]
    o_ref[...] = jnp.dot(y.astype(jnp.bfloat16), w_ref[...],
                         preferred_element_type=jnp.float32).astype(o_ref.dtype)


def ln_matmul(x, gamma, beta, w, c_real):
    """Fused LayerNorm(channels) + (x @ w).  x: (M, CP) f32, w: (CP, N) bf16."""
    M, CP = x.shape
    N = w.shape[1]
    tm = _row_tile(M)
    return pl.pallas_call(
        functools.partial(_ln_matmul_kernel, float(c_real)),
        out_shape=jax.ShapeDtypeStruct((M, N), jnp.bfloat16),
        grid=(M // tm,),
        in_specs=[
            pl.BlockSpec((tm, CP), lambda i: (i, 0)),
            pl.BlockSpec((1, CP), lambda i: (0, 0)),
            pl.BlockSpec((1, CP), lambda i: (0, 0)),
            pl.BlockSpec((CP, N), lambda i: (0, 0)),
        ],
        out_specs=pl.BlockSpec((tm, N), lambda i: (i, 0)),
        compiler_params=pltpu.CompilerParams(dimension_semantics=("parallel",)),
    )(x, gamma.reshape(1, CP), beta.reshape(1, CP), w)


# ---------------- in-VMEM 3x3 depthwise conv (padding=1) helper ---------------

def _dwconv3x3_flat(xpf_ref, x_flat, w_ref, H, W, pstart):
    """3x3 depthwise conv with zero padding on a flat (H*W, C) channel-last value.

    The spatial halo lives in a VMEM scratch (zero fill + one sublane-aligned interior
    store) instead of an HBM jnp.pad round trip.  Vertical taps read the zero halo rows;
    horizontal taps are masked at row boundaries.
    """
    HW = H * W
    xpf_ref[...] = jnp.zeros_like(xpf_ref)
    xpf_ref[pstart:pstart + HW, :] = x_flat
    col = jax.lax.broadcasted_iota(jnp.int32, (HW, 1), 0) % W
    ok_l = col >= 1            # tap at sx = -1 is valid
    ok_r = col <= W - 2        # tap at sx = +1 is valid
    acc = jnp.zeros_like(x_flat)
    for dy in range(3):
        for dx in range(3):
            sy, sx = dy - 1, dx - 1
            lo = pstart + sy * W + sx
            term = xpf_ref[lo:lo + HW, :] * w_ref[dy * 3 + dx, :]
            if sx == -1:
                term = jnp.where(ok_l, term, 0.0)
            elif sx == 1:
                term = jnp.where(ok_r, term, 0.0)
            acc = acc + term
    return acc


# -------------------- kernel 2: fused MDTA attention branch -------------------

def _mdta_kernel(H, W, heads, d, dp, pstart,
                 qkv_ref, dww_ref, bias_ref, temp_ref, wout_ref, x_ref,
                 o_ref, xpf_ref):
    HW = H * W
    cp = heads * dp
    # depthwise 3x3 over the fused qkv tensor (channels stay independent)
    qkv = _dwconv3x3_flat(xpf_ref, qkv_ref[0].astype(jnp.float32), dww_ref,
                          H, W, pstart)                         # (HW, 3*cp) f32
    col_ok = jax.lax.broadcasted_iota(jnp.int32, (dp, dp), 1) < d   # mask padded keys
    head_outs = []
    for h in range(heads):
        q = qkv[:, h * dp:(h + 1) * dp]                         # (HW, dp)
        k = qkv[:, cp + h * dp:cp + (h + 1) * dp]
        v = qkv[:, 2 * cp + h * dp:2 * cp + (h + 1) * dp]
        # F.normalize(p=2) along the spatial axis (per-channel L2 norm over HW)
        qn = jnp.maximum(jnp.sqrt(jnp.sum(q * q, axis=0, keepdims=True)), 1e-12)
        kn = jnp.maximum(jnp.sqrt(jnp.sum(k * k, axis=0, keepdims=True)), 1e-12)
        qh = (q / qn).astype(jnp.bfloat16)
        kh = (k / kn).astype(jnp.bfloat16)
        # attn[i, j] = <q_:,i , k_:,j>  -- channel x channel attention, HW contracted
        attn = jax.lax.dot_general(qh, kh, (((0,), (0,)), ((), ())),
                                   preferred_element_type=jnp.float32)   # (dp, dp)
        attn = (attn + bias_ref[h]) * temp_ref[:, h:h + 1]
        attn = jnp.where(col_ok, attn, -1e30)                   # exclude padded channels
        m = jnp.max(attn, axis=-1, keepdims=True)
        e = jnp.exp(attn - m)
        p = e * pl.reciprocal(jnp.sum(e, axis=-1, keepdims=True), approx=True)
        # out[:, i] = sum_j p[i, j] * v[:, j]   ->   v @ p^T
        head_outs.append(
            jax.lax.dot_general(v.astype(jnp.bfloat16), p.astype(jnp.bfloat16),
                                (((1,), (1,)), ((), ())),
                                preferred_element_type=jnp.float32))     # (HW, dp)
    ao = head_outs[0] if heads == 1 else jnp.concatenate(head_outs, axis=-1)
    proj = jnp.dot(ao.astype(jnp.bfloat16), wout_ref[...],
                   preferred_element_type=jnp.float32)           # (HW, cp)
    o_ref[0] = x_ref[0] + proj                                   # residual add


def mdta_fused(qkv, dww, rel_bias, temperature, w_out, x, *, heads, d, dp, H, W):
    B, HW, cp3 = qkv.shape
    cp = heads * dp
    pstart = _rup(W + 1, 8)
    nrows = HW + 2 * pstart
    return pl.pallas_call(
        functools.partial(_mdta_kernel, H, W, heads, d, dp, pstart),
        out_shape=jax.ShapeDtypeStruct((B, HW, cp), jnp.float32),
        grid=(B,),
        in_specs=[
            pl.BlockSpec((1, HW, cp3), lambda b: (b, 0, 0)),
            pl.BlockSpec((9, cp3), lambda b: (0, 0)),
            pl.BlockSpec((heads, dp, dp), lambda b: (0, 0, 0)),
            pl.BlockSpec((1, heads), lambda b: (0, 0)),
            pl.BlockSpec((cp, cp), lambda b: (0, 0)),
            pl.BlockSpec((1, HW, cp), lambda b: (b, 0, 0)),
        ],
        out_specs=pl.BlockSpec((1, HW, cp), lambda b: (b, 0, 0)),
        scratch_shapes=[pltpu.VMEM((nrows, cp3), jnp.float32)],
        compiler_params=pltpu.CompilerParams(dimension_semantics=("parallel",)),
    )(qkv, dww, rel_bias, temperature, w_out, x)


# ------------------------- kernel 3: fused GDFN branch ------------------------

def _gdfn_kernel(H, W, hp, pstart,
                 pin_ref, dww_ref, wpout_ref, wse1_ref, wse2_ref, x_ref,
                 o_ref, xpf_ref):
    HW = H * W
    pdw = _dwconv3x3_flat(xpf_ref, pin_ref[0].astype(jnp.float32), dww_ref,
                          H, W, pstart)                          # (HW, 2*hp) f32
    x1 = pdw[:, :hp]
    x2 = pdw[:, hp:]
    gated = 0.5 * x1 * (1.0 + jax.lax.erf(x1 * 0.7071067811865476)) * x2  # gelu(x1)*x2
    pout = jnp.dot(gated.astype(jnp.bfloat16), wpout_ref[...],
                   preferred_element_type=jnp.float32)            # (HW, cp)
    # SE: global average pool + 2-layer MLP + sigmoid channel scale
    y = jnp.sum(pout, axis=0, keepdims=True) * (1.0 / HW)         # (1, cp)
    hmid = jnp.maximum(jnp.dot(y, wse1_ref[...],
                               preferred_element_type=jnp.float32), 0.0)
    s = jax.nn.sigmoid(jnp.dot(hmid, wse2_ref[...],
                               preferred_element_type=jnp.float32))
    o_ref[0] = x_ref[0] + pout * s                                # residual add


def gdfn_fused(pin, dww, w_pout, w_se1, w_se2, x, *, hp, H, W):
    B, HW, hp2 = pin.shape
    cp = x.shape[-1]
    rp = w_se1.shape[-1]
    pstart = _rup(W + 1, 8)
    nrows = HW + 2 * pstart
    return pl.pallas_call(
        functools.partial(_gdfn_kernel, H, W, hp, pstart),
        out_shape=jax.ShapeDtypeStruct((B, HW, cp), jnp.float32),
        grid=(B,),
        in_specs=[
            pl.BlockSpec((1, HW, hp2), lambda b: (b, 0, 0)),
            pl.BlockSpec((9, hp2), lambda b: (0, 0)),
            pl.BlockSpec((hp, cp), lambda b: (0, 0)),
            pl.BlockSpec((cp, rp), lambda b: (0, 0)),
            pl.BlockSpec((rp, cp), lambda b: (0, 0)),
            pl.BlockSpec((1, HW, cp), lambda b: (b, 0, 0)),
        ],
        out_specs=pl.BlockSpec((1, HW, cp), lambda b: (b, 0, 0)),
        scratch_shapes=[pltpu.VMEM((nrows, hp2), jnp.float32)],
        compiler_params=pltpu.CompilerParams(dimension_semantics=("parallel",)),
    )(pin, dww, w_pout, w_se1, w_se2, x)


# -------------------------------- full forward --------------------------------

def transformer_block_forward(x_nchw, kp, *, num_heads, expansion_factor):
    B, C, H, W = x_nchw.shape
    HW = H * W
    d = C // num_heads
    dp = _rup(d, 64)
    cp = num_heads * dp
    hidden = int(C * expansion_factor)
    hp = max(_rup(hidden, 64), 64)

    # channel-last + zero-pad channels to the lane-aligned width the kernels use
    x = jnp.transpose(x_nchw, (0, 2, 3, 1)).reshape(B, HW, C)
    x = jnp.pad(x, ((0, 0), (0, 0), (0, cp - C)))

    # ---- x = x + project_out(MDTA(dwconv3x3(qkv1x1(LN(x))))) ----
    qkv = ln_matmul(x.reshape(B * HW, cp), kp['ln1_w'], kp['ln1_b'], kp['w_qkv'], C)
    x = mdta_fused(qkv.reshape(B, HW, 3 * cp), kp['w_qkv_dw'], kp['rel_bias'],
                   kp['temperature'], kp['w_attn_out'], x,
                   heads=num_heads, d=d, dp=dp, H=H, W=W)

    # ---- x = x + SE(project_out(gelu(x1)*x2)), x1,x2 = dwconv3x3(project_in(LN(x))) ----
    pin = ln_matmul(x.reshape(B * HW, cp), kp['ln2_w'], kp['ln2_b'], kp['w_pin'], C)
    x = gdfn_fused(pin.reshape(B, HW, 2 * hp), kp['w_gdfn_dw'], kp['w_pout'],
                   kp['w_se1'], kp['w_se2'], x, hp=hp, H=H, W=W)

    return jnp.transpose(x[..., :C].reshape(B, H, W, C), (0, 3, 1, 2))


# ------------------------------ parameter set-up ------------------------------

def relative_position_index():
    coords = np.stack(np.meshgrid(np.arange(7), np.arange(7), indexing='ij'))
    coords_flatten = coords.reshape(2, -1)
    rel = coords_flatten[:, :, None] - coords_flatten[:, None, :]
    rel = rel.transpose(1, 2, 0).copy()
    rel[:, :, 0] += 6
    rel[:, :, 1] += 6
    rel[:, :, 0] *= 13
    return rel.sum(-1)                                           # (49, 49)


def init_params(key, channels, num_heads, expansion_factor):
    """Logical (unpadded, f32) parameters; matmul weights use (in, out) layout."""
    hidden = int(channels * expansion_factor)
    r = channels // 16
    ks = jax.random.split(key, 13)

    def nrm(k, shape, scale=0.1):
        return scale * jax.random.normal(k, shape, jnp.float32)

    p = {
        'ln1_w': 1.0 + nrm(ks[0], (channels,)),
        'ln1_b': nrm(ks[1], (channels,)),
        'w_qkv': nrm(ks[2], (channels, 3 * channels)),
        'w_qkv_dw': nrm(ks[3], (9, 3 * channels)),
        'w_attn_out': nrm(ks[4], (channels, channels)),
        'rpb_table': nrm(ks[5], (13 * 13, num_heads)),
        'temperature': jnp.ones((num_heads,), jnp.float32),
        'ln2_w': 1.0 + nrm(ks[6], (channels,)),
        'ln2_b': nrm(ks[7], (channels,)),
        'w_pin': nrm(ks[8], (channels, 2 * hidden)),
        'w_gdfn_dw': nrm(ks[9], (9, 2 * hidden)),
        'w_pout': nrm(ks[10], (hidden, channels)),
        'w_se1': nrm(ks[11], (channels, r)),
        'w_se2': nrm(ks[12], (r, channels)),
    }
    idx = relative_position_index()                              # one-time gather (glue)
    bias = p['rpb_table'][jnp.asarray(idx.reshape(-1))].reshape(49, 49, num_heads)
    p['rel_bias'] = jnp.transpose(bias, (2, 0, 1))               # (heads, 49, 49)
    return p


def prepare_kernel_params(p, channels, num_heads, expansion_factor):
    """Zero-pad channel dims to lane-aligned widths, cast matmul weights to bf16."""
    C = channels
    d = C // num_heads
    dp = _rup(d, 64)
    cp = num_heads * dp
    hidden = int(C * expansion_factor)
    hp = max(_rup(hidden, 64), 64)
    r = C // 16
    rp = max(_rup(r, 8), 8)
    bf16 = jnp.bfloat16

    def pad_vec(v, n):
        return jnp.pad(v, (0, n - v.shape[0]))

    def pad_mat(w, rows, cols):
        return jnp.pad(w, ((0, rows - w.shape[0]), (0, cols - w.shape[1])))

    def pad_cols_grouped(w, groups, gsrc, gdst):
        out = jnp.zeros((w.shape[0], groups * gdst), w.dtype)
        for g in range(groups):
            out = out.at[:, g * gdst:g * gdst + gsrc].set(w[:, g * gsrc:(g + 1) * gsrc])
        return out

    kp = {
        'ln1_w': pad_vec(p['ln1_w'], cp),
        'ln1_b': pad_vec(p['ln1_b'], cp),
        'ln2_w': pad_vec(p['ln2_w'], cp),
        'ln2_b': pad_vec(p['ln2_b'], cp),
        # qkv 1x1 conv: columns are (q|k|v) x head groups, each padded d -> dp
        'w_qkv': pad_mat(pad_cols_grouped(p['w_qkv'], 3 * num_heads, d, dp),
                         cp, 3 * cp).astype(bf16),
        'w_qkv_dw': pad_cols_grouped(p['w_qkv_dw'], 3 * num_heads, d, dp),
        # project_out: rows are head groups (d -> dp), columns plain C -> cp
        'w_attn_out': pad_mat(
            pad_cols_grouped(p['w_attn_out'].T, num_heads, d, dp).T,
            cp, cp).astype(bf16),
        'rel_bias': jnp.pad(p['rel_bias'], ((0, 0), (0, dp - d), (0, dp - d))),
        'temperature': p['temperature'].reshape(1, num_heads),
        # GDFN
        'w_pin': pad_mat(pad_cols_grouped(p['w_pin'], 2, hidden, hp),
                         cp, 2 * hp).astype(bf16),
        'w_gdfn_dw': pad_cols_grouped(p['w_gdfn_dw'], 2, hidden, hp),
        'w_pout': pad_mat(p['w_pout'], hp, cp).astype(bf16),
        'w_se1': pad_mat(p['w_se1'], cp, rp),
        'w_se2': pad_mat(p['w_se2'], rp, cp),
    }
    return kp


# ----------------------------- pure-JAX reference ------------------------------

def reference_forward(x_nchw, p, num_heads):
    B, C, H, W = x_nchw.shape
    HW = H * W
    d = C // num_heads
    x = jnp.transpose(x_nchw, (0, 2, 3, 1)).reshape(B, HW, C)

    def ln(t, w, b):
        m = jnp.mean(t, axis=-1, keepdims=True)
        v = jnp.mean((t - m) ** 2, axis=-1, keepdims=True)
        return (t - m) / jnp.sqrt(v + 1e-5) * w + b

    def dw3x3(t, w9):
        tp = jnp.pad(t, ((0, 0), (1, 1), (1, 1), (0, 0)))
        out = 0.0
        for dy in range(3):
            for dx in range(3):
                out = out + tp[:, dy:dy + H, dx:dx + W, :] * w9[dy * 3 + dx]
        return out

    n1 = ln(x, p['ln1_w'], p['ln1_b'])
    qkv = (n1.reshape(B * HW, C) @ p['w_qkv']).reshape(B, H, W, 3 * C)
    qkv = dw3x3(qkv, p['w_qkv_dw']).reshape(B, HW, 3 * C)
    q, k, v = qkv[..., :C], qkv[..., C:2 * C], qkv[..., 2 * C:]

    def heads(t):
        return jnp.transpose(t, (0, 2, 1)).reshape(B, num_heads, d, HW)

    qh, kh, vh = heads(q), heads(k), heads(v)
    qn = qh / jnp.maximum(jnp.sqrt(jnp.sum(qh * qh, -1, keepdims=True)), 1e-12)
    kn = kh / jnp.maximum(jnp.sqrt(jnp.sum(kh * kh, -1, keepdims=True)), 1e-12)
    attn = jnp.einsum('bhdn,bhen->bhde', qn, kn)
    attn = (attn + p['rel_bias'][None]) * p['temperature'][None, :, None, None]
    attn = jax.nn.softmax(attn, axis=-1)
    out = jnp.einsum('bhde,bhen->bhdn', attn, vh)
    out = jnp.transpose(out.reshape(B, C, HW), (0, 2, 1))
    out = (out.reshape(B * HW, C) @ p['w_attn_out']).reshape(B, HW, C)
    x = x + out

    n2 = ln(x, p['ln2_w'], p['ln2_b'])
    hidden = p['w_pin'].shape[1] // 2
    pin = (n2.reshape(B * HW, C) @ p['w_pin']).reshape(B, H, W, 2 * hidden)
    pdw = dw3x3(pin, p['w_gdfn_dw'])
    x1g, x2g = pdw[..., :hidden], pdw[..., hidden:]
    gated = 0.5 * x1g * (1.0 + jax.lax.erf(x1g * 0.7071067811865476)) * x2g
    pout = (gated.reshape(B * HW, hidden) @ p['w_pout']).reshape(B, HW, C)
    y = jnp.mean(pout, axis=1)
    h1 = jnp.maximum(y @ p['w_se1'], 0.0)
    s = jax.nn.sigmoid(h1 @ p['w_se2'])
    x = x + pout * s[:, None, :]
    return jnp.transpose(x.reshape(B, H, W, C), (0, 3, 1, 2))


# ------------------------------------ main -------------------------------------

if __name__ == "__main__":
    # MDTA's 7x7 relative-position bias forces channels // num_heads == 49.
    num_heads = 1
    channels = 49 * num_heads
    expansion_factor = 2.0
    B, H, W = 2, 8, 8

    key = jax.random.PRNGKey(0)
    kx, kparam = jax.random.split(key)
    x = jax.random.normal(kx, (B, channels, H, W), jnp.float32)
    params = init_params(kparam, channels, num_heads, expansion_factor)
    kp = prepare_kernel_params(params, channels, num_heads, expansion_factor)

    fwd = jax.jit(functools.partial(transformer_block_forward,
                                    num_heads=num_heads,
                                    expansion_factor=expansion_factor))
    out = jax.block_until_ready(fwd(x, kp))

    ref = reference_forward(x, params, num_heads)
    assert out.shape == x.shape
    # bf16 MXU inputs + bf16 storage of the large intermediates -> compare against
    # the pure-f32 reference with a bf16-appropriate tolerance.
    np.testing.assert_allclose(np.asarray(out), np.asarray(ref), atol=2e-2, rtol=2e-2)
    print("KERNEL_OK")
</pallas_src>

<mosaic_0001>
module attributes {stable_mosaic.version = 11 : i64} {
  func.func @_ln_matmul_kernel(%arg0: i32, %arg1: memref<64x64xf32, #tpu.memory_space<vmem>>, %arg2: memref<1x64xf32, #tpu.memory_space<vmem>>, %arg3: memref<1x64xf32, #tpu.memory_space<vmem>>, %arg4: memref<64x192xbf16, #tpu.memory_space<vmem>>, %arg5: memref<64x192xbf16, #tpu.memory_space<vmem>>) attributes {dimension_semantics = [#tpu.dimension_semantics<parallel>], iteration_bounds = array<i64: 2>, scalar_prefetch = 0 : i64, scratch_operands = 0 : i64, tpu.core_type = #tpu.core_type<tc>, window_params = [{transform_indices = @transform_0, window_bounds = array<i64: 64, 64>}, {pipeline_mode = #tpu.pipeline_mode<synchronous>, transform_indices = @transform_1, window_bounds = array<i64: 1, 64>}, {pipeline_mode = #tpu.pipeline_mode<synchronous>, transform_indices = @transform_2, window_bounds = array<i64: 1, 64>}, {pipeline_mode = #tpu.pipeline_mode<synchronous>, transform_indices = @transform_3, window_bounds = array<i64: 64, 192>}, {transform_indices = @transform_4, window_bounds = array<i64: 64, 192>}]} {
    %c0 = arith.constant 0 : index
    %c0_0 = arith.constant 0 : index
    %0 = vector.load %arg1[%c0, %c0_0] : memref<64x64xf32, #tpu.memory_space<vmem>>, vector<64x64xf32>
    %cst = arith.constant dense<0.000000e+00> : vector<64xf32>
    %1 = vector.multi_reduction <add>, %0, %cst [1] : vector<64x64xf32> to vector<64xf32>
    %2 = vector.shape_cast %1 : vector<64xf32> to vector<64x1xf32>
    %cst_1 = arith.constant 0.0204081628 : f32
    %3 = vector.broadcast %cst_1 : f32 to vector<64x1xf32>
    %4 = arith.mulf %2, %3 : vector<64x1xf32>
    %5 = arith.mulf %0, %0 : vector<64x64xf32>
    %cst_2 = arith.constant dense<0.000000e+00> : vector<64xf32>
    %6 = vector.multi_reduction <add>, %5, %cst_2 [1] : vector<64x64xf32> to vector<64xf32>
    %7 = vector.shape_cast %6 : vector<64xf32> to vector<64x1xf32>
    %cst_3 = arith.constant 0.0204081628 : f32
    %8 = vector.broadcast %cst_3 : f32 to vector<64x1xf32>
    %9 = arith.mulf %7, %8 : vector<64x1xf32>
    %10 = arith.mulf %4, %4 : vector<64x1xf32>
    %11 = arith.subf %9, %10 : vector<64x1xf32>
    %12 = vector.broadcast %4 : vector<64x1xf32> to vector<64x64xf32>
    %13 = arith.subf %0, %12 : vector<64x64xf32>
    %cst_4 = arith.constant 9.99999974E-6 : f32
    %14 = vector.broadcast %cst_4 : f32 to vector<64x1xf32>
    %15 = arith.addf %11, %14 : vector<64x1xf32>
    %16 = math.rsqrt %15 : vector<64x1xf32>
    %17 = vector.broadcast %16 : vector<64x1xf32> to vector<64x64xf32>
    %18 = arith.mulf %13, %17 : vector<64x64xf32>
    %c0_5 = arith.constant 0 : index
    %c0_6 = arith.constant 0 : index
    %19 = vector.load %arg2[%c0_5, %c0_6] : memref<1x64xf32, #tpu.memory_space<vmem>>, vector<1x64xf32>
    %20 = vector.broadcast %19 : vector<1x64xf32> to vector<64x64xf32>
    %21 = arith.mulf %18, %20 : vector<64x64xf32>
    %c0_7 = arith.constant 0 : index
    %c0_8 = arith.constant 0 : index
    %22 = vector.load %arg3[%c0_7, %c0_8] : memref<1x64xf32, #tpu.memory_space<vmem>>, vector<1x64xf32>
    %23 = vector.broadcast %22 : vector<1x64xf32> to vector<64x64xf32>
    %24 = arith.addf %21, %23 : vector<64x64xf32>
    %25 = arith.truncf %24 : vector<64x64xf32> to vector<64x64xbf16>
    %c0_9 = arith.constant 0 : index
    %c0_10 = arith.constant 0 : index
    %26 = vector.load %arg4[%c0_9, %c0_10] : memref<64x192xbf16, #tpu.memory_space<vmem>>, vector<64x192xbf16>
    %cst_11 = arith.constant dense<0.000000e+00> : vector<64x192xf32>
    %27 = tpu.matmul %25, %26, %cst_11 {dimension_numbers = #tpu.dot_dimension_numbers<[1], [0], [0], [1], [0, 0, 1, 1], [], []>} : vector<64x64xbf16>, vector<64x192xbf16>, vector<64x192xf32> -> vector<64x192xf32>
    %28 = arith.truncf %27 : vector<64x192xf32> to vector<64x192xbf16>
    %c0_12 = arith.constant 0 : index
    %c0_13 = arith.constant 0 : index
    %29 = vector.load %arg5[%c0_12, %c0_13] : memref<64x192xbf16, #tpu.memory_space<vmem>>, vector<64x192xbf16>
    tpu.vector_store %arg5[%c0_12, %c0_13], %28 {strides = array<i32>} : memref<64x192xbf16, #tpu.memory_space<vmem>>, vector<64x192xbf16>,
    return
  }
  func.func @transform_0(%arg0: i32) -> (i32, i32) {
    %c0_i32 = arith.constant 0 : i32
    %c0_i32_0 = arith.constant 0 : i32
    return %arg0, %c0_i32 : i32, i32
  }
  func.func @transform_1(%arg0: i32) -> (i32, i32) {
    %c0_i32 = arith.constant 0 : i32
    %c0_i32_0 = arith.constant 0 : i32
    %c0_i32_1 = arith.constant 0 : i32
    return %c0_i32, %c0_i32_0 : i32, i32
  }
  func.func @transform_2(%arg0: i32) -> (i32, i32) {
    %c0_i32 = arith.constant 0 : i32
    %c0_i32_0 = arith.constant 0 : i32
    %c0_i32_1 = arith.constant 0 : i32
    return %c0_i32, %c0_i32_0 : i32, i32
  }
  func.func @transform_3(%arg0: i32) -> (i32, i32) {
    %c0_i32 = arith.constant 0 : i32
    %c0_i32_0 = arith.constant 0 : i32
    %c0_i32_1 = arith.constant 0 : i32
    return %c0_i32, %c0_i32_0 : i32, i32
  }
  func.func @transform_4(%arg0: i32) -> (i32, i32) {
    %c0_i32 = arith.constant 0 : i32
    %c0_i32_0 = arith.constant 0 : i32
    return %arg0, %c0_i32 : i32, i32
  }
}

module attributes {stable_mosaic.version = 11 : i64} {
  func.func @_ln_matmul_kernel(%arg0: i32, %arg1: memref<64x64xf32, #tpu.memory_space<vmem>>, %arg2: memref<1x64xf32, #tpu.memory_space<vmem>>, %arg3: memref<1x64xf32, #tpu.memory_space<vmem>>, %arg4: memref<64x256xbf16, #tpu.memory_space<vmem>>, %arg5: memref<64x256xbf16, #tpu.memory_space<vmem>>) attributes {dimension_semantics = [#tpu.dimension_semantics<parallel>], iteration_bounds = array<i64: 2>, scalar_prefetch = 0 : i64, scratch_operands = 0 : i64, tpu.core_type = #tpu.core_type<tc>, window_params = [{transform_indices = @transform_0, window_bounds = array<i64: 64, 64>}, {pipeline_mode = #tpu.pipeline_mode<synchronous>, transform_indices = @transform_1, window_bounds = array<i64: 1, 64>}, {pipeline_mode = #tpu.pipeline_mode<synchronous>, transform_indices = @transform_2, window_bounds = array<i64: 1, 64>}, {pipeline_mode = #tpu.pipeline_mode<synchronous>, transform_indices = @transform_3, window_bounds = array<i64: 64, 256>}, {transform_indices = @transform_4, window_bounds = array<i64: 64, 256>}]} {
    %c0 = arith.constant 0 : index
    %c0_0 = arith.constant 0 : index
    %0 = vector.load %arg1[%c0, %c0_0] : memref<64x64xf32, #tpu.memory_space<vmem>>, vector<64x64xf32>
    %cst = arith.constant dense<0.000000e+00> : vector<64xf32>
    %1 = vector.multi_reduction <add>, %0, %cst [1] : vector<64x64xf32> to vector<64xf32>
    %2 = vector.shape_cast %1 : vector<64xf32> to vector<64x1xf32>
    %cst_1 = arith.constant 0.0204081628 : f32
    %3 = vector.broadcast %cst_1 : f32 to vector<64x1xf32>
    %4 = arith.mulf %2, %3 : vector<64x1xf32>
    %5 = arith.mulf %0, %0 : vector<64x64xf32>
    %cst_2 = arith.constant dense<0.000000e+00> : vector<64xf32>
    %6 = vector.multi_reduction <add>, %5, %cst_2 [1] : vector<64x64xf32> to vector<64xf32>
    %7 = vector.shape_cast %6 : vector<64xf32> to vector<64x1xf32>
    %cst_3 = arith.constant 0.0204081628 : f32
    %8 = vector.broadcast %cst_3 : f32 to vector<64x1xf32>
    %9 = arith.mulf %7, %8 : vector<64x1xf32>
    %10 = arith.mulf %4, %4 : vector<64x1xf32>
    %11 = arith.subf %9, %10 : vector<64x1xf32>
    %12 = vector.broadcast %4 : vector<64x1xf32> to vector<64x64xf32>
    %13 = arith.subf %0, %12 : vector<64x64xf32>
    %cst_4 = arith.constant 9.99999974E-6 : f32
    %14 = vector.broadcast %cst_4 : f32 to vector<64x1xf32>
    %15 = arith.addf %11, %14 : vector<64x1xf32>
    %16 = math.rsqrt %15 : vector<64x1xf32>
    %17 = vector.broadcast %16 : vector<64x1xf32> to vector<64x64xf32>
    %18 = arith.mulf %13, %17 : vector<64x64xf32>
    %c0_5 = arith.constant 0 : index
    %c0_6 = arith.constant 0 : index
    %19 = vector.load %arg2[%c0_5, %c0_6] : memref<1x64xf32, #tpu.memory_space<vmem>>, vector<1x64xf32>
    %20 = vector.broadcast %19 : vector<1x64xf32> to vector<64x64xf32>
    %21 = arith.mulf %18, %20 : vector<64x64xf32>
    %c0_7 = arith.constant 0 : index
    %c0_8 = arith.constant 0 : index
    %22 = vector.load %arg3[%c0_7, %c0_8] : memref<1x64xf32, #tpu.memory_space<vmem>>, vector<1x64xf32>
    %23 = vector.broadcast %22 : vector<1x64xf32> to vector<64x64xf32>
    %24 = arith.addf %21, %23 : vector<64x64xf32>
    %25 = arith.truncf %24 : vector<64x64xf32> to vector<64x64xbf16>
    %c0_9 = arith.constant 0 : index
    %c0_10 = arith.constant 0 : index
    %26 = vector.load %arg4[%c0_9, %c0_10] : memref<64x256xbf16, #tpu.memory_space<vmem>>, vector<64x256xbf16>
    %cst_11 = arith.constant dense<0.000000e+00> : vector<64x256xf32>
    %27 = tpu.matmul %25, %26, %cst_11 {dimension_numbers = #tpu.dot_dimension_numbers<[1], [0], [0], [1], [0, 0, 1, 1], [], []>} : vector<64x64xbf16>, vector<64x256xbf16>, vector<64x256xf32> -> vector<64x256xf32>
    %28 = arith.truncf %27 : vector<64x256xf32> to vector<64x256xbf16>
    %c0_12 = arith.constant 0 : index
    %c0_13 = arith.constant 0 : index
    %29 = vector.load %arg5[%c0_12, %c0_13] : memref<64x256xbf16, #tpu.memory_space<vmem>>, vector<64x256xbf16>
    tpu.vector_store %arg5[%c0_12, %c0_13], %28 {strides = array<i32>} : memref<64x256xbf16, #tpu.memory_space<vmem>>, vector<64x256xbf16>,
    return
  }
  func.func @transform_0(%arg0: i32) -> (i32, i32) {
    %c0_i32 = arith.constant 0 : i32
    %c0_i32_0 = arith.constant 0 : i32
    return %arg0, %c0_i32 : i32, i32
  }
  func.func @transform_1(%arg0: i32) -> (i32, i32) {
    %c0_i32 = arith.constant 0 : i32
    %c0_i32_0 = arith.constant 0 : i32
    %c0_i32_1 = arith.constant 0 : i32
    return %c0_i32, %c0_i32_0 : i32, i32
  }
  func.func @transform_2(%arg0: i32) -> (i32, i32) {
    %c0_i32 = arith.constant 0 : i32
    %c0_i32_0 = arith.constant 0 : i32
    %c0_i32_1 = arith.constant 0 : i32
    return %c0_i32, %c0_i32_0 : i32, i32
  }
  func.func @transform_3(%arg0: i32) -> (i32, i32) {
    %c0_i32 = arith.constant 0 : i32
    %c0_i32_0 = arith.constant 0 : i32
    %c0_i32_1 = arith.constant 0 : i32
    return %c0_i32, %c0_i32_0 : i32, i32
  }
  func.func @transform_4(%arg0: i32) -> (i32, i32) {
    %c0_i32 = arith.constant 0 : i32
    %c0_i32_0 = arith.constant 0 : i32
    return %arg0, %c0_i32 : i32, i32
  }
}

module attributes {stable_mosaic.version = 11 : i64} {
  func.func @_mdta_kernel(%arg0: i32, %arg1: memref<1x64x192xbf16, #tpu.memory_space<vmem>>, %arg2: memref<9x192xf32, #tpu.memory_space<vmem>>, %arg3: memref<1x64x64xf32, #tpu.memory_space<vmem>>, %arg4: memref<1x1xf32, #tpu.memory_space<vmem>>, %arg5: memref<64x64xbf16, #tpu.memory_space<vmem>>, %arg6: memref<1x64x64xf32, #tpu.memory_space<vmem>>, %arg7: memref<1x64x64xf32, #tpu.memory_space<vmem>>, %arg8: memref<96x192xf32, #tpu.memory_space<vmem>>) attributes {dimension_semantics = [#tpu.dimension_semantics<parallel>], iteration_bounds = array<i64: 2>, scalar_prefetch = 0 : i64, scratch_operands = 1 : i64, tpu.core_type = #tpu.core_type<tc>, window_params = [{transform_indices = @transform_0, window_bounds = array<i64: 1, 64, 192>}, {pipeline_mode = #tpu.pipeline_mode<synchronous>, transform_indices = @transform_1, window_bounds = array<i64: 9, 192>}, {pipeline_mode = #tpu.pipeline_mode<synchronous>, transform_indices = @transform_2, window_bounds = array<i64: 1, 64, 64>}, {pipeline_mode = #tpu.pipeline_mode<synchronous>, transform_indices = @transform_3, window_bounds = array<i64: 1, 1>}, {pipeline_mode = #tpu.pipeline_mode<synchronous>, transform_indices = @transform_4, window_bounds = array<i64: 64, 64>}, {transform_indices = @transform_5, window_bounds = array<i64: 1, 64, 64>}, {transform_indices = @transform_6, window_bounds = array<i64: 1, 64, 64>}]} {
    %c0 = arith.constant 0 : index
    %c0_0 = arith.constant 0 : index
    %c0_1 = arith.constant 0 : index
    %0 = vector.load %arg1[%c0, %c0_0, %c0_1] : memref<1x64x192xbf16, #tpu.memory_space<vmem>>, vector<1x64x192xbf16>
    %1 = vector.shape_cast %0 : vector<1x64x192xbf16> to vector<64x192xbf16>
    %2 = arith.extf %1 : vector<64x192xbf16> to vector<64x192xf32>
    %cst = arith.constant 0.000000e+00 : f32
    %3 = vector.broadcast %cst : f32 to vector<96x192xf32>
    %c0_2 = arith.constant 0 : index
    %c0_3 = arith.constant 0 : index
    %4 = vector.load %arg8[%c0_2, %c0_3] : memref<96x192xf32, #tpu.memory_space<vmem>>, vector<96x192xf32>
    tpu.vector_store %arg8[%c0_2, %c0_3], %3 {strides = array<i32>} : memref<96x192xf32, #tpu.memory_space<vmem>>, vector<96x192xf32>,
    %c16 = arith.constant 16 : index
    %c0_4 = arith.constant 0 : index
    %5 = vector.load %arg8[%c16, %c0_4] : memref<96x192xf32, #tpu.memory_space<vmem>>, vector<64x192xf32>
    tpu.vector_store %arg8[%c16, %c0_4], %2 {strides = array<i32>} : memref<96x192xf32, #tpu.memory_space<vmem>>, vector<64x192xf32>,
    %6 = tpu.iota {dimensions = array<i32: 0>} : vector<64x1xi32>
    %c8_i32 = arith.constant 8 : i32
    %c0_i32 = arith.constant 0 : i32
    %7 = arith.cmpi eq, %c8_i32, %c0_i32 : i32
    %c1_i32 = arith.constant 1 : i32
    %8 = arith.select %7, %c1_i32, %c8_i32 : i32
    %9 = vector.broadcast %8 : i32 to vector<64x1xi32>
    %10 = arith.remsi %6, %9 : vector<64x1xi32>
    %c0_i32_5 = arith.constant 0 : i32
    %11 = vector.broadcast %c0_i32_5 : i32 to vector<64x1xi32>
    %12 = arith.cmpi ne, %10, %11 : vector<64x1xi32>
    %c0_i32_6 = arith.constant 0 : i32
    %13 = vector.broadcast %c0_i32_6 : i32 to vector<64x1xi32>
    %14 = arith.cmpi slt, %10, %13 : vector<64x1xi32>
    %c0_i32_7 = arith.constant 0 : i32
    %15 = arith.cmpi slt, %8, %c0_i32_7 : i32
    %16 = vector.broadcast %15 : i1 to vector<64x1xi1>
    %17 = vector.broadcast %16 : vector<64x1xi1> to vector<64x1xi1>
    %18 = arith.xori %14, %17 : vector<64x1xi1>
    %19 = arith.andi %18, %12 : vector<64x1xi1>
    %20 = vector.broadcast %8 : i32 to vector<64x1xi32>
    %21 = arith.addi %10, %20 : vector<64x1xi32>
    %22 = arith.select %19, %21, %10 : vector<64x1xi1>, vector<64x1xi32>
    %c1_i32_8 = arith.constant 1 : i32
    %23 = vector.broadcast %c1_i32_8 : i32 to vector<64x1xi32>
    %24 = arith.cmpi sge, %22, %23 : vector<64x1xi32>
    %c6_i32 = arith.constant 6 : i32
    %25 = vector.broadcast %c6_i32 : i32 to vector<64x1xi32>
    %26 = arith.cmpi sle, %22, %25 : vector<64x1xi32>
    %cst_9 = arith.constant 0.000000e+00 : f32
    %27 = vector.broadcast %cst_9 : f32 to vector<64x192xf32>
    %c7 = arith.constant 7 : index
    %c0_10 = arith.constant 0 : index
    %28 = vector.load %arg8[%c7, %c0_10] : memref<96x192xf32, #tpu.memory_space<vmem>>, vector<64x192xf32>
    %c0_11 = arith.constant 0 : index
    %c0_12 = arith.constant 0 : index
    %29 = vector.load %arg2[%c0_11, %c0_12] : memref<9x192xf32, #tpu.memory_space<vmem>>, vector<1x192xf32>
    %30 = vector.shape_cast %29 : vector<1x192xf32> to vector<192xf32>
    %31 = vector.shape_cast %30 : vector<192xf32> to vector<1x192xf32>
    %32 = vector.broadcast %31 : vector<1x192xf32> to vector<64x192xf32>
    %33 = arith.mulf %28, %32 : vector<64x192xf32>
    %cst_13 = arith.constant 0.000000e+00 : f32
    %34 = vector.shape_cast %24 : vector<64x1xi1> to vector<64x1xi1>
    %35 = vector.broadcast %34 : vector<64x1xi1> to vector<64x192xi1>
    %36 = vector.broadcast %cst_13 : f32 to vector<64x192xf32>
    %37 = arith.select %35, %33, %36 : vector<64x192xi1>, vector<64x192xf32>
    %38 = arith.addf %27, %37 : vector<64x192xf32>
    %c8 = arith.constant 8 : index
    %c0_14 = arith.constant 0 : index
    %39 = vector.load %arg8[%c8, %c0_14] : memref<96x192xf32, #tpu.memory_space<vmem>>, vector<64x192xf32>
    %c1 = arith.constant 1 : index
    %c0_15 = arith.constant 0 : index
    %40 = vector.load %arg2[%c1, %c0_15] : memref<9x192xf32, #tpu.memory_space<vmem>>, vector<1x192xf32>
    %41 = vector.shape_cast %40 : vector<1x192xf32> to vector<192xf32>
    %42 = vector.shape_cast %41 : vector<192xf32> to vector<1x192xf32>
    %43 = vector.broadcast %42 : vector<1x192xf32> to vector<64x192xf32>
    %44 = arith.mulf %39, %43 : vector<64x192xf32>
    %45 = arith.addf %38, %44 : vector<64x192xf32>
    %c9 = arith.constant 9 : index
    %c0_16 = arith.constant 0 : index
    %46 = vector.load %arg8[%c9, %c0_16] : memref<96x192xf32, #tpu.memory_space<vmem>>, vector<64x192xf32>
    %c2 = arith.constant 2 : index
    %c0_17 = arith.constant 0 : index
    %47 = vector.load %arg2[%c2, %c0_17] : memref<9x192xf32, #tpu.memory_space<vmem>>, vector<1x192xf32>
    %48 = vector.shape_cast %47 : vector<1x192xf32> to vector<192xf32>
    %49 = vector.shape_cast %48 : vector<192xf32> to vector<1x192xf32>
    %50 = vector.broadcast %49 : vector<1x192xf32> to vector<64x192xf32>
    %51 = arith.mulf %46, %50 : vector<64x192xf32>
    %cst_18 = arith.constant 0.000000e+00 : f32
    %52 = vector.shape_cast %26 : vector<64x1xi1> to vector<64x1xi1>
    %53 = vector.broadcast %52 : vector<64x1xi1> to vector<64x192xi1>
    %54 = vector.broadcast %cst_18 : f32 to vector<64x192xf32>
    %55 = arith.select %53, %51, %54 : vector<64x192xi1>, vector<64x192xf32>
    %56 = arith.addf %45, %55 : vector<64x192xf32>
    %c15 = arith.constant 15 : index
    %c0_19 = arith.constant 0 : index
    %57 = vector.load %arg8[%c15, %c0_19] : memref<96x192xf32, #tpu.memory_space<vmem>>, vector<64x192xf32>
    %c3 = arith.constant 3 : index
    %c0_20 = arith.constant 0 : index
    %58 = vector.load %arg2[%c3, %c0_20] : memref<9x192xf32, #tpu.memory_space<vmem>>, vector<1x192xf32>
    %59 = vector.shape_cast %58 : vector<1x192xf32> to vector<192xf32>
    %60 = vector.shape_cast %59 : vector<192xf32> to vector<1x192xf32>
    %61 = vector.broadcast %60 : vector<1x192xf32> to vector<64x192xf32>
    %62 = arith.mulf %57, %61 : vector<64x192xf32>
    %cst_21 = arith.constant 0.000000e+00 : f32
    %63 = vector.shape_cast %24 : vector<64x1xi1> to vector<64x1xi1>
    %64 = vector.broadcast %63 : vector<64x1xi1> to vector<64x192xi1>
    %65 = vector.broadcast %cst_21 : f32 to vector<64x192xf32>
    %66 = arith.select %64, %62, %65 : vector<64x192xi1>, vector<64x192xf32>
    %67 = arith.addf %56, %66 : vector<64x192xf32>
    %c16_22 = arith.constant 16 : index
    %c0_23 = arith.constant 0 : index
    %68 = vector.load %arg8[%c16_22, %c0_23] : memref<96x192xf32, #tpu.memory_space<vmem>>, vector<64x192xf32>
    %c4 = arith.constant 4 : index
    %c0_24 = arith.constant 0 : index
    %69 = vector.load %arg2[%c4, %c0_24] : memref<9x192xf32, #tpu.memory_space<vmem>>, vector<1x192xf32>
    %70 = vector.shape_cast %69 : vector<1x192xf32> to vector<192xf32>
    %71 = vector.shape_cast %70 : vector<192xf32> to vector<1x192xf32>
    %72 = vector.broadcast %71 : vector<1x192xf32> to vector<64x192xf32>
    %73 = arith.mulf %68, %72 : vector<64x192xf32>
    %74 = arith.addf %67, %73 : vector<64x192xf32>
    %c17 = arith.constant 17 : index
    %c0_25 = arith.constant 0 : index
    %75 = vector.load %arg8[%c17, %c0_25] : memref<96x192xf32, #tpu.memory_space<vmem>>, vector<64x192xf32>
    %c5 = arith.constant 5 : index
    %c0_26 = arith.constant 0 : index
    %76 = vector.load %arg2[%c5, %c0_26] : memref<9x192xf32, #tpu.memory_space<vmem>>, vector<1x192xf32>
    %77 = vector.shape_cast %76 : vector<1x192xf32> to vector<192xf32>
    %78 = vector.shape_cast %77 : vector<192xf32> to vector<1x192xf32>
    %79 = vector.broadcast %78 : vector<1x192xf32> to vector<64x192xf32>
    %80 = arith.mulf %75, %79 : vector<64x192xf32>
    %cst_27 = arith.constant 0.000000e+00 : f32
    %81 = vector.shape_cast %26 : vector<64x1xi1> to vector<64x1xi1>
    %82 = vector.broadcast %81 : vector<64x1xi1> to vector<64x192xi1>
    %83 = vector.broadcast %cst_27 : f32 to vector<64x192xf32>
    %84 = arith.select %82, %80, %83 : vector<64x192xi1>, vector<64x192xf32>
    %85 = arith.addf %74, %84 : vector<64x192xf32>
    %c23 = arith.constant 23 : index
    %c0_28 = arith.constant 0 : index
    %86 = vector.load %arg8[%c23, %c0_28] : memref<96x192xf32, #tpu.memory_space<vmem>>, vector<64x192xf32>
    %c6 = arith.constant 6 : index
    %c0_29 = arith.constant 0 : index
    %87 = vector.load %arg2[%c6, %c0_29] : memref<9x192xf32, #tpu.memory_space<vmem>>, vector<1x192xf32>
    %88 = vector.shape_cast %87 : vector<1x192xf32> to vector<192xf32>
    %89 = vector.shape_cast %88 : vector<192xf32> to vector<1x192xf32>
    %90 = vector.broadcast %89 : vector<1x192xf32> to vector<64x192xf32>
    %91 = arith.mulf %86, %90 : vector<64x192xf32>
    %cst_30 = arith.constant 0.000000e+00 : f32
    %92 = vector.shape_cast %24 : vector<64x1xi1> to vector<64x1xi1>
    %93 = vector.broadcast %92 : vector<64x1xi1> to vector<64x192xi1>
    %94 = vector.broadcast %cst_30 : f32 to vector<64x192xf32>
    %95 = arith.select %93, %91, %94 : vector<64x192xi1>, vector<64x192xf32>
    %96 = arith.addf %85, %95 : vector<64x192xf32>
    %c24 = arith.constant 24 : index
    %c0_31 = arith.constant 0 : index
    %97 = vector.load %arg8[%c24, %c0_31] : memref<96x192xf32, #tpu.memory_space<vmem>>, vector<64x192xf32>
    %c7_32 = arith.constant 7 : index
    %c0_33 = arith.constant 0 : index
    %98 = vector.load %arg2[%c7_32, %c0_33] : memref<9x192xf32, #tpu.memory_space<vmem>>, vector<1x192xf32>
    %99 = vector.shape_cast %98 : vector<1x192xf32> to vector<192xf32>
    %100 = vector.shape_cast %99 : vector<192xf32> to vector<1x192xf32>
    %101 = vector.broadcast %100 : vector<1x192xf32> to vector<64x192xf32>
    %102 = arith.mulf %97, %101 : vector<64x192xf32>
    %103 = arith.addf %96, %102 : vector<64x192xf32>
    %c25 = arith.constant 25 : index
    %c0_34 = arith.constant 0 : index
    %104 = vector.load %arg8[%c25, %c0_34] : memref<96x192xf32, #tpu.memory_space<vmem>>, vector<64x192xf32>
    %c8_35 = arith.constant 8 : index
    %c0_36 = arith.constant 0 : index
    %105 = vector.load %arg2[%c8_35, %c0_36] : memref<9x192xf32, #tpu.memory_space<vmem>>, vector<1x192xf32>
    %106 = vector.shape_cast %105 : vector<1x192xf32> to vector<192xf32>
    %107 = vector.shape_cast %106 : vector<192xf32> to vector<1x192xf32>
    %108 = vector.broadcast %107 : vector<1x192xf32> to vector<64x192xf32>
    %109 = arith.mulf %104, %108 : vector<64x192xf32>
    %cst_37 = arith.constant 0.000000e+00 : f32
    %110 = vector.shape_cast %26 : vector<64x1xi1> to vector<64x1xi1>
    %111 = vector.broadcast %110 : vector<64x1xi1> to vector<64x192xi1>
    %112 = vector.broadcast %cst_37 : f32 to vector<64x192xf32>
    %113 = arith.select %111, %109, %112 : vector<64x192xi1>, vector<64x192xf32>
    %114 = arith.addf %103, %113 : vector<64x192xf32>
    %115 = tpu.iota {dimensions = array<i32: 1>} : vector<64x64xi32>
    %c49_i32 = arith.constant 49 : i32
    %116 = vector.broadcast %c49_i32 : i32 to vector<64x64xi32>
    %117 = arith.cmpi slt, %115, %116 : vector<64x64xi32>
    %118 = vector.extract_strided_slice %114 {offsets = [0, 0], sizes = [64, 64], strides = [1, 1]} : vector<64x192xf32> to vector<64x64xf32>
    %119 = vector.extract_strided_slice %114 {offsets = [0, 64], sizes = [64, 64], strides = [1, 1]} : vector<64x192xf32> to vector<64x64xf32>
    %120 = vector.extract_strided_slice %114 {offsets = [0, 128], sizes = [64, 64], strides = [1, 1]} : vector<64x192xf32> to vector<64x64xf32>
    %121 = arith.mulf %118, %118 : vector<64x64xf32>
    %cst_38 = arith.constant dense<0.000000e+00> : vector<64xf32>
    %122 = vector.multi_reduction <add>, %121, %cst_38 [0] : vector<64x64xf32> to vector<64xf32>
    %123 = vector.shape_cast %122 : vector<64xf32> to vector<1x64xf32>
    %124 = math.sqrt %123 : vector<1x64xf32>
    %cst_39 = arith.constant 9.99999996E-13 : f32
    %125 = vector.broadcast %cst_39 : f32 to vector<1x64xf32>
    %126 = arith.maximumf %124, %125 : vector<1x64xf32>
    %127 = arith.mulf %119, %119 : vector<64x64xf32>
    %cst_40 = arith.constant dense<0.000000e+00> : vector<64xf32>
    %128 = vector.multi_reduction <add>, %127, %cst_40 [0] : vector<64x64xf32> to vector<64xf32>
    %129 = vector.shape_cast %128 : vector<64xf32> to vector<1x64xf32>
    %130 = math.sqrt %129 : vector<1x64xf32>
    %cst_41 = arith.constant 9.99999996E-13 : f32
    %131 = vector.broadcast %cst_41 : f32 to vector<1x64xf32>
    %132 = arith.maximumf %130, %131 : vector<1x64xf32>
    %133 = vector.broadcast %126 : vector<1x64xf32> to vector<64x64xf32>
    %134 = arith.divf %118, %133 : vector<64x64xf32>
    %135 = arith.truncf %134 : vector<64x64xf32> to vector<64x64xbf16>
    %136 = vector.broadcast %132 : vector<1x64xf32> to vector<64x64xf32>
    %137 = arith.divf %119, %136 : vector<64x64xf32>
    %138 = arith.truncf %137 : vector<64x64xf32> to vector<64x64xbf16>
    %cst_42 = arith.constant dense<0.000000e+00> : vector<64x64xf32>
    %139 = tpu.matmul %135, %138, %cst_42 {dimension_numbers = #tpu.dot_dimension_numbers<[0], [0], [1], [1], [0, 1, 1, 1], [], []>} : vector<64x64xbf16>, vector<64x64xbf16>, vector<64x64xf32> -> vector<64x64xf32>
    %c0_43 = arith.constant 0 : index
    %c0_44 = arith.constant 0 : index
    %c0_45 = arith.constant 0 : index
    %140 = vector.load %arg3[%c0_43, %c0_44, %c0_45] : memref<1x64x64xf32, #tpu.memory_space<vmem>>, vector<1x64x64xf32>
    %141 = vector.shape_cast %140 : vector<1x64x64xf32> to vector<64x64xf32>
    %142 = arith.addf %139, %141 : vector<64x64xf32>
    %c0_46 = arith.constant 0 : index
    %c0_47 = arith.constant 0 : index
    %143 = vector.load %arg4[%c0_46, %c0_47] : memref<1x1xf32, #tpu.memory_space<vmem>>, vector<1x1xf32>
    %144 = vector.broadcast %143 : vector<1x1xf32> to vector<64x64xf32>
    %145 = arith.mulf %142, %144 : vector<64x64xf32>
    %cst_48 = arith.constant -1.000000e+30 : f32
    %146 = vector.broadcast %cst_48 : f32 to vector<64x64xf32>
    %147 = arith.select %117, %145, %146 : vector<64x64xi1>, vector<64x64xf32>
    %cst_49 = arith.constant dense<0xFF800000> : vector<64xf32>
    %148 = vector.multi_reduction <maximumf>, %147, %cst_49 [1] : vector<64x64xf32> to vector<64xf32>
    %149 = vector.shape_cast %148 : vector<64xf32> to vector<64x1xf32>
    %150 = vector.broadcast %149 : vector<64x1xf32> to vector<64x64xf32>
    %151 = arith.subf %147, %150 : vector<64x64xf32>
    %152 = math.exp %151 : vector<64x64xf32>
    %cst_50 = arith.constant dense<0.000000e+00> : vector<64xf32>
    %153 = vector.multi_reduction <add>, %152, %cst_50 [1] : vector<64x64xf32> to vector<64xf32>
    %154 = vector.shape_cast %153 : vector<64xf32> to vector<64x1xf32>
    %155 = tpu.reciprocal %154 {approx = true} : vector<64x1xf32> -> vector<64x1xf32>
    %156 = vector.broadcast %155 : vector<64x1xf32> to vector<64x64xf32>
    %157 = arith.mulf %152, %156 : vector<64x64xf32>
    %158 = arith.truncf %120 : vector<64x64xf32> to vector<64x64xbf16>
    %159 = arith.truncf %157 : vector<64x64xf32> to vector<64x64xbf16>
    %cst_51 = arith.constant dense<0.000000e+00> : vector<64x64xf32>
    %160 = tpu.matmul %158, %159, %cst_51 {dimension_numbers = #tpu.dot_dimension_numbers<[1], [1], [0], [0], [0, 0, 1, 0], [], []>} : vector<64x64xbf16>, vector<64x64xbf16>, vector<64x64xf32> -> vector<64x64xf32>
    %161 = arith.truncf %160 : vector<64x64xf32> to vector<64x64xbf16>
    %c0_52 = arith.constant 0 : index
    %c0_53 = arith.constant 0 : index
    %162 = vector.load %arg5[%c0_52, %c0_53] : memref<64x64xbf16, #tpu.memory_space<vmem>>, vector<64x64xbf16>
    %cst_54 = arith.constant dense<0.000000e+00> : vector<64x64xf32>
    %163 = tpu.matmul %161, %162, %cst_54 {dimension_numbers = #tpu.dot_dimension_numbers<[1], [0], [0], [1], [0, 0, 1, 1], [], []>} : vector<64x64xbf16>, vector<64x64xbf16>, vector<64x64xf32> -> vector<64x64xf32>
    %c0_55 = arith.constant 0 : index
    %c0_56 = arith.constant 0 : index
    %c0_57 = arith.constant 0 : index
    %164 = vector.load %arg6[%c0_55, %c0_56, %c0_57] : memref<1x64x64xf32, #tpu.memory_space<vmem>>, vector<1x64x64xf32>
    %165 = vector.shape_cast %164 : vector<1x64x64xf32> to vector<64x64xf32>
    %166 = arith.addf %165, %163 : vector<64x64xf32>
    %c0_58 = arith.constant 0 : index
    %c0_59 = arith.constant 0 : index
    %c0_60 = arith.constant 0 : index
    %167 = vector.load %arg7[%c0_58, %c0_59, %c0_60] : memref<1x64x64xf32, #tpu.memory_space<vmem>>, vector<1x64x64xf32>
    %168 = vector.shape_cast %167 : vector<1x64x64xf32> to vector<64x64xf32>
    %169 = vector.shape_cast %166 : vector<64x64xf32> to vector<1x64x64xf32>
    tpu.vector_store %arg7[%c0_58, %c0_59, %c0_60], %169 {strides = array<i32>} : memref<1x64x64xf32, #tpu.memory_space<vmem>>, vector<1x64x64xf32>,
    return
  }
  func.func @transform_0(%arg0: i32) -> (i32, i32, i32) {
    %c0_i32 = arith.constant 0 : i32
    %c0_i32_0 = arith.constant 0 : i32
    %c0_i32_1 = arith.constant 0 : i32
    return %arg0, %c0_i32, %c0_i32_0 : i32, i32, i32
  }
  func.func @transform_1(%arg0: i32) -> (i32, i32) {
    %c0_i32 = arith.constant 0 : i32
    %c0_i32_0 = arith.constant 0 : i32
    %c0_i32_1 = arith.constant 0 : i32
    return %c0_i32, %c0_i32_0 : i32, i32
  }
  func.func @transform_2(%arg0: i32) -> (i32, i32, i32) {
    %c0_i32 = arith.constant 0 : i32
    %c0_i32_0 = arith.constant 0 : i32
    %c0_i32_1 = arith.constant 0 : i32
    %c0_i32_2 = arith.constant 0 : i32
    return %c0_i32, %c0_i32_0, %c0_i32_1 : i32, i32, i32
  }
  func.func @transform_3(%arg0: i32) -> (i32, i32) {
    %c0_i32 = arith.constant 0 : i32
    %c0_i32_0 = arith.constant 0 : i32
    %c0_i32_1 = arith.constant 0 : i32
    return %c0_i32, %c0_i32_0 : i32, i32
  }
  func.func @transform_4(%arg0: i32) -> (i32, i32) {
    %c0_i32 = arith.constant 0 : i32
    %c0_i32_0 = arith.constant 0 : i32
    %c0_i32_1 = arith.constant 0 : i32
    return %c0_i32, %c0_i32_0 : i32, i32
  }
  func.func @transform_5(%arg0: i32) -> (i32, i32, i32) {
    %c0_i32 = arith.constant 0 : i32
    %c0_i32_0 = arith.constant 0 : i32
    %c0_i32_1 = arith.constant 0 : i32
    return %arg0, %c0_i32, %c0_i32_0 : i32, i32, i32
  }
  func.func @transform_6(%arg0: i32) -> (i32, i32, i32) {
    %c0_i32 = arith.constant 0 : i32
    %c0_i32_0 = arith.constant 0 : i32
    %c0_i32_1 = arith.constant 0 : i32
    return %arg0, %c0_i32, %c0_i32_0 : i32, i32, i32
  }
}

module attributes {stable_mosaic.version = 11 : i64} {
  func.func @_gdfn_kernel(%arg0: i32, %arg1: memref<1x64x256xbf16, #tpu.memory_space<vmem>>, %arg2: memref<9x256xf32, #tpu.memory_space<vmem>>, %arg3: memref<128x64xbf16, #tpu.memory_space<vmem>>, %arg4: memref<64x8xf32, #tpu.memory_space<vmem>>, %arg5: memref<8x64xf32, #tpu.memory_space<vmem>>, %arg6: memref<1x64x64xf32, #tpu.memory_space<vmem>>, %arg7: memref<1x64x64xf32, #tpu.memory_space<vmem>>, %arg8: memref<96x256xf32, #tpu.memory_space<vmem>>) attributes {dimension_semantics = [#tpu.dimension_semantics<parallel>], iteration_bounds = array<i64: 2>, scalar_prefetch = 0 : i64, scratch_operands = 1 : i64, tpu.core_type = #tpu.core_type<tc>, window_params = [{transform_indices = @transform_0, window_bounds = array<i64: 1, 64, 256>}, {pipeline_mode = #tpu.pipeline_mode<synchronous>, transform_indices = @transform_1, window_bounds = array<i64: 9, 256>}, {pipeline_mode = #tpu.pipeline_mode<synchronous>, transform_indices = @transform_2, window_bounds = array<i64: 128, 64>}, {pipeline_mode = #tpu.pipeline_mode<synchronous>, transform_indices = @transform_3, window_bounds = array<i64: 64, 8>}, {pipeline_mode = #tpu.pipeline_mode<synchronous>, transform_indices = @transform_4, window_bounds = array<i64: 8, 64>}, {transform_indices = @transform_5, window_bounds = array<i64: 1, 64, 64>}, {transform_indices = @transform_6, window_bounds = array<i64: 1, 64, 64>}]} {
    %c0 = arith.constant 0 : index
    %c0_0 = arith.constant 0 : index
    %c0_1 = arith.constant 0 : index
    %0 = vector.load %arg1[%c0, %c0_0, %c0_1] : memref<1x64x256xbf16, #tpu.memory_space<vmem>>, vector<1x64x256xbf16>
    %1 = vector.shape_cast %0 : vector<1x64x256xbf16> to vector<64x256xbf16>
    %2 = arith.extf %1 : vector<64x256xbf16> to vector<64x256xf32>
    %cst = arith.constant 0.000000e+00 : f32
    %3 = vector.broadcast %cst : f32 to vector<96x256xf32>
    %c0_2 = arith.constant 0 : index
    %c0_3 = arith.constant 0 : index
    %4 = vector.load %arg8[%c0_2, %c0_3] : memref<96x256xf32, #tpu.memory_space<vmem>>, vector<96x256xf32>
    tpu.vector_store %arg8[%c0_2, %c0_3], %3 {strides = array<i32>} : memref<96x256xf32, #tpu.memory_space<vmem>>, vector<96x256xf32>,
    %c16 = arith.constant 16 : index
    %c0_4 = arith.constant 0 : index
    %5 = vector.load %arg8[%c16, %c0_4] : memref<96x256xf32, #tpu.memory_space<vmem>>, vector<64x256xf32>
    tpu.vector_store %arg8[%c16, %c0_4], %2 {strides = array<i32>} : memref<96x256xf32, #tpu.memory_space<vmem>>, vector<64x256xf32>,
    %6 = tpu.iota {dimensions = array<i32: 0>} : vector<64x1xi32>
    %c8_i32 = arith.constant 8 : i32
    %c0_i32 = arith.constant 0 : i32
    %7 = arith.cmpi eq, %c8_i32, %c0_i32 : i32
    %c1_i32 = arith.constant 1 : i32
    %8 = arith.select %7, %c1_i32, %c8_i32 : i32
    %9 = vector.broadcast %8 : i32 to vector<64x1xi32>
    %10 = arith.remsi %6, %9 : vector<64x1xi32>
    %c0_i32_5 = arith.constant 0 : i32
    %11 = vector.broadcast %c0_i32_5 : i32 to vector<64x1xi32>
    %12 = arith.cmpi ne, %10, %11 : vector<64x1xi32>
    %c0_i32_6 = arith.constant 0 : i32
    %13 = vector.broadcast %c0_i32_6 : i32 to vector<64x1xi32>
    %14 = arith.cmpi slt, %10, %13 : vector<64x1xi32>
    %c0_i32_7 = arith.constant 0 : i32
    %15 = arith.cmpi slt, %8, %c0_i32_7 : i32
    %16 = vector.broadcast %15 : i1 to vector<64x1xi1>
    %17 = vector.broadcast %16 : vector<64x1xi1> to vector<64x1xi1>
    %18 = arith.xori %14, %17 : vector<64x1xi1>
    %19 = arith.andi %18, %12 : vector<64x1xi1>
    %20 = vector.broadcast %8 : i32 to vector<64x1xi32>
    %21 = arith.addi %10, %20 : vector<64x1xi32>
    %22 = arith.select %19, %21, %10 : vector<64x1xi1>, vector<64x1xi32>
    %c1_i32_8 = arith.constant 1 : i32
    %23 = vector.broadcast %c1_i32_8 : i32 to vector<64x1xi32>
    %24 = arith.cmpi sge, %22, %23 : vector<64x1xi32>
    %c6_i32 = arith.constant 6 : i32
    %25 = vector.broadcast %c6_i32 : i32 to vector<64x1xi32>
    %26 = arith.cmpi sle, %22, %25 : vector<64x1xi32>
    %cst_9 = arith.constant 0.000000e+00 : f32
    %27 = vector.broadcast %cst_9 : f32 to vector<64x256xf32>
    %c7 = arith.constant 7 : index
    %c0_10 = arith.constant 0 : index
    %28 = vector.load %arg8[%c7, %c0_10] : memref<96x256xf32, #tpu.memory_space<vmem>>, vector<64x256xf32>
    %c0_11 = arith.constant 0 : index
    %c0_12 = arith.constant 0 : index
    %29 = vector.load %arg2[%c0_11, %c0_12] : memref<9x256xf32, #tpu.memory_space<vmem>>, vector<1x256xf32>
    %30 = vector.shape_cast %29 : vector<1x256xf32> to vector<256xf32>
    %31 = vector.shape_cast %30 : vector<256xf32> to vector<1x256xf32>
    %32 = vector.broadcast %31 : vector<1x256xf32> to vector<64x256xf32>
    %33 = arith.mulf %28, %32 : vector<64x256xf32>
    %cst_13 = arith.constant 0.000000e+00 : f32
    %34 = vector.shape_cast %24 : vector<64x1xi1> to vector<64x1xi1>
    %35 = vector.broadcast %34 : vector<64x1xi1> to vector<64x256xi1>
    %36 = vector.broadcast %cst_13 : f32 to vector<64x256xf32>
    %37 = arith.select %35, %33, %36 : vector<64x256xi1>, vector<64x256xf32>
    %38 = arith.addf %27, %37 : vector<64x256xf32>
    %c8 = arith.constant 8 : index
    %c0_14 = arith.constant 0 : index
    %39 = vector.load %arg8[%c8, %c0_14] : memref<96x256xf32, #tpu.memory_space<vmem>>, vector<64x256xf32>
    %c1 = arith.constant 1 : index
    %c0_15 = arith.constant 0 : index
    %40 = vector.load %arg2[%c1, %c0_15] : memref<9x256xf32, #tpu.memory_space<vmem>>, vector<1x256xf32>
    %41 = vector.shape_cast %40 : vector<1x256xf32> to vector<256xf32>
    %42 = vector.shape_cast %41 : vector<256xf32> to vector<1x256xf32>
    %43 = vector.broadcast %42 : vector<1x256xf32> to vector<64x256xf32>
    %44 = arith.mulf %39, %43 : vector<64x256xf32>
    %45 = arith.addf %38, %44 : vector<64x256xf32>
    %c9 = arith.constant 9 : index
    %c0_16 = arith.constant 0 : index
    %46 = vector.load %arg8[%c9, %c0_16] : memref<96x256xf32, #tpu.memory_space<vmem>>, vector<64x256xf32>
    %c2 = arith.constant 2 : index
    %c0_17 = arith.constant 0 : index
    %47 = vector.load %arg2[%c2, %c0_17] : memref<9x256xf32, #tpu.memory_space<vmem>>, vector<1x256xf32>
    %48 = vector.shape_cast %47 : vector<1x256xf32> to vector<256xf32>
    %49 = vector.shape_cast %48 : vector<256xf32> to vector<1x256xf32>
    %50 = vector.broadcast %49 : vector<1x256xf32> to vector<64x256xf32>
    %51 = arith.mulf %46, %50 : vector<64x256xf32>
    %cst_18 = arith.constant 0.000000e+00 : f32
    %52 = vector.shape_cast %26 : vector<64x1xi1> to vector<64x1xi1>
    %53 = vector.broadcast %52 : vector<64x1xi1> to vector<64x256xi1>
    %54 = vector.broadcast %cst_18 : f32 to vector<64x256xf32>
    %55 = arith.select %53, %51, %54 : vector<64x256xi1>, vector<64x256xf32>
    %56 = arith.addf %45, %55 : vector<64x256xf32>
    %c15 = arith.constant 15 : index
    %c0_19 = arith.constant 0 : index
    %57 = vector.load %arg8[%c15, %c0_19] : memref<96x256xf32, #tpu.memory_space<vmem>>, vector<64x256xf32>
    %c3 = arith.constant 3 : index
    %c0_20 = arith.constant 0 : index
    %58 = vector.load %arg2[%c3, %c0_20] : memref<9x256xf32, #tpu.memory_space<vmem>>, vector<1x256xf32>
    %59 = vector.shape_cast %58 : vector<1x256xf32> to vector<256xf32>
    %60 = vector.shape_cast %59 : vector<256xf32> to vector<1x256xf32>
    %61 = vector.broadcast %60 : vector<1x256xf32> to vector<64x256xf32>
    %62 = arith.mulf %57, %61 : vector<64x256xf32>
    %cst_21 = arith.constant 0.000000e+00 : f32
    %63 = vector.shape_cast %24 : vector<64x1xi1> to vector<64x1xi1>
    %64 = vector.broadcast %63 : vector<64x1xi1> to vector<64x256xi1>
    %65 = vector.broadcast %cst_21 : f32 to vector<64x256xf32>
    %66 = arith.select %64, %62, %65 : vector<64x256xi1>, vector<64x256xf32>
    %67 = arith.addf %56, %66 : vector<64x256xf32>
    %c16_22 = arith.constant 16 : index
    %c0_23 = arith.constant 0 : index
    %68 = vector.load %arg8[%c16_22, %c0_23] : memref<96x256xf32, #tpu.memory_space<vmem>>, vector<64x256xf32>
    %c4 = arith.constant 4 : index
    %c0_24 = arith.constant 0 : index
    %69 = vector.load %arg2[%c4, %c0_24] : memref<9x256xf32, #tpu.memory_space<vmem>>, vector<1x256xf32>
    %70 = vector.shape_cast %69 : vector<1x256xf32> to vector<256xf32>
    %71 = vector.shape_cast %70 : vector<256xf32> to vector<1x256xf32>
    %72 = vector.broadcast %71 : vector<1x256xf32> to vector<64x256xf32>
    %73 = arith.mulf %68, %72 : vector<64x256xf32>
    %74 = arith.addf %67, %73 : vector<64x256xf32>
    %c17 = arith.constant 17 : index
    %c0_25 = arith.constant 0 : index
    %75 = vector.load %arg8[%c17, %c0_25] : memref<96x256xf32, #tpu.memory_space<vmem>>, vector<64x256xf32>
    %c5 = arith.constant 5 : index
    %c0_26 = arith.constant 0 : index
    %76 = vector.load %arg2[%c5, %c0_26] : memref<9x256xf32, #tpu.memory_space<vmem>>, vector<1x256xf32>
    %77 = vector.shape_cast %76 : vector<1x256xf32> to vector<256xf32>
    %78 = vector.shape_cast %77 : vector<256xf32> to vector<1x256xf32>
    %79 = vector.broadcast %78 : vector<1x256xf32> to vector<64x256xf32>
    %80 = arith.mulf %75, %79 : vector<64x256xf32>
    %cst_27 = arith.constant 0.000000e+00 : f32
    %81 = vector.shape_cast %26 : vector<64x1xi1> to vector<64x1xi1>
    %82 = vector.broadcast %81 : vector<64x1xi1> to vector<64x256xi1>
    %83 = vector.broadcast %cst_27 : f32 to vector<64x256xf32>
    %84 = arith.select %82, %80, %83 : vector<64x256xi1>, vector<64x256xf32>
    %85 = arith.addf %74, %84 : vector<64x256xf32>
    %c23 = arith.constant 23 : index
    %c0_28 = arith.constant 0 : index
    %86 = vector.load %arg8[%c23, %c0_28] : memref<96x256xf32, #tpu.memory_space<vmem>>, vector<64x256xf32>
    %c6 = arith.constant 6 : index
    %c0_29 = arith.constant 0 : index
    %87 = vector.load %arg2[%c6, %c0_29] : memref<9x256xf32, #tpu.memory_space<vmem>>, vector<1x256xf32>
    %88 = vector.shape_cast %87 : vector<1x256xf32> to vector<256xf32>
    %89 = vector.shape_cast %88 : vector<256xf32> to vector<1x256xf32>
    %90 = vector.broadcast %89 : vector<1x256xf32> to vector<64x256xf32>
    %91 = arith.mulf %86, %90 : vector<64x256xf32>
    %cst_30 = arith.constant 0.000000e+00 : f32
    %92 = vector.shape_cast %24 : vector<64x1xi1> to vector<64x1xi1>
    %93 = vector.broadcast %92 : vector<64x1xi1> to vector<64x256xi1>
    %94 = vector.broadcast %cst_30 : f32 to vector<64x256xf32>
    %95 = arith.select %93, %91, %94 : vector<64x256xi1>, vector<64x256xf32>
    %96 = arith.addf %85, %95 : vector<64x256xf32>
    %c24 = arith.constant 24 : index
    %c0_31 = arith.constant 0 : index
    %97 = vector.load %arg8[%c24, %c0_31] : memref<96x256xf32, #tpu.memory_space<vmem>>, vector<64x256xf32>
    %c7_32 = arith.constant 7 : index
    %c0_33 = arith.constant 0 : index
    %98 = vector.load %arg2[%c7_32, %c0_33] : memref<9x256xf32, #tpu.memory_space<vmem>>, vector<1x256xf32>
    %99 = vector.shape_cast %98 : vector<1x256xf32> to vector<256xf32>
    %100 = vector.shape_cast %99 : vector<256xf32> to vector<1x256xf32>
    %101 = vector.broadcast %100 : vector<1x256xf32> to vector<64x256xf32>
    %102 = arith.mulf %97, %101 : vector<64x256xf32>
    %103 = arith.addf %96, %102 : vector<64x256xf32>
    %c25 = arith.constant 25 : index
    %c0_34 = arith.constant 0 : index
    %104 = vector.load %arg8[%c25, %c0_34] : memref<96x256xf32, #tpu.memory_space<vmem>>, vector<64x256xf32>
    %c8_35 = arith.constant 8 : index
    %c0_36 = arith.constant 0 : index
    %105 = vector.load %arg2[%c8_35, %c0_36] : memref<9x256xf32, #tpu.memory_space<vmem>>, vector<1x256xf32>
    %106 = vector.shape_cast %105 : vector<1x256xf32> to vector<256xf32>
    %107 = vector.shape_cast %106 : vector<256xf32> to vector<1x256xf32>
    %108 = vector.broadcast %107 : vector<1x256xf32> to vector<64x256xf32>
    %109 = arith.mulf %104, %108 : vector<64x256xf32>
    %cst_37 = arith.constant 0.000000e+00 : f32
    %110 = vector.shape_cast %26 : vector<64x1xi1> to vector<64x1xi1>
    %111 = vector.broadcast %110 : vector<64x1xi1> to vector<64x256xi1>
    %112 = vector.broadcast %cst_37 : f32 to vector<64x256xf32>
    %113 = arith.select %111, %109, %112 : vector<64x256xi1>, vector<64x256xf32>
    %114 = arith.addf %103, %113 : vector<64x256xf32>
    %115 = vector.extract_strided_slice %114 {offsets = [0, 0], sizes = [64, 128], strides = [1, 1]} : vector<64x256xf32> to vector<64x128xf32>
    %116 = vector.extract_strided_slice %114 {offsets = [0, 128], sizes = [64, 128], strides = [1, 1]} : vector<64x256xf32> to vector<64x128xf32>
    %cst_38 = arith.constant 5.000000e-01 : f32
    %117 = vector.broadcast %cst_38 : f32 to vector<64x128xf32>
    %118 = arith.mulf %117, %115 : vector<64x128xf32>
    %cst_39 = arith.constant 0.707106769 : f32
    %119 = vector.broadcast %cst_39 : f32 to vector<64x128xf32>
    %120 = arith.mulf %115, %119 : vector<64x128xf32>
    %121 = math.erf %120 : vector<64x128xf32>
    %cst_40 = arith.constant 1.000000e+00 : f32
    %122 = vector.broadcast %cst_40 : f32 to vector<64x128xf32>
    %123 = arith.addf %122, %121 : vector<64x128xf32>
    %124 = arith.mulf %118, %123 : vector<64x128xf32>
    %125 = arith.mulf %124, %116 : vector<64x128xf32>
    %126 = arith.truncf %125 : vector<64x128xf32> to vector<64x128xbf16>
    %c0_41 = arith.constant 0 : index
    %c0_42 = arith.constant 0 : index
    %127 = vector.load %arg3[%c0_41, %c0_42] : memref<128x64xbf16, #tpu.memory_space<vmem>>, vector<128x64xbf16>
    %cst_43 = arith.constant dense<0.000000e+00> : vector<64x64xf32>
    %128 = tpu.matmul %126, %127, %cst_43 {dimension_numbers = #tpu.dot_dimension_numbers<[1], [0], [0], [1], [0, 0, 1, 1], [], []>} : vector<64x128xbf16>, vector<128x64xbf16>, vector<64x64xf32> -> vector<64x64xf32>
    %cst_44 = arith.constant dense<0.000000e+00> : vector<64xf32>
    %129 = vector.multi_reduction <add>, %128, %cst_44 [0] : vector<64x64xf32> to vector<64xf32>
    %130 = vector.shape_cast %129 : vector<64xf32> to vector<1x64xf32>
    %cst_45 = arith.constant 1.562500e-02 : f32
    %131 = vector.broadcast %cst_45 : f32 to vector<1x64xf32>
    %132 = arith.mulf %130, %131 : vector<1x64xf32>
    %c0_46 = arith.constant 0 : index
    %c0_47 = arith.constant 0 : index
    %133 = vector.load %arg4[%c0_46, %c0_47] : memref<64x8xf32, #tpu.memory_space<vmem>>, vector<64x8xf32>
    %cst_48 = arith.constant dense<0.000000e+00> : vector<1x8xf32>
    %134 = tpu.matmul %132, %133, %cst_48 {dimension_numbers = #tpu.dot_dimension_numbers<[1], [0], [0], [1], [0, 0, 1, 1], [], []>} : vector<1x64xf32>, vector<64x8xf32>, vector<1x8xf32> -> vector<1x8xf32>
    %cst_49 = arith.constant 0.000000e+00 : f32
    %135 = vector.broadcast %cst_49 : f32 to vector<1x8xf32>
    %136 = arith.maximumf %134, %135 : vector<1x8xf32>
    %c0_50 = arith.constant 0 : index
    %c0_51 = arith.constant 0 : index
    %137 = vector.load %arg5[%c0_50, %c0_51] : memref<8x64xf32, #tpu.memory_space<vmem>>, vector<8x64xf32>
    %cst_52 = arith.constant dense<0.000000e+00> : vector<1x64xf32>
    %138 = tpu.matmul %136, %137, %cst_52 {dimension_numbers = #tpu.dot_dimension_numbers<[1], [0], [0], [1], [0, 0, 1, 1], [], []>} : vector<1x8xf32>, vector<8x64xf32>, vector<1x64xf32> -> vector<1x64xf32>
    %139 = arith.negf %138 : vector<1x64xf32>
    %140 = math.exp %139 : vector<1x64xf32>
    %cst_53 = arith.constant 1.000000e+00 : f32
    %141 = vector.broadcast %cst_53 : f32 to vector<1x64xf32>
    %142 = arith.addf %141, %140 : vector<1x64xf32>
    %143 = arith.divf %141, %142 : vector<1x64xf32>
    %c0_54 = arith.constant 0 : index
    %c0_55 = arith.constant 0 : index
    %c0_56 = arith.constant 0 : index
    %144 = vector.load %arg6[%c0_54, %c0_55, %c0_56] : memref<1x64x64xf32, #tpu.memory_space<vmem>>, vector<1x64x64xf32>
    %145 = vector.shape_cast %144 : vector<1x64x64xf32> to vector<64x64xf32>
    %146 = vector.broadcast %143 : vector<1x64xf32> to vector<64x64xf32>
    %147 = arith.mulf %128, %146 : vector<64x64xf32>
    %148 = arith.addf %145, %147 : vector<64x64xf32>
    %c0_57 = arith.constant 0 : index
    %c0_58 = arith.constant 0 : index
    %c0_59 = arith.constant 0 : index
    %149 = vector.load %arg7[%c0_57, %c0_58, %c0_59] : memref<1x64x64xf32, #tpu.memory_space<vmem>>, vector<1x64x64xf32>
    %150 = vector.shape_cast %149 : vector<1x64x64xf32> to vector<64x64xf32>
    %151 = vector.shape_cast %148 : vector<64x64xf32> to vector<1x64x64xf32>
    tpu.vector_store %arg7[%c0_57, %c0_58, %c0_59], %151 {strides = array<i32>} : memref<1x64x64xf32, #tpu.memory_space<vmem>>, vector<1x64x64xf32>,
    return
  }
  func.func @transform_0(%arg0: i32) -> (i32, i32, i32) {
    %c0_i32 = arith.constant 0 : i32
    %c0_i32_0 = arith.constant 0 : i32
    %c0_i32_1 = arith.constant 0 : i32
    return %arg0, %c0_i32, %c0_i32_0 : i32, i32, i32
  }
  func.func @transform_1(%arg0: i32) -> (i32, i32) {
    %c0_i32 = arith.constant 0 : i32
    %c0_i32_0 = arith.constant 0 : i32
    %c0_i32_1 = arith.constant 0 : i32
    return %c0_i32, %c0_i32_0 : i32, i32
  }
  func.func @transform_2(%arg0: i32) -> (i32, i32) {
    %c0_i32 = arith.constant 0 : i32
    %c0_i32_0 = arith.constant 0 : i32
    %c0_i32_1 = arith.constant 0 : i32
    return %c0_i32, %c0_i32_0 : i32, i32
  }
  func.func @transform_3(%arg0: i32) -> (i32, i32) {
    %c0_i32 = arith.constant 0 : i32
    %c0_i32_0 = arith.constant 0 : i32
    %c0_i32_1 = arith.constant 0 : i32
    return %c0_i32, %c0_i32_0 : i32, i32
  }
  func.func @transform_4(%arg0: i32) -> (i32, i32) {
    %c0_i32 = arith.constant 0 : i32
    %c0_i32_0 = arith.constant 0 : i32
    %c0_i32_1 = arith.constant 0 : i32
    return %c0_i32, %c0_i32_0 : i32, i32
  }
  func.func @transform_5(%arg0: i32) -> (i32, i32, i32) {
    %c0_i32 = arith.constant 0 : i32
    %c0_i32_0 = arith.constant 0 : i32
    %c0_i32_1 = arith.constant 0 : i32
    return %arg0, %c0_i32, %c0_i32_0 : i32, i32, i32
  }
  func.func @transform_6(%arg0: i32) -> (i32, i32, i32) {
    %c0_i32 = arith.constant 0 : i32
    %c0_i32_0 = arith.constant 0 : i32
    %c0_i32_1 = arith.constant 0 : i32
    return %arg0, %c0_i32, %c0_i32_0 : i32, i32, i32
  }
}

</mosaic_0001>

<llo_original>
// kernel: transformer_block_forward.4
$region0: #{transformer_block_forward.4}
  #allocation0 [shape = 'u32[]', space=smem, size = 0x4, offset = 0x4, fixed_abs, tag = 'smem constant byte address 0x4 - core index']
  #allocation1 [shape = 'u32[144,128]{1,0:T(1,128)}', space=vmem, size = 0x12000, scoped, tag = 'internal scratch']
  %s0 = inlined_call_operand.vmem [shape: f32[128,64], index: 0, kind: input, shape index: {}]
  %s1 = inlined_call_operand.vmem [shape: f32[1,64], index: 1, kind: input, shape index: {}]
  %s2 = inlined_call_operand.vmem [shape: f32[1,64], index: 2, kind: input, shape index: {}]
  %s3 = inlined_call_operand.vmem [shape: bf16[64,192], index: 3, kind: input, shape index: {}]
  %s4 = inlined_call_operand.vmem [shape: bf16[128,192], index: 4, kind: output, shape index: {}]
  %s5 = sld [smem:[#allocation0]]
  $region49: #{transformer_block_forward.4} parent=0
    _
  %s7 = ssub.s32 1, %s5
  %s8 = scalar_select 0, %s7, %s5
  loop: start=0, step=1, limit=4
  $region2: #{transformer_block_forward.4} parent=0 // loop_pre_header
    _
  $region3: #{transformer_block_forward.4} parent=0 // loop_header
    %s10 = sphi 0, %s14
    %p11 = scmp.ge.s32.totalorder %s10, 4
    %s20 = sphi 0, %s22
    %s23 = sphi 0, %s20
    %s24 = sphi 0, %s23
    %s40 = sphi 0, %s24
    %s44 = sphi 0, %s44
    %s46 = sphi 0, %s44
    %s47 = sphi 0, %s46
    %s61 = sphi 0, %s47
    %s65 = sphi 0, %s65
    %s67 = sphi 0, %s65
    %s68 = sphi 0, %s67
    %s82 = sphi 0, %s68
    %s86 = sphi 0, %s86
    %s88 = sphi 0, %s86
    %s89 = sphi 0, %s88
    %s103 = sphi 0, %s89
    %s109 = sphi 0, %s111
    %s112 = sphi 0, %s109
    %s113 = sphi 0, %s112
    %s129 = sphi 0, %s113
  $region4: #{transformer_block_forward.4} parent=0 // loop_header_branch
    %13 = sbr.rel (%p11) target = $region8
  $region5: #{transformer_block_forward.4} parent=0 // loop_body
    %s15 = ssub.s32 %s10, 1
    %s16 = ssub.s32 %s10, 2
    %s17 = sadd.s32 %s10, 1
    %s18 = ssub.s32 %s10, %s17
    %p19 = scmp.eq.s32.totalorder %s18, 0
    %s21 = sadd.s32 %s20, 1
    %s22 = scalar_select %p19, %s20, %s21
    %p25 = pneg %p19
    %p26 = scmp.eq.s32.totalorder %s10, 1
    %p27 = por %p25, %p26
    %p28 = scmp.ne.s32.totalorder %s20, %s23
    %p29 = scmp.eq.s32.totalorder %s10, 0
    %p30 = por %p28, %p29
    %p31 = scmp.ne.s32.totalorder %s20, %s23
    %p32 = scmp.eq.s32.totalorder %s15, 1
    %p33 = por %p31, %p32
    %p34 = scmp.ne.s32.totalorder %s23, %s24
    %p35 = scmp.eq.s32.totalorder %s15, 0
    %p36 = por %p34, %p35
    %p37 = scmp.ne.s32.totalorder %s23, %s24
    %p38 = scmp.eq.s32.totalorder %s16, 1
    %p39 = por %p37, %p38
    %p41 = scmp.ne.s32.totalorder %s24, %s40
    %p42 = scmp.eq.s32.totalorder %s16, 0
    %p43 = por %p41, %p42
    %s45 = sadd.s32 %s44, 1
    %p48 = scmp.eq.s32.totalorder %s10, 1
    %p49 = scmp.ne.s32.totalorder %s44, %s46
    %p50 = scmp.eq.s32.totalorder %s10, 0
    %p51 = por %p49, %p50
    %p52 = scmp.ne.s32.totalorder %s44, %s46
    %p53 = scmp.eq.s32.totalorder %s15, 1
    %p54 = por %p52, %p53
    %p55 = scmp.ne.s32.totalorder %s46, %s47
    %p56 = scmp.eq.s32.totalorder %s15, 0
    %p57 = por %p55, %p56
    %p58 = scmp.ne.s32.totalorder %s46, %s47
    %p59 = scmp.eq.s32.totalorder %s16, 1
    %p60 = por %p58, %p59
    %p62 = scmp.ne.s32.totalorder %s47, %s61
    %p63 = scmp.eq.s32.totalorder %s16, 0
    %p64 = por %p62, %p63
    %s66 = sadd.s32 %s65, 1
    %p69 = scmp.eq.s32.totalorder %s10, 1
    %p70 = scmp.ne.s32.totalorder %s65, %s67
    %p71 = scmp.eq.s32.totalorder %s10, 0
    %p72 = por %p70, %p71
    %p73 = scmp.ne.s32.totalorder %s65, %s67
    %p74 = scmp.eq.s32.totalorder %s15, 1
    %p75 = por %p73, %p74
    %p76 = scmp.ne.s32.totalorder %s67, %s68
    %p77 = scmp.eq.s32.totalorder %s15, 0
    %p78 = por %p76, %p77
    %p79 = scmp.ne.s32.totalorder %s67, %s68
    %p80 = scmp.eq.s32.totalorder %s16, 1
    %p81 = por %p79, %p80
    %p83 = scmp.ne.s32.totalorder %s68, %s82
    %p84 = scmp.eq.s32.totalorder %s16, 0
    %p85 = por %p83, %p84
    %s87 = sadd.s32 %s86, 1
    %p90 = scmp.eq.s32.totalorder %s10, 1
    %p91 = scmp.ne.s32.totalorder %s86, %s88
    %p92 = scmp.eq.s32.totalorder %s10, 0
    %p93 = por %p91, %p92
    %p94 = scmp.ne.s32.totalorder %s86, %s88
    %p95 = scmp.eq.s32.totalorder %s15, 1
    %p96 = por %p94, %p95
    %p97 = scmp.ne.s32.totalorder %s88, %s89
    %p98 = scmp.eq.s32.totalorder %s15, 0
    %p99 = por %p97, %p98
    %p100 = scmp.ne.s32.totalorder %s88, %s89
    %p101 = scmp.eq.s32.totalorder %s16, 1
    %p102 = por %p100, %p101
    %p104 = scmp.ne.s32.totalorder %s89, %s103
    %p105 = scmp.eq.s32.totalorder %s16, 0
    %p106 = por %p104, %p105
    %s107 = ssub.s32 %s10, %s17
    %p108 = scmp.eq.s32.totalorder %s107, 0
    %s110 = sadd.s32 %s109, 1
    %s111 = scalar_select %p108, %s109, %s110
    %p114 = pneg %p108
    %p115 = scmp.eq.s32.totalorder %s10, 1
    %p116 = por %p114, %p115
    %p117 = scmp.ne.s32.totalorder %s109, %s112
    %p118 = scmp.eq.s32.totalorder %s10, 0
    %p119 = por %p117, %p118
    %p120 = scmp.ne.s32.totalorder %s109, %s112
    %p121 = scmp.eq.s32.totalorder %s15, 1
    %p122 = por %p120, %p121
    %p123 = scmp.ne.s32.totalorder %s112, %s113
    %p124 = scmp.eq.s32.totalorder %s15, 0
    %p125 = por %p123, %p124
    %p126 = scmp.ne.s32.totalorder %s112, %s113
    %p127 = scmp.eq.s32.totalorder %s16, 1
    %p128 = por %p126, %p127
    %p130 = scmp.ne.s32.totalorder %s113, %s129
    %p131 = scmp.eq.s32.totalorder %s16, 0
    %p132 = por %p130, %p131
    %p133 = scmp.le.s32.totalorder 1, %s10
    %p134 = scmp.lt.s32.totalorder %s10, 3
    %p135 = pnand %p133, %p134
    %p136 = pneg %p135
    // Predicated region
    $region9: #{transformer_block_forward.4} parent=5 // pred_check
      _
    $region10: #{transformer_block_forward.4} parent=5 // pred_check_branch
      %138 = sbr.rel (%p135) target = $region12
    $region11: #{transformer_block_forward.4} parent=5 // pred_region
      %s139 = ssub.s32 %s10, 1
      // Predicated region
      $region13: #{transformer_block_forward.4} parent=11 // pred_check
        %p140 = pneg %p57
      $region14: #{transformer_block_forward.4} parent=11 // pred_check_branch
        %142 = sbr.rel (%p140) target = $region16
      $region15: #{transformer_block_forward.4} parent=11 // pred_region
        _
      $region16: #{transformer_block_forward.4} parent=11 // pred_fallthru
        _
      // Predicated region
      $region17: #{transformer_block_forward.4} parent=11 // pred_check
        %p143 = pneg %p78
      $region18: #{transformer_block_forward.4} parent=11 // pred_check_branch
        %145 = sbr.rel (%p143) target = $region20
      $region19: #{transformer_block_forward.4} parent=11 // pred_region
        _
      $region20: #{transformer_block_forward.4} parent=11 // pred_fallthru
        _
      // Predicated region
      $region21: #{transformer_block_forward.4} parent=11 // pred_check
        %p146 = pneg %p99
      $region22: #{transformer_block_forward.4} parent=11 // pred_check_branch
        %148 = sbr.rel (%p146) target = $region24
      $region23: #{transformer_block_forward.4} parent=11 // pred_region
        _
      $region24: #{transformer_block_forward.4} parent=11 // pred_fallthru
        _
    $region12: #{transformer_block_forward.4} parent=5 // pred_fallthru
      _
    %p149 = scmp.lt.s32.totalorder %s10, 2
    // Predicated region
    $region25: #{transformer_block_forward.4} parent=5 // pred_check
      %p150 = pneg %p149
    $region26: #{transformer_block_forward.4} parent=5 // pred_check_branch
      %152 = sbr.rel (%p150) target = $region28
    $region27: #{transformer_block_forward.4} parent=5 // pred_region
      // Predicated region
      $region29: #{transformer_block_forward.4} parent=27 // pred_check
        %p153 = pneg %p30
      $region30: #{transformer_block_forward.4} parent=27 // pred_check_branch
        %155 = sbr.rel (%p153) target = $region32
      $region31: #{transformer_block_forward.4} parent=27 // pred_region
        %s156 = smul.u32 8, %s10
        %p157 = scmp.lt.s32.totalorder %s156, 15
        %s158 = scalar_select %p157, %s156, 15
        %s159 = smul.addr %s158, 8
        %s160 = scalar_lea.vmem %s0, %s159
        %s161 = smul.u32 8, %s10
      $region32: #{transformer_block_forward.4} parent=27 // pred_fallthru
        _
    $region28: #{transformer_block_forward.4} parent=5 // pred_fallthru
      _
    %p162 = scmp.le.s32.totalorder 1, %s10
    %p163 = scmp.lt.s32.totalorder %s10, 3
    %p164 = pnand %p162, %p163
    %p165 = pneg %p164
    // Predicated region
    $region33: #{transformer_block_forward.4} parent=5 // pred_check
      _
    $region34: #{transformer_block_forward.4} parent=5 // pred_check_branch
      %167 = sbr.rel (%p164) target = $region36
    $region35: #{transformer_block_forward.4} parent=5 // pred_region
      %s168 = ssub.s32 %s10, 1
      %s169 = smul.u32 8, %s15
      %p170 = scmp.lt.s32.totalorder %s169, 15
      %s171 = scalar_select %p170, %s169, 15
      %s172 = smul.addr %s171, 8
      %s173 = scalar_lea.vmem %s0, %s172
      %p174 = pneg %p36
      %p175 = pneg %p33
      %p176 = pneg %p57
      %p177 = pneg %p54
      %p178 = pneg %p78
      %p179 = pneg %p75
      %p180 = pneg %p99
      %p181 = pneg %p96
      %p182 = pneg %p125
      %p183 = pneg %p122
      %s184 = smul.u32 8, %s15
      %p185 = scmp.lt.s32.totalorder %s184, 15
      %s186 = scalar_select %p185, %s184, 15
      %s187 = smul.addr %s186, 2
      %s188 = smul.addr %s187, 4
      %s189 = scalar_lea.vmem %s4, %s188
      %s190 = smul.u32 8, %s15
      %p191 = scmp.lt.s32.totalorder %s190, 15
      %s192 = scalar_select %p191, %s190, 15
      %s193 = smul.addr %s192, 8
      %s194 = scalar_lea.vmem %s0, %s193
      %s195 = smul.u32 8, %s15
      %s196 = smul.u32 8, %s15
      %p197 = scmp.lt.s32.totalorder %s196, 15
      %s198 = scalar_select %p197, %s196, 15
      %s199 = smul.addr %s198, 2
      %s200 = smul.addr %s199, 4
      %s201 = scalar_lea.vmem %s4, %s200
      %s202 = smul.u32 8, %s15
      %v204 = vld [vmem:[%s194] sm:$0xff]
      %v205 = vld [vmem:[%s194 + $0x8] sm:$0xff]
      %v206 = vld [vmem:[%s194 + $0x10] sm:$0xff]
      %v207 = vld [vmem:[%s194 + $0x18] sm:$0xff]
      %v208 = vld [vmem:[%s194 + $0x20] sm:$0xff]
      %v209 = vld [vmem:[%s194 + $0x28] sm:$0xff]
      %v210 = vld [vmem:[%s194 + $0x30] sm:$0xff]
      %v211 = vld [vmem:[%s194 + $0x38] sm:$0xff]
      %vm212 = vcmask 523264
      %v213 = vsel %vm212, %v204, 0.0
      %214 = vadd.xlane.f32.xlu0 %v213
      %v215 = vpop.xlane.xlu0 %214
      %v216 = vsel %vm212, %v205, 0.0
      %217 = vadd.xlane.f32.xlu0 %v216
      %v218 = vpop.xlane.xlu0 %217
      %v219 = vsel %vm212, %v206, 0.0
      %220 = vadd.xlane.f32.xlu0 %v219
      %v221 = vpop.xlane.xlu0 %220
      %v222 = vsel %vm212, %v207, 0.0
      %223 = vadd.xlane.f32.xlu0 %v222
      %v224 = vpop.xlane.xlu0 %223
      %v225 = vsel %vm212, %v208, 0.0
      %226 = vadd.xlane.f32.xlu0 %v225
      %v227 = vpop.xlane.xlu0 %226
      %v228 = vsel %vm212, %v209, 0.0
      %229 = vadd.xlane.f32.xlu0 %v228
      %v230 = vpop.xlane.xlu0 %229
      %v231 = vsel %vm212, %v210, 0.0
      %232 = vadd.xlane.f32.xlu0 %v231
      %v233 = vpop.xlane.xlu0 %232
      %v234 = vsel %vm212, %v211, 0.0
      %235 = vadd.xlane.f32.xlu0 %v234
      %v236 = vpop.xlane.xlu0 %235
      %v237 = vmul.f32 %v215, 0.020408163
      %v238 = vmul.f32 %v218, 0.020408163
      %v239 = vmul.f32 %v221, 0.020408163
      %v240 = vmul.f32 %v224, 0.020408163
      %v241 = vmul.f32 %v227, 0.020408163
      %v242 = vmul.f32 %v230, 0.020408163
      %v243 = vmul.f32 %v233, 0.020408163
      %v244 = vmul.f32 %v236, 0.020408163
      %v245 = vmul.f32 %v204, %v204
      %v246 = vmul.f32 %v205, %v205
      %v247 = vmul.f32 %v206, %v206
      %v248 = vmul.f32 %v207, %v207
      %v249 = vmul.f32 %v208, %v208
      %v250 = vmul.f32 %v209, %v209
      %v251 = vmul.f32 %v210, %v210
      %v252 = vmul.f32 %v211, %v211
      %v253 = vsel %vm212, %v245, 0.0
      %254 = vadd.xlane.f32.xlu0 %v253
      %v255 = vpop.xlane.xlu0 %254
      %v256 = vsel %vm212, %v246, 0.0
      %257 = vadd.xlane.f32.xlu0 %v256
      %v258 = vpop.xlane.xlu0 %257
      %v259 = vsel %vm212, %v247, 0.0
      %260 = vadd.xlane.f32.xlu0 %v259
      %v261 = vpop.xlane.xlu0 %260
      %v262 = vsel %vm212, %v248, 0.0
      %263 = vadd.xlane.f32.xlu0 %v262
      %v264 = vpop.xlane.xlu0 %263
      %v265 = vsel %vm212, %v249, 0.0
      %266 = vadd.xlane.f32.xlu0 %v265
      %v267 = vpop.xlane.xlu0 %266
      %v268 = vsel %vm212, %v250, 0.0
      %269 = vadd.xlane.f32.xlu0 %v268
      %v270 = vpop.xlane.xlu0 %269
      %v271 = vsel %vm212, %v251, 0.0
      %272 = vadd.xlane.f32.xlu0 %v271
      %v273 = vpop.xlane.xlu0 %272
      %v274 = vsel %vm212, %v252, 0.0
      %275 = vadd.xlane.f32.xlu0 %v274
      %v276 = vpop.xlane.xlu0 %275
      %v277 = vmul.f32 %v255, 0.020408163
      %v278 = vmul.f32 %v258, 0.020408163
      %v279 = vmul.f32 %v261, 0.020408163
      %v280 = vmul.f32 %v264, 0.020408163
      %v281 = vmul.f32 %v267, 0.020408163
      %v282 = vmul.f32 %v270, 0.020408163
      %v283 = vmul.f32 %v273, 0.020408163
      %v284 = vmul.f32 %v276, 0.020408163
      %v285 = vmul.f32 %v237, %v237
      %v286 = vmul.f32 %v238, %v238
      %v287 = vmul.f32 %v239, %v239
      %v288 = vmul.f32 %v240, %v240
      %v289 = vmul.f32 %v241, %v241
      %v290 = vmul.f32 %v242, %v242
      %v291 = vmul.f32 %v243, %v243
      %v292 = vmul.f32 %v244, %v244
      %v293 = vsub.f32 %v277, %v285
      %v294 = vsub.f32 %v278, %v286
      %v295 = vsub.f32 %v279, %v287
      %v296 = vsub.f32 %v280, %v288
      %v297 = vsub.f32 %v281, %v289
      %v298 = vsub.f32 %v282, %v290
      %v299 = vsub.f32 %v283, %v291
      %v300 = vsub.f32 %v284, %v292
      %v301 = vsub.f32 %v204, %v237
      %v302 = vsub.f32 %v205, %v238
      %v303 = vsub.f32 %v206, %v239
      %v304 = vsub.f32 %v207, %v240
      %v305 = vsub.f32 %v208, %v241
      %v306 = vsub.f32 %v209, %v242
      %v307 = vsub.f32 %v210, %v243
      %v308 = vsub.f32 %v211, %v244
      %v309 = vadd.f32 %v293, 1e-05
      %v310 = vadd.f32 %v294, 1e-05
      %v311 = vadd.f32 %v295, 1e-05
      %v312 = vadd.f32 %v296, 1e-05
      %v313 = vadd.f32 %v297, 1e-05
      %v314 = vadd.f32 %v298, 1e-05
      %v315 = vadd.f32 %v299, 1e-05
      %v316 = vadd.f32 %v300, 1e-05
      %v317 = vrsqrt.pop %v309
      %v318 = vrsqrt.pop %v310
      %v319 = vrsqrt.pop %v311
      %v320 = vrsqrt.pop %v312
      %v321 = vrsqrt.pop %v313
      %v322 = vrsqrt.pop %v314
      %v323 = vrsqrt.pop %v315
      %v324 = vrsqrt.pop %v316
      %v325 = vmul.f32 %v301, %v317
      %v326 = vmul.f32 %v302, %v318
      %v327 = vmul.f32 %v303, %v319
      %v328 = vmul.f32 %v304, %v320
      %v329 = vmul.f32 %v305, %v321
      %v330 = vmul.f32 %v306, %v322
      %v331 = vmul.f32 %v307, %v323
      %v332 = vmul.f32 %v308, %v324
      %v333 = vld [vmem:[%s1] sm:$0x1]
      %v335 = vlaneseq
      %v336 = vshrl.u32 %v335, 7
      %v337 = vsub.s32 0, %v336
      %v338 = vrot.slane %v333, %v337
      %v340 = vmul.f32 %v325, %v338
      %v341 = vmul.f32 %v326, %v338
      %v342 = vmul.f32 %v327, %v338
      %v343 = vmul.f32 %v328, %v338
      %v344 = vmul.f32 %v329, %v338
      %v345 = vmul.f32 %v330, %v338
      %v346 = vmul.f32 %v331, %v338
      %v347 = vmul.f32 %v332, %v338
      %v348 = vld [vmem:[%s2] sm:$0x1]
      %v350 = vlaneseq
      %v351 = vshrl.u32 %v350, 7
      %v352 = vsub.s32 0, %v351
      %v353 = vrot.slane %v348, %v352
      %v355 = vadd.f32 %v340, %v353
      %v356 = vadd.f32 %v341, %v353
      %v357 = vadd.f32 %v342, %v353
      %v358 = vadd.f32 %v343, %v353
      %v359 = vadd.f32 %v344, %v353
      %v360 = vadd.f32 %v345, %v353
      %v361 = vadd.f32 %v346, %v353
      %v362 = vadd.f32 %v347, %v353
      %v363 = vpack.c.bf16 %v356, %v355
      %v364 = vpack.c.bf16 %v358, %v357
      %v365 = vpack.c.bf16 %v360, %v359
      %v366 = vpack.c.bf16 %v362, %v361
      %v367 = vld [vmem:[%s3] sm:$0xff]
      %v368 = vld [vmem:[%s3 + $0x8] sm:$0xff]
      %v369 = vld [vmem:[%s3 + $0x10] sm:$0xff]
      %v370 = vld [vmem:[%s3 + $0x18] sm:$0xff]
      %v371 = vld [vmem:[%s3 + $0x20] sm:$0xff]
      %v372 = vld [vmem:[%s3 + $0x28] sm:$0xff]
      %v373 = vld [vmem:[%s3 + $0x30] sm:$0xff]
      %v374 = vld [vmem:[%s3 + $0x38] sm:$0xff]
      %v383 = vunpack.c.l.b16 %v367
      %v384 = vunpack.c.h.b16 %v367
      %v385 = vunpack.c.l.b16 %v368
      %v386 = vunpack.c.h.b16 %v368
      %v387 = vunpack.c.l.b16 %v369
      %v388 = vunpack.c.h.b16 %v369
      %v389 = vunpack.c.l.b16 %v370
      %v390 = vunpack.c.h.b16 %v370
      %v391 = vunpack.c.l.b16 %v371
      %v392 = vunpack.c.h.b16 %v371
      %v393 = vunpack.c.l.b16 %v372
      %v394 = vunpack.c.h.b16 %v372
      %v395 = vunpack.c.l.b16 %v373
      %v396 = vunpack.c.h.b16 %v373
      %v397 = vunpack.c.l.b16 %v374
      %v398 = vunpack.c.h.b16 %v374
      %v399 = vpack.c.b16 %v385, %v383
      %v400 = vpack.c.b16 %v386, %v384
      %v401 = vpack.c.b16 %v389, %v387
      %v402 = vpack.c.b16 %v390, %v388
      %v403 = vpack.c.b16 %v393, %v391
      %v404 = vpack.c.b16 %v394, %v392
      %v405 = vpack.c.b16 %v397, %v395
      %v406 = vpack.c.b16 %v398, %v396
      %v416 = vsel %vm212, %v363, 0
      %v419 = vsel %vm212, %v364, 0
      %v422 = vsel %vm212, %v365, 0
      %v425 = vsel %vm212, %v366, 0
      %427 = vmatprep.subr.bf16.mxu0 %v400
      %428 = vmatpush1.bf16.msra.mxu0 %v399
      %429 = vmatprep.subr.bf16.mxu0 %v402
      %430 = vmatpush1.bf16.msra.mxu0 %v401
      %431 = vmatprep.subr.bf16.mxu0 %v404
      %432 = vmatpush1.bf16.msra.mxu0 %v403
      %433 = vmatprep.subr.bf16.mxu0 %v406
      %434 = vmatpush1.bf16.msra.mxu0 %v405
      %435 = vmatprep.subr.bf16.mxu0 0
      %436 = vmatpush1.bf16.msra.mxu0 0
      %437 = vmatprep.subr.bf16.mxu0 0
      %438 = vmatpush1.bf16.msra.mxu0 0
      %439 = vmatprep.subr.bf16.mxu0 0
      %440 = vmatpush1.bf16.msra.mxu0 0
      %441 = vmatprep.subr.bf16.mxu0 0
      %442 = vmatpush1.bf16.msra.mxu0 0
      %443 = vmatprep.subr.bf16.mxu0 0
      %444 = vmatpush1.bf16.msra.mxu0 0
      %445 = vmatprep.subr.bf16.mxu0 0
      %446 = vmatpush1.bf16.msra.mxu0 0
      %447 = vmatprep.subr.bf16.mxu0 0
      %448 = vmatpush1.bf16.msra.mxu0 0
      %449 = vmatprep.subr.bf16.mxu0 0
      %450 = vmatpush1.bf16.msra.mxu0 0
      %451 = vmatprep.subr.bf16.mxu0 0
      %452 = vmatpush1.bf16.msra.mxu0 0
      %453 = vmatprep.subr.bf16.mxu0 0
      %454 = vmatpush1.bf16.msra.mxu0 0
      %455 = vmatprep.subr.bf16.mxu0 0
      %456 = vmatpush1.bf16.msra.mxu0 0
      %457 = vmatprep.subr.bf16.mxu0 0
      %458 = vmatpush1.bf16.msra.mxu0 0
      %459 = vmatprep.mubr.bf16.mxu0 0
      %460 = vmatmul.mubr.bf16.gmra.mrb[0].mxu0 %v416
      %v461 = vpop.f32.mrb[0].mxu0
      %v462 = vadd.f32 0.0, %v461
      %v463 = vpop.f32.mrb[0].mxu0
      %v464 = vadd.f32 0.0, %v463
      %v465 = vpop.f32.mrb[0].mxu0
      %v466 = vadd.f32 0.0, %v465
      %v467 = vpop.f32.mrb[0].mxu0
      %v468 = vadd.f32 0.0, %v467
      %469 = vmatprep.mubr.bf16.mxu0 0
      %470 = vmatmul.mubr.bf16.gmra.mrb[0].mxu0 %v419
      %v471 = vpop.f32.mrb[0].mxu0
      %v472 = vadd.f32 0.0, %v471
      %v473 = vpop.f32.mrb[0].mxu0
      %v474 = vadd.f32 0.0, %v473
      %v475 = vpop.f32.mrb[0].mxu0
      %v476 = vadd.f32 0.0, %v475
      %v477 = vpop.f32.mrb[0].mxu0
      %v478 = vadd.f32 0.0, %v477
      %479 = vmatprep.mubr.bf16.mxu0 0
      %480 = vmatmul.mubr.bf16.gmra.mrb[0].mxu0 %v422
      %v481 = vpop.f32.mrb[0].mxu0
      %v482 = vadd.f32 0.0, %v481
      %v483 = vpop.f32.mrb[0].mxu0
      %v484 = vadd.f32 0.0, %v483
      %v485 = vpop.f32.mrb[0].mxu0
      %v486 = vadd.f32 0.0, %v485
      %v487 = vpop.f32.mrb[0].mxu0
      %v488 = vadd.f32 0.0, %v487
      %489 = vmatprep.mubr.bf16.mxu0 0
      %490 = vmatmul.mubr.bf16.gmra.mrb[0].mxu0 %v425
      %v491 = vpop.f32.mrb[0].mxu0
      %v492 = vadd.f32 0.0, %v491
      %v493 = vpop.f32.mrb[0].mxu0
      %v494 = vadd.f32 0.0, %v493
      %v495 = vpop.f32.mrb[0].mxu0
      %v496 = vadd.f32 0.0, %v495
      %v497 = vpop.f32.mrb[0].mxu0
      %v498 = vadd.f32 0.0, %v497
      %499 = vdwg.mxu0
      %v500 = vpack.c.bf16 %v466, %v462
      %v501 = vpack.c.bf16 %v468, %v464
      %v502 = vpack.c.bf16 %v476, %v472
      %v503 = vpack.c.bf16 %v478, %v474
      %v504 = vpack.c.bf16 %v486, %v482
      %v505 = vpack.c.bf16 %v488, %v484
      %v506 = vpack.c.bf16 %v496, %v492
      %v507 = vpack.c.bf16 %v498, %v494
      %v516 = vunpack.c.l.b16 %v500
      %v517 = vunpack.c.l.b16 %v501
      %v518 = vunpack.c.h.b16 %v500
      %v519 = vunpack.c.h.b16 %v501
      %v520 = vunpack.c.l.b16 %v502
      %v521 = vunpack.c.l.b16 %v503
      %v522 = vunpack.c.h.b16 %v502
      %v523 = vunpack.c.h.b16 %v503
      %v524 = vunpack.c.l.b16 %v504
      %v525 = vunpack.c.l.b16 %v505
      %v526 = vunpack.c.h.b16 %v504
      %v527 = vunpack.c.h.b16 %v505
      %v528 = vunpack.c.l.b16 %v506
      %v529 = vunpack.c.l.b16 %v507
      %v530 = vunpack.c.h.b16 %v506
      %v531 = vunpack.c.h.b16 %v507
      %v532 = vpack.c.b16 %v517, %v516
      %v533 = vpack.c.b16 %v519, %v518
      %v534 = vpack.c.b16 %v521, %v520
      %v535 = vpack.c.b16 %v523, %v522
      %v536 = vpack.c.b16 %v525, %v524
      %v537 = vpack.c.b16 %v527, %v526
      %v538 = vpack.c.b16 %v529, %v528
      %v539 = vpack.c.b16 %v531, %v530
      %vm548 = vcmask 1043456
      %vm549 = vcmask 523268
      %vm550 = vmor %vm549, %vm548
      %551 = vst.msk [vmem:[%s201] sm:$0xff] %vm550, %v532
      %552 = vst.msk [vmem:[%s201 + $0x8] sm:$0xff] %vm550, %v533
      %553 = vst.msk [vmem:[%s201 + $0x10] sm:$0xff] %vm550, %v534
      %554 = vst.msk [vmem:[%s201 + $0x18] sm:$0xff] %vm550, %v535
      %555 = vst.msk [vmem:[%s201 + $0x20] sm:$0xff] %vm550, %v536
      %556 = vst.msk [vmem:[%s201 + $0x28] sm:$0xff] %vm550, %v537
      %557 = vst.msk [vmem:[%s201 + $0x30] sm:$0xff] %vm550, %v538
      %558 = vst.msk [vmem:[%s201 + $0x38] sm:$0xff] %vm550, %v539
      %s559 = smul.u32 8, %s15
      %p560 = scmp.lt.s32.totalorder %s559, 15
      %s561 = scalar_select %p560, %s559, 15
      %s562 = smul.addr %s561, 2
      %s563 = smul.addr %s562, 4
      %s564 = scalar_lea.vmem %s4, %s563
      // Predicated region
      $region37: #{transformer_block_forward.4} parent=35 // pred_check
        %p565 = pneg %p122
      $region38: #{transformer_block_forward.4} parent=35 // pred_check_branch
        %567 = sbr.rel (%p565) target = $region40
      $region39: #{transformer_block_forward.4} parent=35 // pred_region
        %s568 = smul.u32 8, %s15
      $region40: #{transformer_block_forward.4} parent=35 // pred_fallthru
        _
    $region36: #{transformer_block_forward.4} parent=5 // pred_fallthru
      _
    %p569 = scmp.le.s32.totalorder 2, %s10
    // Predicated region
    $region41: #{transformer_block_forward.4} parent=5 // pred_check
      %p570 = pneg %p569
    $region42: #{transformer_block_forward.4} parent=5 // pred_check_branch
      %572 = sbr.rel (%p570) target = $region44
    $region43: #{transformer_block_forward.4} parent=5 // pred_region
      %s573 = ssub.s32 %s10, 2
      // Predicated region
      $region45: #{transformer_block_forward.4} parent=43 // pred_check
        %p574 = pneg %p128
      $region46: #{transformer_block_forward.4} parent=43 // pred_check_branch
        %576 = sbr.rel (%p574) target = $region48
      $region47: #{transformer_block_forward.4} parent=43 // pred_region
        %s577 = smul.u32 8, %s16
        %p578 = scmp.lt.s32.totalorder %s577, 15
        %s579 = scalar_select %p578, %s577, 15
        %s580 = smul.addr %s579, 2
        %s581 = smul.addr %s580, 4
        %s582 = scalar_lea.vmem %s4, %s581
      $region48: #{transformer_block_forward.4} parent=43 // pred_fallthru
        _
    $region44: #{transformer_block_forward.4} parent=5 // pred_fallthru
      _
  $region6: #{transformer_block_forward.4} parent=0 // loop_footer
    %s14 = sadd.s32 1, %s10
  $region7: #{transformer_block_forward.4} parent=0 // loop_footer_branch
    %9 = sbr.rel target = $region3
  $region8: #{transformer_block_forward.4} parent=0 // loop_exit
    _

// kernel: transformer_block_forward.6
$region0: #{transformer_block_forward.6}
  #allocation0 [shape = 'u32[]', space=smem, size = 0x4, offset = 0x4, fixed_abs, tag = 'smem constant byte address 0x4 - core index']
  #allocation1 [shape = 'u32[144,128]{1,0:T(1,128)}', space=vmem, size = 0x12000, scoped, tag = 'internal scratch']
  %s0 = inlined_call_operand.vmem [shape: f32[128,64], index: 0, kind: input, shape index: {}]
  %s1 = inlined_call_operand.vmem [shape: f32[1,64], index: 1, kind: input, shape index: {}]
  %s2 = inlined_call_operand.vmem [shape: f32[1,64], index: 2, kind: input, shape index: {}]
  %s3 = inlined_call_operand.vmem [shape: bf16[64,256], index: 3, kind: input, shape index: {}]
  %s4 = inlined_call_operand.vmem [shape: bf16[128,256], index: 4, kind: output, shape index: {}]
  %s5 = sld [smem:[#allocation0]]
  $region49: #{transformer_block_forward.6} parent=0
    _
  %s7 = ssub.s32 1, %s5
  %s8 = scalar_select 0, %s7, %s5
  loop: start=0, step=1, limit=4
  $region2: #{transformer_block_forward.6} parent=0 // loop_pre_header
    _
  $region3: #{transformer_block_forward.6} parent=0 // loop_header
    %s10 = sphi 0, %s14
    %p11 = scmp.ge.s32.totalorder %s10, 4
    %s20 = sphi 0, %s22
    %s23 = sphi 0, %s20
    %s24 = sphi 0, %s23
    %s40 = sphi 0, %s24
    %s44 = sphi 0, %s44
    %s46 = sphi 0, %s44
    %s47 = sphi 0, %s46
    %s61 = sphi 0, %s47
    %s65 = sphi 0, %s65
    %s67 = sphi 0, %s65
    %s68 = sphi 0, %s67
    %s82 = sphi 0, %s68
    %s86 = sphi 0, %s86
    %s88 = sphi 0, %s86
    %s89 = sphi 0, %s88
    %s103 = sphi 0, %s89
    %s109 = sphi 0, %s111
    %s112 = sphi 0, %s109
    %s113 = sphi 0, %s112
    %s129 = sphi 0, %s113
  $region4: #{transformer_block_forward.6} parent=0 // loop_header_branch
    %13 = sbr.rel (%p11) target = $region8
  $region5: #{transformer_block_forward.6} parent=0 // loop_body
    %s15 = ssub.s32 %s10, 1
    %s16 = ssub.s32 %s10, 2
    %s17 = sadd.s32 %s10, 1
    %s18 = ssub.s32 %s10, %s17
    %p19 = scmp.eq.s32.totalorder %s18, 0
    %s21 = sadd.s32 %s20, 1
    %s22 = scalar_select %p19, %s20, %s21
    %p25 = pneg %p19
    %p26 = scmp.eq.s32.totalorder %s10, 1
    %p27 = por %p25, %p26
    %p28 = scmp.ne.s32.totalorder %s20, %s23
    %p29 = scmp.eq.s32.totalorder %s10, 0
    %p30 = por %p28, %p29
    %p31 = scmp.ne.s32.totalorder %s20, %s23
    %p32 = scmp.eq.s32.totalorder %s15, 1
    %p33 = por %p31, %p32
    %p34 = scmp.ne.s32.totalorder %s23, %s24
    %p35 = scmp.eq.s32.totalorder %s15, 0
    %p36 = por %p34, %p35
    %p37 = scmp.ne.s32.totalorder %s23, %s24
    %p38 = scmp.eq.s32.totalorder %s16, 1
    %p39 = por %p37, %p38
    %p41 = scmp.ne.s32.totalorder %s24, %s40
    %p42 = scmp.eq.s32.totalorder %s16, 0
    %p43 = por %p41, %p42
    %s45 = sadd.s32 %s44, 1
    %p48 = scmp.eq.s32.totalorder %s10, 1
    %p49 = scmp.ne.s32.totalorder %s44, %s46
    %p50 = scmp.eq.s32.totalorder %s10, 0
    %p51 = por %p49, %p50
    %p52 = scmp.ne.s32.totalorder %s44, %s46
    %p53 = scmp.eq.s32.totalorder %s15, 1
    %p54 = por %p52, %p53
    %p55 = scmp.ne.s32.totalorder %s46, %s47
    %p56 = scmp.eq.s32.totalorder %s15, 0
    %p57 = por %p55, %p56
    %p58 = scmp.ne.s32.totalorder %s46, %s47
    %p59 = scmp.eq.s32.totalorder %s16, 1
    %p60 = por %p58, %p59
    %p62 = scmp.ne.s32.totalorder %s47, %s61
    %p63 = scmp.eq.s32.totalorder %s16, 0
    %p64 = por %p62, %p63
    %s66 = sadd.s32 %s65, 1
    %p69 = scmp.eq.s32.totalorder %s10, 1
    %p70 = scmp.ne.s32.totalorder %s65, %s67
    %p71 = scmp.eq.s32.totalorder %s10, 0
    %p72 = por %p70, %p71
    %p73 = scmp.ne.s32.totalorder %s65, %s67
    %p74 = scmp.eq.s32.totalorder %s15, 1
    %p75 = por %p73, %p74
    %p76 = scmp.ne.s32.totalorder %s67, %s68
    %p77 = scmp.eq.s32.totalorder %s15, 0
    %p78 = por %p76, %p77
    %p79 = scmp.ne.s32.totalorder %s67, %s68
    %p80 = scmp.eq.s32.totalorder %s16, 1
    %p81 = por %p79, %p80
    %p83 = scmp.ne.s32.totalorder %s68, %s82
    %p84 = scmp.eq.s32.totalorder %s16, 0
    %p85 = por %p83, %p84
    %s87 = sadd.s32 %s86, 1
    %p90 = scmp.eq.s32.totalorder %s10, 1
    %p91 = scmp.ne.s32.totalorder %s86, %s88
    %p92 = scmp.eq.s32.totalorder %s10, 0
    %p93 = por %p91, %p92
    %p94 = scmp.ne.s32.totalorder %s86, %s88
    %p95 = scmp.eq.s32.totalorder %s15, 1
    %p96 = por %p94, %p95
    %p97 = scmp.ne.s32.totalorder %s88, %s89
    %p98 = scmp.eq.s32.totalorder %s15, 0
    %p99 = por %p97, %p98
    %p100 = scmp.ne.s32.totalorder %s88, %s89
    %p101 = scmp.eq.s32.totalorder %s16, 1
    %p102 = por %p100, %p101
    %p104 = scmp.ne.s32.totalorder %s89, %s103
    %p105 = scmp.eq.s32.totalorder %s16, 0
    %p106 = por %p104, %p105
    %s107 = ssub.s32 %s10, %s17
    %p108 = scmp.eq.s32.totalorder %s107, 0
    %s110 = sadd.s32 %s109, 1
    %s111 = scalar_select %p108, %s109, %s110
    %p114 = pneg %p108
    %p115 = scmp.eq.s32.totalorder %s10, 1
    %p116 = por %p114, %p115
    %p117 = scmp.ne.s32.totalorder %s109, %s112
    %p118 = scmp.eq.s32.totalorder %s10, 0
    %p119 = por %p117, %p118
    %p120 = scmp.ne.s32.totalorder %s109, %s112
    %p121 = scmp.eq.s32.totalorder %s15, 1
    %p122 = por %p120, %p121
    %p123 = scmp.ne.s32.totalorder %s112, %s113
    %p124 = scmp.eq.s32.totalorder %s15, 0
    %p125 = por %p123, %p124
    %p126 = scmp.ne.s32.totalorder %s112, %s113
    %p127 = scmp.eq.s32.totalorder %s16, 1
    %p128 = por %p126, %p127
    %p130 = scmp.ne.s32.totalorder %s113, %s129
    %p131 = scmp.eq.s32.totalorder %s16, 0
    %p132 = por %p130, %p131
    %p133 = scmp.le.s32.totalorder 1, %s10
    %p134 = scmp.lt.s32.totalorder %s10, 3
    %p135 = pnand %p133, %p134
    %p136 = pneg %p135
    // Predicated region
    $region9: #{transformer_block_forward.6} parent=5 // pred_check
      _
    $region10: #{transformer_block_forward.6} parent=5 // pred_check_branch
      %138 = sbr.rel (%p135) target = $region12
    $region11: #{transformer_block_forward.6} parent=5 // pred_region
      %s139 = ssub.s32 %s10, 1
      // Predicated region
      $region13: #{transformer_block_forward.6} parent=11 // pred_check
        %p140 = pneg %p57
      $region14: #{transformer_block_forward.6} parent=11 // pred_check_branch
        %142 = sbr.rel (%p140) target = $region16
      $region15: #{transformer_block_forward.6} parent=11 // pred_region
        _
      $region16: #{transformer_block_forward.6} parent=11 // pred_fallthru
        _
      // Predicated region
      $region17: #{transformer_block_forward.6} parent=11 // pred_check
        %p143 = pneg %p78
      $region18: #{transformer_block_forward.6} parent=11 // pred_check_branch
        %145 = sbr.rel (%p143) target = $region20
      $region19: #{transformer_block_forward.6} parent=11 // pred_region
        _
      $region20: #{transformer_block_forward.6} parent=11 // pred_fallthru
        _
      // Predicated region
      $region21: #{transformer_block_forward.6} parent=11 // pred_check
        %p146 = pneg %p99
      $region22: #{transformer_block_forward.6} parent=11 // pred_check_branch
        %148 = sbr.rel (%p146) target = $region24
      $region23: #{transformer_block_forward.6} parent=11 // pred_region
        _
      $region24: #{transformer_block_forward.6} parent=11 // pred_fallthru
        _
    $region12: #{transformer_block_forward.6} parent=5 // pred_fallthru
      _
    %p149 = scmp.lt.s32.totalorder %s10, 2
    // Predicated region
    $region25: #{transformer_block_forward.6} parent=5 // pred_check
      %p150 = pneg %p149
    $region26: #{transformer_block_forward.6} parent=5 // pred_check_branch
      %152 = sbr.rel (%p150) target = $region28
    $region27: #{transformer_block_forward.6} parent=5 // pred_region
      // Predicated region
      $region29: #{transformer_block_forward.6} parent=27 // pred_check
        %p153 = pneg %p30
      $region30: #{transformer_block_forward.6} parent=27 // pred_check_branch
        %155 = sbr.rel (%p153) target = $region32
      $region31: #{transformer_block_forward.6} parent=27 // pred_region
        %s156 = smul.u32 8, %s10
        %p157 = scmp.lt.s32.totalorder %s156, 15
        %s158 = scalar_select %p157, %s156, 15
        %s159 = smul.addr %s158, 8
        %s160 = scalar_lea.vmem %s0, %s159
        %s161 = smul.u32 8, %s10
      $region32: #{transformer_block_forward.6} parent=27 // pred_fallthru
        _
    $region28: #{transformer_block_forward.6} parent=5 // pred_fallthru
      _
    %p162 = scmp.le.s32.totalorder 1, %s10
    %p163 = scmp.lt.s32.totalorder %s10, 3
    %p164 = pnand %p162, %p163
    %p165 = pneg %p164
    // Predicated region
    $region33: #{transformer_block_forward.6} parent=5 // pred_check
      _
    $region34: #{transformer_block_forward.6} parent=5 // pred_check_branch
      %167 = sbr.rel (%p164) target = $region36
    $region35: #{transformer_block_forward.6} parent=5 // pred_region
      %s168 = ssub.s32 %s10, 1
      %s169 = smul.u32 8, %s15
      %p170 = scmp.lt.s32.totalorder %s169, 15
      %s171 = scalar_select %p170, %s169, 15
      %s172 = smul.addr %s171, 8
      %s173 = scalar_lea.vmem %s0, %s172
      %p174 = pneg %p36
      %p175 = pneg %p33
      %p176 = pneg %p57
      %p177 = pneg %p54
      %p178 = pneg %p78
      %p179 = pneg %p75
      %p180 = pneg %p99
      %p181 = pneg %p96
      %p182 = pneg %p125
      %p183 = pneg %p122
      %s184 = smul.u32 8, %s15
      %p185 = scmp.lt.s32.totalorder %s184, 15
      %s186 = scalar_select %p185, %s184, 15
      %s187 = smul.addr %s186, 2
      %s188 = smul.addr %s187, 4
      %s189 = scalar_lea.vmem %s4, %s188
      %s190 = smul.u32 8, %s15
      %p191 = scmp.lt.s32.totalorder %s190, 15
      %s192 = scalar_select %p191, %s190, 15
      %s193 = smul.addr %s192, 8
      %s194 = scalar_lea.vmem %s0, %s193
      %s195 = smul.u32 8, %s15
      %s196 = smul.u32 8, %s15
      %p197 = scmp.lt.s32.totalorder %s196, 15
      %s198 = scalar_select %p197, %s196, 15
      %s199 = smul.addr %s198, 2
      %s200 = smul.addr %s199, 4
      %s201 = scalar_lea.vmem %s4, %s200
      %s202 = smul.u32 8, %s15
      %v204 = vld [vmem:[%s194] sm:$0xff]
      %v205 = vld [vmem:[%s194 + $0x8] sm:$0xff]
      %v206 = vld [vmem:[%s194 + $0x10] sm:$0xff]
      %v207 = vld [vmem:[%s194 + $0x18] sm:$0xff]
      %v208 = vld [vmem:[%s194 + $0x20] sm:$0xff]
      %v209 = vld [vmem:[%s194 + $0x28] sm:$0xff]
      %v210 = vld [vmem:[%s194 + $0x30] sm:$0xff]
      %v211 = vld [vmem:[%s194 + $0x38] sm:$0xff]
      %vm212 = vcmask 523264
      %v213 = vsel %vm212, %v204, 0.0
      %214 = vadd.xlane.f32.xlu0 %v213
      %v215 = vpop.xlane.xlu0 %214
      %v216 = vsel %vm212, %v205, 0.0
      %217 = vadd.xlane.f32.xlu0 %v216
      %v218 = vpop.xlane.xlu0 %217
      %v219 = vsel %vm212, %v206, 0.0
      %220 = vadd.xlane.f32.xlu0 %v219
      %v221 = vpop.xlane.xlu0 %220
      %v222 = vsel %vm212, %v207, 0.0
      %223 = vadd.xlane.f32.xlu0 %v222
      %v224 = vpop.xlane.xlu0 %223
      %v225 = vsel %vm212, %v208, 0.0
      %226 = vadd.xlane.f32.xlu0 %v225
      %v227 = vpop.xlane.xlu0 %226
      %v228 = vsel %vm212, %v209, 0.0
      %229 = vadd.xlane.f32.xlu0 %v228
      %v230 = vpop.xlane.xlu0 %229
      %v231 = vsel %vm212, %v210, 0.0
      %232 = vadd.xlane.f32.xlu0 %v231
      %v233 = vpop.xlane.xlu0 %232
      %v234 = vsel %vm212, %v211, 0.0
      %235 = vadd.xlane.f32.xlu0 %v234
      %v236 = vpop.xlane.xlu0 %235
      %v237 = vmul.f32 %v215, 0.020408163
      %v238 = vmul.f32 %v218, 0.020408163
      %v239 = vmul.f32 %v221, 0.020408163
      %v240 = vmul.f32 %v224, 0.020408163
      %v241 = vmul.f32 %v227, 0.020408163
      %v242 = vmul.f32 %v230, 0.020408163
      %v243 = vmul.f32 %v233, 0.020408163
      %v244 = vmul.f32 %v236, 0.020408163
      %v245 = vmul.f32 %v204, %v204
      %v246 = vmul.f32 %v205, %v205
      %v247 = vmul.f32 %v206, %v206
      %v248 = vmul.f32 %v207, %v207
      %v249 = vmul.f32 %v208, %v208
      %v250 = vmul.f32 %v209, %v209
      %v251 = vmul.f32 %v210, %v210
      %v252 = vmul.f32 %v211, %v211
      %v253 = vsel %vm212, %v245, 0.0
      %254 = vadd.xlane.f32.xlu0 %v253
      %v255 = vpop.xlane.xlu0 %254
      %v256 = vsel %vm212, %v246, 0.0
      %257 = vadd.xlane.f32.xlu0 %v256
      %v258 = vpop.xlane.xlu0 %257
      %v259 = vsel %vm212, %v247, 0.0
      %260 = vadd.xlane.f32.xlu0 %v259
      %v261 = vpop.xlane.xlu0 %260
      %v262 = vsel %vm212, %v248, 0.0
      %263 = vadd.xlane.f32.xlu0 %v262
      %v264 = vpop.xlane.xlu0 %263
      %v265 = vsel %vm212, %v249, 0.0
      %266 = vadd.xlane.f32.xlu0 %v265
      %v267 = vpop.xlane.xlu0 %266
      %v268 = vsel %vm212, %v250, 0.0
      %269 = vadd.xlane.f32.xlu0 %v268
      %v270 = vpop.xlane.xlu0 %269
      %v271 = vsel %vm212, %v251, 0.0
      %272 = vadd.xlane.f32.xlu0 %v271
      %v273 = vpop.xlane.xlu0 %272
      %v274 = vsel %vm212, %v252, 0.0
      %275 = vadd.xlane.f32.xlu0 %v274
      %v276 = vpop.xlane.xlu0 %275
      %v277 = vmul.f32 %v255, 0.020408163
      %v278 = vmul.f32 %v258, 0.020408163
      %v279 = vmul.f32 %v261, 0.020408163
      %v280 = vmul.f32 %v264, 0.020408163
      %v281 = vmul.f32 %v267, 0.020408163
      %v282 = vmul.f32 %v270, 0.020408163
      %v283 = vmul.f32 %v273, 0.020408163
      %v284 = vmul.f32 %v276, 0.020408163
      %v285 = vmul.f32 %v237, %v237
      %v286 = vmul.f32 %v238, %v238
      %v287 = vmul.f32 %v239, %v239
      %v288 = vmul.f32 %v240, %v240
      %v289 = vmul.f32 %v241, %v241
      %v290 = vmul.f32 %v242, %v242
      %v291 = vmul.f32 %v243, %v243
      %v292 = vmul.f32 %v244, %v244
      %v293 = vsub.f32 %v277, %v285
      %v294 = vsub.f32 %v278, %v286
      %v295 = vsub.f32 %v279, %v287
      %v296 = vsub.f32 %v280, %v288
      %v297 = vsub.f32 %v281, %v289
      %v298 = vsub.f32 %v282, %v290
      %v299 = vsub.f32 %v283, %v291
      %v300 = vsub.f32 %v284, %v292
      %v301 = vsub.f32 %v204, %v237
      %v302 = vsub.f32 %v205, %v238
      %v303 = vsub.f32 %v206, %v239
      %v304 = vsub.f32 %v207, %v240
      %v305 = vsub.f32 %v208, %v241
      %v306 = vsub.f32 %v209, %v242
      %v307 = vsub.f32 %v210, %v243
      %v308 = vsub.f32 %v211, %v244
      %v309 = vadd.f32 %v293, 1e-05
      %v310 = vadd.f32 %v294, 1e-05
      %v311 = vadd.f32 %v295, 1e-05
      %v312 = vadd.f32 %v296, 1e-05
      %v313 = vadd.f32 %v297, 1e-05
      %v314 = vadd.f32 %v298, 1e-05
      %v315 = vadd.f32 %v299, 1e-05
      %v316 = vadd.f32 %v300, 1e-05
      %v317 = vrsqrt.pop %v309
      %v318 = vrsqrt.pop %v310
      %v319 = vrsqrt.pop %v311
      %v320 = vrsqrt.pop %v312
      %v321 = vrsqrt.pop %v313
      %v322 = vrsqrt.pop %v314
      %v323 = vrsqrt.pop %v315
      %v324 = vrsqrt.pop %v316
      %v325 = vmul.f32 %v301, %v317
      %v326 = vmul.f32 %v302, %v318
      %v327 = vmul.f32 %v303, %v319
      %v328 = vmul.f32 %v304, %v320
      %v329 = vmul.f32 %v305, %v321
      %v330 = vmul.f32 %v306, %v322
      %v331 = vmul.f32 %v307, %v323
      %v332 = vmul.f32 %v308, %v324
      %v333 = vld [vmem:[%s1] sm:$0x1]
      %v335 = vlaneseq
      %v336 = vshrl.u32 %v335, 7
      %v337 = vsub.s32 0, %v336
      %v338 = vrot.slane %v333, %v337
      %v340 = vmul.f32 %v325, %v338
      %v341 = vmul.f32 %v326, %v338
      %v342 = vmul.f32 %v327, %v338
      %v343 = vmul.f32 %v328, %v338
      %v344 = vmul.f32 %v329, %v338
      %v345 = vmul.f32 %v330, %v338
      %v346 = vmul.f32 %v331, %v338
      %v347 = vmul.f32 %v332, %v338
      %v348 = vld [vmem:[%s2] sm:$0x1]
      %v350 = vlaneseq
      %v351 = vshrl.u32 %v350, 7
      %v352 = vsub.s32 0, %v351
      %v353 = vrot.slane %v348, %v352
      %v355 = vadd.f32 %v340, %v353
      %v356 = vadd.f32 %v341, %v353
      %v357 = vadd.f32 %v342, %v353
      %v358 = vadd.f32 %v343, %v353
      %v359 = vadd.f32 %v344, %v353
      %v360 = vadd.f32 %v345, %v353
      %v361 = vadd.f32 %v346, %v353
      %v362 = vadd.f32 %v347, %v353
      %v363 = vpack.c.bf16 %v356, %v355
      %v364 = vpack.c.bf16 %v358, %v357
      %v365 = vpack.c.bf16 %v360, %v359
      %v366 = vpack.c.bf16 %v362, %v361
      %v367 = vld [vmem:[%s3] sm:$0xff]
      %v368 = vld [vmem:[%s3 + $0x8] sm:$0xff]
      %v369 = vld [vmem:[%s3 + $0x10] sm:$0xff]
      %v370 = vld [vmem:[%s3 + $0x18] sm:$0xff]
      %v371 = vld [vmem:[%s3 + $0x20] sm:$0xff]
      %v372 = vld [vmem:[%s3 + $0x28] sm:$0xff]
      %v373 = vld [vmem:[%s3 + $0x30] sm:$0xff]
      %v374 = vld [vmem:[%s3 + $0x38] sm:$0xff]
      %v383 = vunpack.c.l.b16 %v367
      %v384 = vunpack.c.h.b16 %v367
      %v385 = vunpack.c.l.b16 %v368
      %v386 = vunpack.c.h.b16 %v368
      %v387 = vunpack.c.l.b16 %v369
      %v388 = vunpack.c.h.b16 %v369
      %v389 = vunpack.c.l.b16 %v370
      %v390 = vunpack.c.h.b16 %v370
      %v391 = vunpack.c.l.b16 %v371
      %v392 = vunpack.c.h.b16 %v371
      %v393 = vunpack.c.l.b16 %v372
      %v394 = vunpack.c.h.b16 %v372
      %v395 = vunpack.c.l.b16 %v373
      %v396 = vunpack.c.h.b16 %v373
      %v397 = vunpack.c.l.b16 %v374
      %v398 = vunpack.c.h.b16 %v374
      %v399 = vpack.c.b16 %v385, %v383
      %v400 = vpack.c.b16 %v386, %v384
      %v401 = vpack.c.b16 %v389, %v387
      %v402 = vpack.c.b16 %v390, %v388
      %v403 = vpack.c.b16 %v393, %v391
      %v404 = vpack.c.b16 %v394, %v392
      %v405 = vpack.c.b16 %v397, %v395
      %v406 = vpack.c.b16 %v398, %v396
      %v416 = vsel %vm212, %v363, 0
      %v419 = vsel %vm212, %v364, 0
      %v422 = vsel %vm212, %v365, 0
      %v425 = vsel %vm212, %v366, 0
      %427 = vmatprep.subr.bf16.mxu0 %v400
      %428 = vmatpush1.bf16.msra.mxu0 %v399
      %429 = vmatprep.subr.bf16.mxu0 %v402
      %430 = vmatpush1.bf16.msra.mxu0 %v401
      %431 = vmatprep.subr.bf16.mxu0 %v404
      %432 = vmatpush1.bf16.msra.mxu0 %v403
      %433 = vmatprep.subr.bf16.mxu0 %v406
      %434 = vmatpush1.bf16.msra.mxu0 %v405
      %435 = vmatprep.subr.bf16.mxu0 0
      %436 = vmatpush1.bf16.msra.mxu0 0
      %437 = vmatprep.subr.bf16.mxu0 0
      %438 = vmatpush1.bf16.msra.mxu0 0
      %439 = vmatprep.subr.bf16.mxu0 0
      %440 = vmatpush1.bf16.msra.mxu0 0
      %441 = vmatprep.subr.bf16.mxu0 0
      %442 = vmatpush1.bf16.msra.mxu0 0
      %443 = vmatprep.subr.bf16.mxu0 0
      %444 = vmatpush1.bf16.msra.mxu0 0
      %445 = vmatprep.subr.bf16.mxu0 0
      %446 = vmatpush1.bf16.msra.mxu0 0
      %447 = vmatprep.subr.bf16.mxu0 0
      %448 = vmatpush1.bf16.msra.mxu0 0
      %449 = vmatprep.subr.bf16.mxu0 0
      %450 = vmatpush1.bf16.msra.mxu0 0
      %451 = vmatprep.subr.bf16.mxu0 0
      %452 = vmatpush1.bf16.msra.mxu0 0
      %453 = vmatprep.subr.bf16.mxu0 0
      %454 = vmatpush1.bf16.msra.mxu0 0
      %455 = vmatprep.subr.bf16.mxu0 0
      %456 = vmatpush1.bf16.msra.mxu0 0
      %457 = vmatprep.subr.bf16.mxu0 0
      %458 = vmatpush1.bf16.msra.mxu0 0
      %459 = vmatprep.mubr.bf16.mxu0 0
      %460 = vmatmul.mubr.bf16.gmra.mrb[0].mxu0 %v416
      %v461 = vpop.f32.mrb[0].mxu0
      %v462 = vadd.f32 0.0, %v461
      %v463 = vpop.f32.mrb[0].mxu0
      %v464 = vadd.f32 0.0, %v463
      %v465 = vpop.f32.mrb[0].mxu0
      %v466 = vadd.f32 0.0, %v465
      %v467 = vpop.f32.mrb[0].mxu0
      %v468 = vadd.f32 0.0, %v467
      %469 = vmatprep.mubr.bf16.mxu0 0
      %470 = vmatmul.mubr.bf16.gmra.mrb[0].mxu0 %v419
      %v471 = vpop.f32.mrb[0].mxu0
      %v472 = vadd.f32 0.0, %v471
      %v473 = vpop.f32.mrb[0].mxu0
      %v474 = vadd.f32 0.0, %v473
      %v475 = vpop.f32.mrb[0].mxu0
      %v476 = vadd.f32 0.0, %v475
      %v477 = vpop.f32.mrb[0].mxu0
      %v478 = vadd.f32 0.0, %v477
      %479 = vmatprep.mubr.bf16.mxu0 0
      %480 = vmatmul.mubr.bf16.gmra.mrb[0].mxu0 %v422
      %v481 = vpop.f32.mrb[0].mxu0
      %v482 = vadd.f32 0.0, %v481
      %v483 = vpop.f32.mrb[0].mxu0
      %v484 = vadd.f32 0.0, %v483
      %v485 = vpop.f32.mrb[0].mxu0
      %v486 = vadd.f32 0.0, %v485
      %v487 = vpop.f32.mrb[0].mxu0
      %v488 = vadd.f32 0.0, %v487
      %489 = vmatprep.mubr.bf16.mxu0 0
      %490 = vmatmul.mubr.bf16.gmra.mrb[0].mxu0 %v425
      %v491 = vpop.f32.mrb[0].mxu0
      %v492 = vadd.f32 0.0, %v491
      %v493 = vpop.f32.mrb[0].mxu0
      %v494 = vadd.f32 0.0, %v493
      %v495 = vpop.f32.mrb[0].mxu0
      %v496 = vadd.f32 0.0, %v495
      %v497 = vpop.f32.mrb[0].mxu0
      %v498 = vadd.f32 0.0, %v497
      %499 = vdwg.mxu0
      %v500 = vpack.c.bf16 %v466, %v462
      %v501 = vpack.c.bf16 %v468, %v464
      %v502 = vpack.c.bf16 %v476, %v472
      %v503 = vpack.c.bf16 %v478, %v474
      %v504 = vpack.c.bf16 %v486, %v482
      %v505 = vpack.c.bf16 %v488, %v484
      %v506 = vpack.c.bf16 %v496, %v492
      %v507 = vpack.c.bf16 %v498, %v494
      %v516 = vunpack.c.l.b16 %v500
      %v517 = vunpack.c.l.b16 %v501
      %v518 = vunpack.c.h.b16 %v500
      %v519 = vunpack.c.h.b16 %v501
      %v520 = vunpack.c.l.b16 %v502
      %v521 = vunpack.c.l.b16 %v503
      %v522 = vunpack.c.h.b16 %v502
      %v523 = vunpack.c.h.b16 %v503
      %v524 = vunpack.c.l.b16 %v504
      %v525 = vunpack.c.l.b16 %v505
      %v526 = vunpack.c.h.b16 %v504
      %v527 = vunpack.c.h.b16 %v505
      %v528 = vunpack.c.l.b16 %v506
      %v529 = vunpack.c.l.b16 %v507
      %v530 = vunpack.c.h.b16 %v506
      %v531 = vunpack.c.h.b16 %v507
      %v532 = vpack.c.b16 %v517, %v516
      %v533 = vpack.c.b16 %v519, %v518
      %v534 = vpack.c.b16 %v521, %v520
      %v535 = vpack.c.b16 %v523, %v522
      %v536 = vpack.c.b16 %v525, %v524
      %v537 = vpack.c.b16 %v527, %v526
      %v538 = vpack.c.b16 %v529, %v528
      %v539 = vpack.c.b16 %v531, %v530
      %548 = vst [vmem:[%s201] sm:$0xff] %v532
      %549 = vst [vmem:[%s201 + $0x8] sm:$0xff] %v533
      %550 = vst [vmem:[%s201 + $0x10] sm:$0xff] %v534
      %551 = vst [vmem:[%s201 + $0x18] sm:$0xff] %v535
      %552 = vst [vmem:[%s201 + $0x20] sm:$0xff] %v536
      %553 = vst [vmem:[%s201 + $0x28] sm:$0xff] %v537
      %554 = vst [vmem:[%s201 + $0x30] sm:$0xff] %v538
      %555 = vst [vmem:[%s201 + $0x38] sm:$0xff] %v539
      %s556 = smul.u32 8, %s15
      %p557 = scmp.lt.s32.totalorder %s556, 15
      %s558 = scalar_select %p557, %s556, 15
      %s559 = smul.addr %s558, 2
      %s560 = smul.addr %s559, 4
      %s561 = scalar_lea.vmem %s4, %s560
      // Predicated region
      $region37: #{transformer_block_forward.6} parent=35 // pred_check
        %p562 = pneg %p122
      $region38: #{transformer_block_forward.6} parent=35 // pred_check_branch
        %564 = sbr.rel (%p562) target = $region40
      $region39: #{transformer_block_forward.6} parent=35 // pred_region
        %s565 = smul.u32 8, %s15
      $region40: #{transformer_block_forward.6} parent=35 // pred_fallthru
        _
    $region36: #{transformer_block_forward.6} parent=5 // pred_fallthru
      _
    %p566 = scmp.le.s32.totalorder 2, %s10
    // Predicated region
    $region41: #{transformer_block_forward.6} parent=5 // pred_check
      %p567 = pneg %p566
    $region42: #{transformer_block_forward.6} parent=5 // pred_check_branch
      %569 = sbr.rel (%p567) target = $region44
    $region43: #{transformer_block_forward.6} parent=5 // pred_region
      %s570 = ssub.s32 %s10, 2
      // Predicated region
      $region45: #{transformer_block_forward.6} parent=43 // pred_check
        %p571 = pneg %p128
      $region46: #{transformer_block_forward.6} parent=43 // pred_check_branch
        %573 = sbr.rel (%p571) target = $region48
      $region47: #{transformer_block_forward.6} parent=43 // pred_region
        %s574 = smul.u32 8, %s16
        %p575 = scmp.lt.s32.totalorder %s574, 15
        %s576 = scalar_select %p575, %s574, 15
        %s577 = smul.addr %s576, 2
        %s578 = smul.addr %s577, 4
        %s579 = scalar_lea.vmem %s4, %s578
      $region48: #{transformer_block_forward.6} parent=43 // pred_fallthru
        _
    $region44: #{transformer_block_forward.6} parent=5 // pred_fallthru
      _
  $region6: #{transformer_block_forward.6} parent=0 // loop_footer
    %s14 = sadd.s32 1, %s10
  $region7: #{transformer_block_forward.6} parent=0 // loop_footer_branch
    %9 = sbr.rel target = $region3
  $region8: #{transformer_block_forward.6} parent=0 // loop_exit
    _

// kernel: transformer_block_forward.5
$region0: #{transformer_block_forward.5}
  #allocation0 [shape = 'u32[]', space=smem, size = 0x4, offset = 0x4, fixed_abs, tag = 'smem constant byte address 0x4 - core index']
  #allocation1 [shape = 'u32[144,128]{1,0:T(1,128)}', space=vmem, size = 0x12000, scoped, tag = 'internal scratch']
  #allocation2 [shape = 'f32[96,192]{1,0:T(8,128)}', space=vmem, size = 0x18000, scoped, tag = 'scratch operand']
  #allocation3 [shape = 'f32[1,1]{1,0:T(1,128)S(1)}', space=vmem, size = 0x200, scoped, tag = 'scoped memory for transformer_block_forward.5']
  %s0 = inlined_call_operand.vmem [shape: bf16[2,64,192], index: 0, kind: input, shape index: {}]
  %s1 = inlined_call_operand.vmem [shape: f32[9,192], index: 1, kind: input, shape index: {}]
  %s2 = inlined_call_operand.vmem [shape: f32[1,64,64], index: 2, kind: input, shape index: {}]
  %s3 = inlined_call_operand.<no memory space> [shape: f32[1,1], index: 3, kind: input, shape index: {}]
  %s4 = inlined_call_operand.vmem [shape: bf16[64,64], index: 4, kind: input, shape index: {}]
  %s5 = inlined_call_operand.vmem [shape: f32[2,64,64], index: 5, kind: input, shape index: {}]
  %s6 = inlined_call_operand.vmem [shape: f32[2,64,64], index: 6, kind: output, shape index: {}]
  %s7 = sld [smem:[#allocation0]]
  $region57: #{transformer_block_forward.5} parent=0
    _
  %s9 = ssub.s32 1, %s7
  %s10 = scalar_select 0, %s9, %s7
  %v11 = vstv %s3
  %12 = vst [vmem:[#allocation3] sm:$0x1] %v11
  loop: start=0, step=1, limit=4
  $region2: #{transformer_block_forward.5} parent=0 // loop_pre_header
    _
  $region3: #{transformer_block_forward.5} parent=0 // loop_header
    %s14 = sphi 0, %s18
    %p15 = scmp.ge.s32.totalorder %s14, 4
    %s24 = sphi 0, %s26
    %s27 = sphi 0, %s24
    %s28 = sphi 0, %s27
    %s44 = sphi 0, %s28
    %s48 = sphi 0, %s48
    %s50 = sphi 0, %s48
    %s51 = sphi 0, %s50
    %s65 = sphi 0, %s51
    %s69 = sphi 0, %s69
    %s71 = sphi 0, %s69
    %s72 = sphi 0, %s71
    %s86 = sphi 0, %s72
    %s90 = sphi 0, %s90
    %s92 = sphi 0, %s90
    %s93 = sphi 0, %s92
    %s107 = sphi 0, %s93
    %s111 = sphi 0, %s111
    %s113 = sphi 0, %s111
    %s114 = sphi 0, %s113
    %s128 = sphi 0, %s114
    %s134 = sphi 0, %s136
    %s137 = sphi 0, %s134
    %s138 = sphi 0, %s137
    %s154 = sphi 0, %s138
    %s160 = sphi 0, %s162
    %s163 = sphi 0, %s160
    %s164 = sphi 0, %s163
    %s180 = sphi 0, %s164
  $region4: #{transformer_block_forward.5} parent=0 // loop_header_branch
    %17 = sbr.rel (%p15) target = $region8
  $region5: #{transformer_block_forward.5} parent=0 // loop_body
    %s19 = ssub.s32 %s14, 1
    %s20 = ssub.s32 %s14, 2
    %s21 = sadd.s32 %s14, 1
    %s22 = ssub.s32 %s14, %s21
    %p23 = scmp.eq.s32.totalorder %s22, 0
    %s25 = sadd.s32 %s24, 1
    %s26 = scalar_select %p23, %s24, %s25
    %p29 = pneg %p23
    %p30 = scmp.eq.s32.totalorder %s14, 1
    %p31 = por %p29, %p30
    %p32 = scmp.ne.s32.totalorder %s24, %s27
    %p33 = scmp.eq.s32.totalorder %s14, 0
    %p34 = por %p32, %p33
    %p35 = scmp.ne.s32.totalorder %s24, %s27
    %p36 = scmp.eq.s32.totalorder %s19, 1
    %p37 = por %p35, %p36
    %p38 = scmp.ne.s32.totalorder %s27, %s28
    %p39 = scmp.eq.s32.totalorder %s19, 0
    %p40 = por %p38, %p39
    %p41 = scmp.ne.s32.totalorder %s27, %s28
    %p42 = scmp.eq.s32.totalorder %s20, 1
    %p43 = por %p41, %p42
    %p45 = scmp.ne.s32.totalorder %s28, %s44
    %p46 = scmp.eq.s32.totalorder %s20, 0
    %p47 = por %p45, %p46
    %s49 = sadd.s32 %s48, 1
    %p52 = scmp.eq.s32.totalorder %s14, 1
    %p53 = scmp.ne.s32.totalorder %s48, %s50
    %p54 = scmp.eq.s32.totalorder %s14, 0
    %p55 = por %p53, %p54
    %p56 = scmp.ne.s32.totalorder %s48, %s50
    %p57 = scmp.eq.s32.totalorder %s19, 1
    %p58 = por %p56, %p57
    %p59 = scmp.ne.s32.totalorder %s50, %s51
    %p60 = scmp.eq.s32.totalorder %s19, 0
    %p61 = por %p59, %p60
    %p62 = scmp.ne.s32.totalorder %s50, %s51
    %p63 = scmp.eq.s32.totalorder %s20, 1
    %p64 = por %p62, %p63
    %p66 = scmp.ne.s32.totalorder %s51, %s65
    %p67 = scmp.eq.s32.totalorder %s20, 0
    %p68 = por %p66, %p67
    %s70 = sadd.s32 %s69, 1
    %p73 = scmp.eq.s32.totalorder %s14, 1
    %p74 = scmp.ne.s32.totalorder %s69, %s71
    %p75 = scmp.eq.s32.totalorder %s14, 0
    %p76 = por %p74, %p75
    %p77 = scmp.ne.s32.totalorder %s69, %s71
    %p78 = scmp.eq.s32.totalorder %s19, 1
    %p79 = por %p77, %p78
    %p80 = scmp.ne.s32.totalorder %s71, %s72
    %p81 = scmp.eq.s32.totalorder %s19, 0
    %p82 = por %p80, %p81
    %p83 = scmp.ne.s32.totalorder %s71, %s72
    %p84 = scmp.eq.s32.totalorder %s20, 1
    %p85 = por %p83, %p84
    %p87 = scmp.ne.s32.totalorder %s72, %s86
    %p88 = scmp.eq.s32.totalorder %s20, 0
    %p89 = por %p87, %p88
    %s91 = sadd.s32 %s90, 1
    %p94 = scmp.eq.s32.totalorder %s14, 1
    %p95 = scmp.ne.s32.totalorder %s90, %s92
    %p96 = scmp.eq.s32.totalorder %s14, 0
    %p97 = por %p95, %p96
    %p98 = scmp.ne.s32.totalorder %s90, %s92
    %p99 = scmp.eq.s32.totalorder %s19, 1
    %p100 = por %p98, %p99
    %p101 = scmp.ne.s32.totalorder %s92, %s93
    %p102 = scmp.eq.s32.totalorder %s19, 0
    %p103 = por %p101, %p102
    %p104 = scmp.ne.s32.totalorder %s92, %s93
    %p105 = scmp.eq.s32.totalorder %s20, 1
    %p106 = por %p104, %p105
    %p108 = scmp.ne.s32.totalorder %s93, %s107
    %p109 = scmp.eq.s32.totalorder %s20, 0
    %p110 = por %p108, %p109
    %s112 = sadd.s32 %s111, 1
    %p115 = scmp.eq.s32.totalorder %s14, 1
    %p116 = scmp.ne.s32.totalorder %s111, %s113
    %p117 = scmp.eq.s32.totalorder %s14, 0
    %p118 = por %p116, %p117
    %p119 = scmp.ne.s32.totalorder %s111, %s113
    %p120 = scmp.eq.s32.totalorder %s19, 1
    %p121 = por %p119, %p120
    %p122 = scmp.ne.s32.totalorder %s113, %s114
    %p123 = scmp.eq.s32.totalorder %s19, 0
    %p124 = por %p122, %p123
    %p125 = scmp.ne.s32.totalorder %s113, %s114
    %p126 = scmp.eq.s32.totalorder %s20, 1
    %p127 = por %p125, %p126
    %p129 = scmp.ne.s32.totalorder %s114, %s128
    %p130 = scmp.eq.s32.totalorder %s20, 0
    %p131 = por %p129, %p130
    %s132 = ssub.s32 %s14, %s21
    %p133 = scmp.eq.s32.totalorder %s132, 0
    %s135 = sadd.s32 %s134, 1
    %s136 = scalar_select %p133, %s134, %s135
    %p139 = pneg %p133
    %p140 = scmp.eq.s32.totalorder %s14, 1
    %p141 = por %p139, %p140
    %p142 = scmp.ne.s32.totalorder %s134, %s137
    %p143 = scmp.eq.s32.totalorder %s14, 0
    %p144 = por %p142, %p143
    %p145 = scmp.ne.s32.totalorder %s134, %s137
    %p146 = scmp.eq.s32.totalorder %s19, 1
    %p147 = por %p145, %p146
    %p148 = scmp.ne.s32.totalorder %s137, %s138
    %p149 = scmp.eq.s32.totalorder %s19, 0
    %p150 = por %p148, %p149
    %p151 = scmp.ne.s32.totalorder %s137, %s138
    %p152 = scmp.eq.s32.totalorder %s20, 1
    %p153 = por %p151, %p152
    %p155 = scmp.ne.s32.totalorder %s138, %s154
    %p156 = scmp.eq.s32.totalorder %s20, 0
    %p157 = por %p155, %p156
    %s158 = ssub.s32 %s14, %s21
    %p159 = scmp.eq.s32.totalorder %s158, 0
    %s161 = sadd.s32 %s160, 1
    %s162 = scalar_select %p159, %s160, %s161
    %p165 = pneg %p159
    %p166 = scmp.eq.s32.totalorder %s14, 1
    %p167 = por %p165, %p166
    %p168 = scmp.ne.s32.totalorder %s160, %s163
    %p169 = scmp.eq.s32.totalorder %s14, 0
    %p170 = por %p168, %p169
    %p171 = scmp.ne.s32.totalorder %s160, %s163
    %p172 = scmp.eq.s32.totalorder %s19, 1
    %p173 = por %p171, %p172
    %p174 = scmp.ne.s32.totalorder %s163, %s164
    %p175 = scmp.eq.s32.totalorder %s19, 0
    %p176 = por %p174, %p175
    %p177 = scmp.ne.s32.totalorder %s163, %s164
    %p178 = scmp.eq.s32.totalorder %s20, 1
    %p179 = por %p177, %p178
    %p181 = scmp.ne.s32.totalorder %s164, %s180
    %p182 = scmp.eq.s32.totalorder %s20, 0
    %p183 = por %p181, %p182
    %p184 = scmp.le.s32.totalorder 1, %s14
    %p185 = scmp.lt.s32.totalorder %s14, 3
    %p186 = pnand %p184, %p185
    %p187 = pneg %p186
    // Predicated region
    $region9: #{transformer_block_forward.5} parent=5 // pred_check
      _
    $region10: #{transformer_block_forward.5} parent=5 // pred_check_branch
      %189 = sbr.rel (%p186) target = $region12
    $region11: #{transformer_block_forward.5} parent=5 // pred_region
      %s190 = ssub.s32 %s14, 1
      // Predicated region
      $region13: #{transformer_block_forward.5} parent=11 // pred_check
        %p191 = pneg %p61
      $region14: #{transformer_block_forward.5} parent=11 // pred_check_branch
        %193 = sbr.rel (%p191) target = $region16
      $region15: #{transformer_block_forward.5} parent=11 // pred_region
        _
      $region16: #{transformer_block_forward.5} parent=11 // pred_fallthru
        _
      // Predicated region
      $region17: #{transformer_block_forward.5} parent=11 // pred_check
        %p194 = pneg %p82
      $region18: #{transformer_block_forward.5} parent=11 // pred_check_branch
        %196 = sbr.rel (%p194) target = $region20
      $region19: #{transformer_block_forward.5} parent=11 // pred_region
        _
      $region20: #{transformer_block_forward.5} parent=11 // pred_fallthru
        _
      // Predicated region
      $region21: #{transformer_block_forward.5} parent=11 // pred_check
        %p197 = pneg %p103
      $region22: #{transformer_block_forward.5} parent=11 // pred_check_branch
        %199 = sbr.rel (%p197) target = $region24
      $region23: #{transformer_block_forward.5} parent=11 // pred_region
        _
      $region24: #{transformer_block_forward.5} parent=11 // pred_fallthru
        _
      // Predicated region
      $region25: #{transformer_block_forward.5} parent=11 // pred_check
        %p200 = pneg %p124
      $region26: #{transformer_block_forward.5} parent=11 // pred_check_branch
        %202 = sbr.rel (%p200) target = $region28
      $region27: #{transformer_block_forward.5} parent=11 // pred_region
        _
      $region28: #{transformer_block_forward.5} parent=11 // pred_fallthru
        _
    $region12: #{transformer_block_forward.5} parent=5 // pred_fallthru
      _
    %p203 = scmp.lt.s32.totalorder %s14, 2
    // Predicated region
    $region29: #{transformer_block_forward.5} parent=5 // pred_check
      %p204 = pneg %p203
    $region30: #{transformer_block_forward.5} parent=5 // pred_check_branch
      %206 = sbr.rel (%p204) target = $region32
    $region31: #{transformer_block_forward.5} parent=5 // pred_region
      // Predicated region
      $region33: #{transformer_block_forward.5} parent=31 // pred_check
        %p207 = pneg %p34
      $region34: #{transformer_block_forward.5} parent=31 // pred_check_branch
        %209 = sbr.rel (%p207) target = $region36
      $region35: #{transformer_block_forward.5} parent=31 // pred_region
        %p210 = scmp.lt.s32.totalorder %s14, 1
        %s211 = scalar_select %p210, %s14, 1
        %s212 = smul.addr %s211, 16
        %s213 = smul.addr %s212, 4
        %s214 = scalar_lea.vmem %s0, %s213
      $region36: #{transformer_block_forward.5} parent=31 // pred_fallthru
        _
      // Predicated region
      $region37: #{transformer_block_forward.5} parent=31 // pred_check
        %p215 = pneg %p144
      $region38: #{transformer_block_forward.5} parent=31 // pred_check_branch
        %217 = sbr.rel (%p215) target = $region40
      $region39: #{transformer_block_forward.5} parent=31 // pred_region
        %p218 = scmp.lt.s32.totalorder %s14, 1
        %s219 = scalar_select %p218, %s14, 1
        %s220 = smul.addr %s219, 8
        %s221 = smul.addr %s220, 8
        %s222 = scalar_lea.vmem %s5, %s221
      $region40: #{transformer_block_forward.5} parent=31 // pred_fallthru
        _
    $region32: #{transformer_block_forward.5} parent=5 // pred_fallthru
      _
    %p223 = scmp.le.s32.totalorder 1, %s14
    %p224 = scmp.lt.s32.totalorder %s14, 3
    %p225 = pnand %p223, %p224
    %p226 = pneg %p225
    // Predicated region
    $region41: #{transformer_block_forward.5} parent=5 // pred_check
      _
    $region42: #{transformer_block_forward.5} parent=5 // pred_check_branch
      %228 = sbr.rel (%p225) target = $region44
    $region43: #{transformer_block_forward.5} parent=5 // pred_region
      %s229 = ssub.s32 %s14, 1
      %p230 = scmp.lt.s32.totalorder %s19, 1
      %s231 = scalar_select %p230, %s19, 1
      %s232 = smul.addr %s231, 16
      %s233 = smul.addr %s232, 4
      %s234 = scalar_lea.vmem %s0, %s233
      %p235 = pneg %p40
      %p236 = pneg %p37
      %p237 = pneg %p61
      %p238 = pneg %p58
      %p239 = pneg %p82
      %p240 = pneg %p79
      %p241 = pneg %p103
      %p242 = pneg %p100
      %p243 = pneg %p124
      %p244 = pneg %p121
      %p245 = scmp.lt.s32.totalorder %s19, 1
      %s246 = scalar_select %p245, %s19, 1
      %s247 = smul.addr %s246, 8
      %s248 = smul.addr %s247, 8
      %s249 = scalar_lea.vmem %s5, %s248
      %p250 = pneg %p150
      %p251 = pneg %p147
      %p252 = pneg %p176
      %p253 = pneg %p173
      %p254 = scmp.lt.s32.totalorder %s19, 1
      %s255 = scalar_select %p254, %s19, 1
      %s256 = smul.addr %s255, 8
      %s257 = smul.addr %s256, 8
      %s258 = scalar_lea.vmem %s6, %s257
      %p259 = scmp.lt.s32.totalorder %s19, 1
      %s260 = scalar_select %p259, %s19, 1
      %s261 = smul.addr %s260, 16
      %s262 = smul.addr %s261, 4
      %s263 = scalar_lea.vmem %s0, %s262
      %p264 = scmp.lt.s32.totalorder %s19, 1
      %s265 = scalar_select %p264, %s19, 1
      %s266 = smul.addr %s265, 8
      %s267 = smul.addr %s266, 8
      %s268 = scalar_lea.vmem %s5, %s267
      %p269 = scmp.lt.s32.totalorder %s19, 1
      %s270 = scalar_select %p269, %s19, 1
      %s271 = smul.addr %s270, 8
      %s272 = smul.addr %s271, 8
      %s273 = scalar_lea.vmem %s6, %s272
      %v275 = vld [vmem:[%s263] sm:$0xff]
      %v276 = vld [vmem:[%s263 + $0x8] sm:$0xff]
      %v277 = vld [vmem:[%s263 + $0x10] sm:$0xff]
      %v278 = vld [vmem:[%s263 + $0x18] sm:$0xff]
      %v279 = vld [vmem:[%s263 + $0x20] sm:$0xff]
      %v280 = vld [vmem:[%s263 + $0x28] sm:$0xff]
      %v281 = vld [vmem:[%s263 + $0x30] sm:$0xff]
      %v282 = vld [vmem:[%s263 + $0x38] sm:$0xff]
      %v283 = vunpack.c.l.bf16 %v275
      %v284 = vunpack.c.h.bf16 %v275
      %v285 = vunpack.c.l.bf16 %v276
      %v286 = vunpack.c.h.bf16 %v276
      %v287 = vunpack.c.l.bf16 %v277
      %v288 = vunpack.c.h.bf16 %v277
      %v289 = vunpack.c.l.bf16 %v278
      %v290 = vunpack.c.h.bf16 %v278
      %v291 = vunpack.c.l.bf16 %v279
      %v292 = vunpack.c.h.bf16 %v279
      %v293 = vunpack.c.l.bf16 %v280
      %v294 = vunpack.c.h.bf16 %v280
      %v295 = vunpack.c.l.bf16 %v281
      %v296 = vunpack.c.h.bf16 %v281
      %v297 = vunpack.c.l.bf16 %v282
      %v298 = vunpack.c.h.bf16 %v282
      %299 = vst [vmem:[#allocation2] sm:$0xff] 0.0
      %vm300 = vcmask 523264
      %301 = vst.msk [vmem:[#allocation2 + $0x8] sm:$0xff] %vm300, 0.0
      %302 = vst [vmem:[#allocation2 + $0x10] sm:$0xff] 0.0
      %303 = vst.msk [vmem:[#allocation2 + $0x18] sm:$0xff] %vm300, 0.0
      %304 = vst [vmem:[#allocation2 + $0x20] sm:$0xff] 0.0
      %305 = vst.msk [vmem:[#allocation2 + $0x28] sm:$0xff] %vm300, 0.0
      %306 = vst [vmem:[#allocation2 + $0x30] sm:$0xff] 0.0
      %307 = vst.msk [vmem:[#allocation2 + $0x38] sm:$0xff] %vm300, 0.0
      %308 = vst [vmem:[#allocation2 + $0x40] sm:$0xff] 0.0
      %309 = vst.msk [vmem:[#allocation2 + $0x48] sm:$0xff] %vm300, 0.0
      %310 = vst [vmem:[#allocation2 + $0x50] sm:$0xff] 0.0
      %311 = vst.msk [vmem:[#allocation2 + $0x58] sm:$0xff] %vm300, 0.0
      %312 = vst [vmem:[#allocation2 + $0x60] sm:$0xff] 0.0
      %313 = vst.msk [vmem:[#allocation2 + $0x68] sm:$0xff] %vm300, 0.0
      %314 = vst [vmem:[#allocation2 + $0x70] sm:$0xff] 0.0
      %315 = vst.msk [vmem:[#allocation2 + $0x78] sm:$0xff] %vm300, 0.0
      %316 = vst [vmem:[#allocation2 + $0x80] sm:$0xff] 0.0
      %317 = vst.msk [vmem:[#allocation2 + $0x88] sm:$0xff] %vm300, 0.0
      %318 = vst [vmem:[#allocation2 + $0x90] sm:$0xff] 0.0
      %319 = vst.msk [vmem:[#allocation2 + $0x98] sm:$0xff] %vm300, 0.0
      %320 = vst [vmem:[#allocation2 + $0xa0] sm:$0xff] 0.0
      %321 = vst.msk [vmem:[#allocation2 + $0xa8] sm:$0xff] %vm300, 0.0
      %322 = vst [vmem:[#allocation2 + $0xb0] sm:$0xff] 0.0
      %323 = vst.msk [vmem:[#allocation2 + $0xb8] sm:$0xff] %vm300, 0.0
      %324 = vst [vmem:[#allocation2 + $0x20] sm:$0xff] %v283
      %325 = vst.msk [vmem:[#allocation2 + $0x28] sm:$0xff] %vm300, %v284
      %326 = vst [vmem:[#allocation2 + $0x30] sm:$0xff] %v285
      %327 = vst.msk [vmem:[#allocation2 + $0x38] sm:$0xff] %vm300, %v286
      %328 = vst [vmem:[#allocation2 + $0x40] sm:$0xff] %v287
      %329 = vst.msk [vmem:[#allocation2 + $0x48] sm:$0xff] %vm300, %v288
      %330 = vst [vmem:[#allocation2 + $0x50] sm:$0xff] %v289
      %331 = vst.msk [vmem:[#allocation2 + $0x58] sm:$0xff] %vm300, %v290
      %332 = vst [vmem:[#allocation2 + $0x60] sm:$0xff] %v291
      %333 = vst.msk [vmem:[#allocation2 + $0x68] sm:$0xff] %vm300, %v292
      %334 = vst [vmem:[#allocation2 + $0x70] sm:$0xff] %v293
      %335 = vst.msk [vmem:[#allocation2 + $0x78] sm:$0xff] %vm300, %v294
      %336 = vst [vmem:[#allocation2 + $0x80] sm:$0xff] %v295
      %337 = vst.msk [vmem:[#allocation2 + $0x88] sm:$0xff] %vm300, %v296
      %338 = vst [vmem:[#allocation2 + $0x90] sm:$0xff] %v297
      %339 = vst.msk [vmem:[#allocation2 + $0x98] sm:$0xff] %vm300, %v298
      %v340 = vlaneseq
      %v341 = vshrl.u32 %v340, 7
      %v342 = vadd.s32 %v341, 8
      %v343 = vadd.s32 %v341, 16
      %v344 = vadd.s32 %v341, 24
      %v345 = vadd.s32 %v341, 32
      %v346 = vadd.s32 %v341, 40
      %v347 = vadd.s32 %v341, 48
      %v348 = vadd.s32 %v341, 56
      %vm349 = vcmp.lt.s32.totalorder %v341, 0
      %v350 = vsub.s32 0, %v341
      %v351 = vsel %vm349, %v350, %v341
      %v352 = vshrl.u32 %v351, 3
      %v353 = vand.u32 %v351, 7
      %v354 = vsub.s32 0, %v353
      %v355 = vsel %vm349, %v354, %v353
      %vm356 = vcmp.lt.s32.totalorder %v342, 0
      %v357 = vsub.s32 0, %v342
      %v358 = vsel %vm356, %v357, %v342
      %v359 = vshrl.u32 %v358, 3
      %v360 = vand.u32 %v358, 7
      %v361 = vsub.s32 0, %v360
      %v362 = vsel %vm356, %v361, %v360
      %vm363 = vcmp.lt.s32.totalorder %v343, 0
      %v364 = vsub.s32 0, %v343
      %v365 = vsel %vm363, %v364, %v343
      %v366 = vshrl.u32 %v365, 3
      %v367 = vand.u32 %v365, 7
      %v368 = vsub.s32 0, %v367
      %v369 = vsel %vm363, %v368, %v367
      %vm370 = vcmp.lt.s32.totalorder %v344, 0
      %v371 = vsub.s32 0, %v344
      %v372 = vsel %vm370, %v371, %v344
      %v373 = vshrl.u32 %v372, 3
      %v374 = vand.u32 %v372, 7
      %v375 = vsub.s32 0, %v374
      %v376 = vsel %vm370, %v375, %v374
      %vm377 = vcmp.lt.s32.totalorder %v345, 0
      %v378 = vsub.s32 0, %v345
      %v379 = vsel %vm377, %v378, %v345
      %v380 = vshrl.u32 %v379, 3
      %v381 = vand.u32 %v379, 7
      %v382 = vsub.s32 0, %v381
      %v383 = vsel %vm377, %v382, %v381
      %vm384 = vcmp.lt.s32.totalorder %v346, 0
      %v385 = vsub.s32 0, %v346
      %v386 = vsel %vm384, %v385, %v346
      %v387 = vshrl.u32 %v386, 3
      %v388 = vand.u32 %v386, 7
      %v389 = vsub.s32 0, %v388
      %v390 = vsel %vm384, %v389, %v388
      %vm391 = vcmp.lt.s32.totalorder %v347, 0
      %v392 = vsub.s32 0, %v347
      %v393 = vsel %vm391, %v392, %v347
      %v394 = vshrl.u32 %v393, 3
      %v395 = vand.u32 %v393, 7
      %v396 = vsub.s32 0, %v395
      %v397 = vsel %vm391, %v396, %v395
      %vm398 = vcmp.lt.s32.totalorder %v348, 0
      %v399 = vsub.s32 0, %v348
      %v400 = vsel %vm398, %v399, %v348
      %v401 = vshrl.u32 %v400, 3
      %v402 = vand.u32 %v400, 7
      %v403 = vsub.s32 0, %v402
      %v404 = vsel %vm398, %v403, %v402
      %vm405 = vcmp.ne.s32.totalorder %v355, 0
      %vm406 = vcmp.ne.s32.totalorder %v362, 0
      %vm407 = vcmp.ne.s32.totalorder %v369, 0
      %vm408 = vcmp.ne.s32.totalorder %v376, 0
      %vm409 = vcmp.ne.s32.totalorder %v383, 0
      %vm410 = vcmp.ne.s32.totalorder %v390, 0
      %vm411 = vcmp.ne.s32.totalorder %v397, 0
      %vm412 = vcmp.ne.s32.totalorder %v404, 0
      %vm413 = vcmp.lt.s32.totalorder %v355, 0
      %vm414 = vcmp.lt.s32.totalorder %v362, 0
      %vm415 = vcmp.lt.s32.totalorder %v369, 0
      %vm416 = vcmp.lt.s32.totalorder %v376, 0
      %vm417 = vcmp.lt.s32.totalorder %v383, 0
      %vm418 = vcmp.lt.s32.totalorder %v390, 0
      %vm419 = vcmp.lt.s32.totalorder %v397, 0
      %vm420 = vcmp.lt.s32.totalorder %v404, 0
      %vm421 = vmand %vm413, %vm405
      %vm422 = vmand %vm414, %vm406
      %vm423 = vmand %vm415, %vm407
      %vm424 = vmand %vm416, %vm408
      %vm425 = vmand %vm417, %vm409
      %vm426 = vmand %vm418, %vm410
      %vm427 = vmand %vm419, %vm411
      %vm428 = vmand %vm420, %vm412
      %v429 = vadd.s32 %v355, 8
      %v430 = vadd.s32 %v362, 8
      %v431 = vadd.s32 %v369, 8
      %v432 = vadd.s32 %v376, 8
      %v433 = vadd.s32 %v383, 8
      %v434 = vadd.s32 %v390, 8
      %v435 = vadd.s32 %v397, 8
      %v436 = vadd.s32 %v404, 8
      %v437 = vsel %vm421, %v429, %v355
      %v438 = vsel %vm422, %v430, %v362
      %v439 = vsel %vm423, %v431, %v369
      %v440 = vsel %vm424, %v432, %v376
      %v441 = vsel %vm425, %v433, %v383
      %v442 = vsel %vm426, %v434, %v390
      %v443 = vsel %vm427, %v435, %v397
      %v444 = vsel %vm428, %v436, %v404
      %vm445 = vcmp.ge.s32.totalorder %v437, 1
      %vm446 = vcmp.ge.s32.totalorder %v438, 1
      %vm447 = vcmp.ge.s32.totalorder %v439, 1
      %vm448 = vcmp.ge.s32.totalorder %v440, 1
      %vm449 = vcmp.ge.s32.totalorder %v441, 1
      %vm450 = vcmp.ge.s32.totalorder %v442, 1
      %vm451 = vcmp.ge.s32.totalorder %v443, 1
      %vm452 = vcmp.ge.s32.totalorder %v444, 1
      %vm453 = vcmp.le.s32.totalorder %v437, 6
      %vm454 = vcmp.le.s32.totalorder %v438, 6
      %vm455 = vcmp.le.s32.totalorder %v439, 6
      %vm456 = vcmp.le.s32.totalorder %v440, 6
      %vm457 = vcmp.le.s32.totalorder %v441, 6
      %vm458 = vcmp.le.s32.totalorder %v442, 6
      %vm459 = vcmp.le.s32.totalorder %v443, 6
      %vm460 = vcmp.le.s32.totalorder %v444, 6
      %v461 = vld [vmem:[#allocation2] sm:$0x80]
      %v462 = vld [vmem:[#allocation2 + $0x8] sm:$0x80]
      %v463 = vld [vmem:[#allocation2 + $0x10] sm:$0xff]
      %v464 = vld [vmem:[#allocation2 + $0x18] sm:$0xff]
      %v465 = vld [vmem:[#allocation2 + $0x20] sm:$0xff]
      %v466 = vld [vmem:[#allocation2 + $0x28] sm:$0xff]
      %v467 = vld [vmem:[#allocation2 + $0x30] sm:$0xff]
      %v468 = vld [vmem:[#allocation2 + $0x38] sm:$0xff]
      %v469 = vld [vmem:[#allocation2 + $0x40] sm:$0xff]
      %v470 = vld [vmem:[#allocation2 + $0x48] sm:$0xff]
      %v471 = vld [vmem:[#allocation2 + $0x50] sm:$0xff]
      %v472 = vld [vmem:[#allocation2 + $0x58] sm:$0xff]
      %v473 = vld [vmem:[#allocation2 + $0x60] sm:$0xff]
      %v474 = vld [vmem:[#allocation2 + $0x68] sm:$0xff]
      %v475 = vld [vmem:[#allocation2 + $0x70] sm:$0xff]
      %v476 = vld [vmem:[#allocation2 + $0x78] sm:$0xff]
      %v477 = vld [vmem:[#allocation2 + $0x80] sm:$0x7f]
      %v478 = vld [vmem:[#allocation2 + $0x88] sm:$0x7f]
      %v479 = vld [vmem:[%s1] ss:$8 sm:$0x3]
      %v481 = vlaneseq
      %v482 = vshrl.u32 %v481, 7
      %v483 = vsub.s32 0, %v482
      %v484 = vrot.slane %v479, %v483
      %v485 = vlaneseq
      %v486 = vshrl.u32 %v485, 7
      %v487 = vsub.s32 1, %v486
      %v488 = vrot.slane %v479, %v487
      %v491 = vmul.f32 %v461, %v484
      %v492 = vmul.f32 %v462, %v488
      %v493 = vmul.f32 %v463, %v484
      %v494 = vmul.f32 %v464, %v488
      %v495 = vmul.f32 %v465, %v484
      %v496 = vmul.f32 %v466, %v488
      %v497 = vmul.f32 %v467, %v484
      %v498 = vmul.f32 %v468, %v488
      %v499 = vmul.f32 %v469, %v484
      %v500 = vmul.f32 %v470, %v488
      %v501 = vmul.f32 %v471, %v484
      %v502 = vmul.f32 %v472, %v488
      %v503 = vmul.f32 %v473, %v484
      %v504 = vmul.f32 %v474, %v488
      %v505 = vmul.f32 %v475, %v484
      %v506 = vmul.f32 %v476, %v488
      %v507 = vmul.f32 %v477, %v484
      %v508 = vmul.f32 %v478, %v488
      %v509 = vsel %vm445, 1, 0
      %v510 = vsel %vm446, 1, 0
      %v511 = vsel %vm447, 1, 0
      %v512 = vsel %vm448, 1, 0
      %v513 = vsel %vm449, 1, 0
      %v514 = vsel %vm450, 1, 0
      %v515 = vsel %vm451, 1, 0
      %v516 = vsel %vm452, 1, 0
      %vm517 = vcmp.eq.s32.totalorder %v509, 1
      %vm518 = vcmp.eq.s32.totalorder %v510, 1
      %vm519 = vcmp.eq.s32.totalorder %v511, 1
      %vm520 = vcmp.eq.s32.totalorder %v512, 1
      %vm521 = vcmp.eq.s32.totalorder %v513, 1
      %vm522 = vcmp.eq.s32.totalorder %v514, 1
      %vm523 = vcmp.eq.s32.totalorder %v515, 1
      %vm524 = vcmp.eq.s32.totalorder %v516, 1
      %vm543 = vcmask 1040384
      %v544 = vrot.slane %v491, 7
      %v545 = vrot.slane %v493, 7
      %v546 = vsel %vm543, %v544, %v545
      %v547 = vrot.slane %v492, 7
      %v548 = vrot.slane %v494, 7
      %v549 = vsel %vm543, %v547, %v548
      %v550 = vrot.slane %v495, 7
      %v551 = vsel %vm543, %v545, %v550
      %v552 = vrot.slane %v496, 7
      %v553 = vsel %vm543, %v548, %v552
      %v554 = vrot.slane %v497, 7
      %v555 = vsel %vm543, %v550, %v554
      %v556 = vrot.slane %v498, 7
      %v557 = vsel %vm543, %v552, %v556
      %v558 = vrot.slane %v499, 7
      %v559 = vsel %vm543, %v554, %v558
      %v560 = vrot.slane %v500, 7
      %v561 = vsel %vm543, %v556, %v560
      %v562 = vrot.slane %v501, 7
      %v563 = vsel %vm543, %v558, %v562
      %v564 = vrot.slane %v502, 7
      %v565 = vsel %vm543, %v560, %v564
      %v566 = vrot.slane %v503, 7
      %v567 = vsel %vm543, %v562, %v566
      %v568 = vrot.slane %v504, 7
      %v569 = vsel %vm543, %v564, %v568
      %v570 = vrot.slane %v505, 7
      %v571 = vsel %vm543, %v566, %v570
      %v572 = vrot.slane %v506, 7
      %v573 = vsel %vm543, %v568, %v572
      %v574 = vrot.slane %v507, 7
      %v575 = vsel %vm543, %v570, %v574
      %v576 = vrot.slane %v508, 7
      %v577 = vsel %vm543, %v572, %v576
      %v594 = vsel %vm517, %v546, 0.0
      %v595 = vsel %vm517, %v549, 0.0
      %v596 = vsel %vm518, %v551, 0.0
      %v597 = vsel %vm518, %v553, 0.0
      %v598 = vsel %vm519, %v555, 0.0
      %v599 = vsel %vm519, %v557, 0.0
      %v600 = vsel %vm520, %v559, 0.0
      %v601 = vsel %vm520, %v561, 0.0
      %v602 = vsel %vm521, %v563, 0.0
      %v603 = vsel %vm521, %v565, 0.0
      %v604 = vsel %vm522, %v567, 0.0
      %v605 = vsel %vm522, %v569, 0.0
      %v606 = vsel %vm523, %v571, 0.0
      %v607 = vsel %vm523, %v573, 0.0
      %v608 = vsel %vm524, %v575, 0.0
      %v609 = vsel %vm524, %v577, 0.0
      %v610 = vadd.f32 %v594, 0.0
      %v611 = vadd.f32 %v595, 0.0
      %v612 = vadd.f32 %v596, 0.0
      %v613 = vadd.f32 %v597, 0.0
      %v614 = vadd.f32 %v598, 0.0
      %v615 = vadd.f32 %v599, 0.0
      %v616 = vadd.f32 %v600, 0.0
      %v617 = vadd.f32 %v601, 0.0
      %v618 = vadd.f32 %v602, 0.0
      %v619 = vadd.f32 %v603, 0.0
      %v620 = vadd.f32 %v604, 0.0
      %v621 = vadd.f32 %v605, 0.0
      %v622 = vadd.f32 %v606, 0.0
      %v623 = vadd.f32 %v607, 0.0
      %v624 = vadd.f32 %v608, 0.0
      %v625 = vadd.f32 %v609, 0.0
      %v626 = vld [vmem:[#allocation2 + $0x80] sm:$0xff]
      %v627 = vld [vmem:[#allocation2 + $0x88] sm:$0xff]
      %s628 = scalar_lea.vmem %s1, 1
      %v629 = vld [vmem:[%s628] ss:$8 sm:$0x3]
      %v631 = vlaneseq
      %v632 = vshrl.u32 %v631, 7
      %v633 = vsub.s32 0, %v632
      %v634 = vrot.slane %v629, %v633
      %v635 = vlaneseq
      %v636 = vshrl.u32 %v635, 7
      %v637 = vsub.s32 1, %v636
      %v638 = vrot.slane %v629, %v637
      %v641 = vmul.f32 %v463, %v634
      %v642 = vmul.f32 %v464, %v638
      %v643 = vmul.f32 %v465, %v634
      %v644 = vmul.f32 %v466, %v638
      %v645 = vmul.f32 %v467, %v634
      %v646 = vmul.f32 %v468, %v638
      %v647 = vmul.f32 %v469, %v634
      %v648 = vmul.f32 %v470, %v638
      %v649 = vmul.f32 %v471, %v634
      %v650 = vmul.f32 %v472, %v638
      %v651 = vmul.f32 %v473, %v634
      %v652 = vmul.f32 %v474, %v638
      %v653 = vmul.f32 %v475, %v634
      %v654 = vmul.f32 %v476, %v638
      %v655 = vmul.f32 %v626, %v634
      %v656 = vmul.f32 %v627, %v638
      %v657 = vadd.f32 %v610, %v641
      %v658 = vadd.f32 %v611, %v642
      %v659 = vadd.f32 %v612, %v643
      %v660 = vadd.f32 %v613, %v644
      %v661 = vadd.f32 %v614, %v645
      %v662 = vadd.f32 %v615, %v646
      %v663 = vadd.f32 %v616, %v647
      %v664 = vadd.f32 %v617, %v648
      %v665 = vadd.f32 %v618, %v649
      %v666 = vadd.f32 %v619, %v650
      %v667 = vadd.f32 %v620, %v651
      %v668 = vadd.f32 %v621, %v652
      %v669 = vadd.f32 %v622, %v653
      %v670 = vadd.f32 %v623, %v654
      %v671 = vadd.f32 %v624, %v655
      %v672 = vadd.f32 %v625, %v656
      %v673 = vld [vmem:[#allocation2 + $0x10] sm:$0xfe]
      %v674 = vld [vmem:[#allocation2 + $0x18] sm:$0xfe]
      %v675 = vld [vmem:[#allocation2 + $0x90] sm:$0x1]
      %v676 = vld [vmem:[#allocation2 + $0x98] sm:$0x1]
      %s677 = scalar_lea.vmem %s1, 2
      %v678 = vld [vmem:[%s677] ss:$8 sm:$0x3]
      %v680 = vlaneseq
      %v681 = vshrl.u32 %v680, 7
      %v682 = vsub.s32 0, %v681
      %v683 = vrot.slane %v678, %v682
      %v684 = vlaneseq
      %v685 = vshrl.u32 %v684, 7
      %v686 = vsub.s32 1, %v685
      %v687 = vrot.slane %v678, %v686
      %v690 = vmul.f32 %v673, %v683
      %v691 = vmul.f32 %v674, %v687
      %v692 = vmul.f32 %v465, %v683
      %v693 = vmul.f32 %v466, %v687
      %v694 = vmul.f32 %v467, %v683
      %v695 = vmul.f32 %v468, %v687
      %v696 = vmul.f32 %v469, %v683
      %v697 = vmul.f32 %v470, %v687
      %v698 = vmul.f32 %v471, %v683
      %v699 = vmul.f32 %v472, %v687
      %v700 = vmul.f32 %v473, %v683
      %v701 = vmul.f32 %v474, %v687
      %v702 = vmul.f32 %v475, %v683
      %v703 = vmul.f32 %v476, %v687
      %v704 = vmul.f32 %v626, %v683
      %v705 = vmul.f32 %v627, %v687
      %v706 = vmul.f32 %v675, %v683
      %v707 = vmul.f32 %v676, %v687
      %v708 = vsel %vm453, 1, 0
      %v709 = vsel %vm454, 1, 0
      %v710 = vsel %vm455, 1, 0
      %v711 = vsel %vm456, 1, 0
      %v712 = vsel %vm457, 1, 0
      %v713 = vsel %vm458, 1, 0
      %v714 = vsel %vm459, 1, 0
      %v715 = vsel %vm460, 1, 0
      %vm716 = vcmp.eq.s32.totalorder %v708, 1
      %vm717 = vcmp.eq.s32.totalorder %v709, 1
      %vm718 = vcmp.eq.s32.totalorder %v710, 1
      %vm719 = vcmp.eq.s32.totalorder %v711, 1
      %vm720 = vcmp.eq.s32.totalorder %v712, 1
      %vm721 = vcmp.eq.s32.totalorder %v713, 1
      %vm722 = vcmp.eq.s32.totalorder %v714, 1
      %vm723 = vcmp.eq.s32.totalorder %v715, 1
      %vm742 = vcmask 1046528
      %v743 = vrot.slane %v690, 1
      %v744 = vrot.slane %v692, 1
      %v745 = vsel %vm742, %v743, %v744
      %v746 = vrot.slane %v691, 1
      %v747 = vrot.slane %v693, 1
      %v748 = vsel %vm742, %v746, %v747
      %v749 = vrot.slane %v694, 1
      %v750 = vsel %vm742, %v744, %v749
      %v751 = vrot.slane %v695, 1
      %v752 = vsel %vm742, %v747, %v751
      %v753 = vrot.slane %v696, 1
      %v754 = vsel %vm742, %v749, %v753
      %v755 = vrot.slane %v697, 1
      %v756 = vsel %vm742, %v751, %v755
      %v757 = vrot.slane %v698, 1
      %v758 = vsel %vm742, %v753, %v757
      %v759 = vrot.slane %v699, 1
      %v760 = vsel %vm742, %v755, %v759
      %v761 = vrot.slane %v700, 1
      %v762 = vsel %vm742, %v757, %v761
      %v763 = vrot.slane %v701, 1
      %v764 = vsel %vm742, %v759, %v763
      %v765 = vrot.slane %v702, 1
      %v766 = vsel %vm742, %v761, %v765
      %v767 = vrot.slane %v703, 1
      %v768 = vsel %vm742, %v763, %v767
      %v769 = vrot.slane %v704, 1
      %v770 = vsel %vm742, %v765, %v769
      %v771 = vrot.slane %v705, 1
      %v772 = vsel %vm742, %v767, %v771
      %v773 = vrot.slane %v706, 1
      %v774 = vsel %vm742, %v769, %v773
      %v775 = vrot.slane %v707, 1
      %v776 = vsel %vm742, %v771, %v775
      %v793 = vsel %vm716, %v745, 0.0
      %v794 = vsel %vm716, %v748, 0.0
      %v795 = vsel %vm717, %v750, 0.0
      %v796 = vsel %vm717, %v752, 0.0
      %v797 = vsel %vm718, %v754, 0.0
      %v798 = vsel %vm718, %v756, 0.0
      %v799 = vsel %vm719, %v758, 0.0
      %v800 = vsel %vm719, %v760, 0.0
      %v801 = vsel %vm720, %v762, 0.0
      %v802 = vsel %vm720, %v764, 0.0
      %v803 = vsel %vm721, %v766, 0.0
      %v804 = vsel %vm721, %v768, 0.0
      %v805 = vsel %vm722, %v770, 0.0
      %v806 = vsel %vm722, %v772, 0.0
      %v807 = vsel %vm723, %v774, 0.0
      %v808 = vsel %vm723, %v776, 0.0
      %v809 = vadd.f32 %v657, %v793
      %v810 = vadd.f32 %v658, %v794
      %v811 = vadd.f32 %v659, %v795
      %v812 = vadd.f32 %v660, %v796
      %v813 = vadd.f32 %v661, %v797
      %v814 = vadd.f32 %v662, %v798
      %v815 = vadd.f32 %v663, %v799
      %v816 = vadd.f32 %v664, %v800
      %v817 = vadd.f32 %v665, %v801
      %v818 = vadd.f32 %v666, %v802
      %v819 = vadd.f32 %v667, %v803
      %v820 = vadd.f32 %v668, %v804
      %v821 = vadd.f32 %v669, %v805
      %v822 = vadd.f32 %v670, %v806
      %v823 = vadd.f32 %v671, %v807
      %v824 = vadd.f32 %v672, %v808
      %v825 = vld [vmem:[#allocation2 + $0x10] sm:$0x80]
      %v826 = vld [vmem:[#allocation2 + $0x18] sm:$0x80]
      %v827 = vld [vmem:[#allocation2 + $0x90] sm:$0x7f]
      %v828 = vld [vmem:[#allocation2 + $0x98] sm:$0x7f]
      %s829 = scalar_lea.vmem %s1, 3
      %v830 = vld [vmem:[%s829] ss:$8 sm:$0x3]
      %v832 = vlaneseq
      %v833 = vshrl.u32 %v832, 7
      %v834 = vsub.s32 0, %v833
      %v835 = vrot.slane %v830, %v834
      %v836 = vlaneseq
      %v837 = vshrl.u32 %v836, 7
      %v838 = vsub.s32 1, %v837
      %v839 = vrot.slane %v830, %v838
      %v842 = vmul.f32 %v825, %v835
      %v843 = vmul.f32 %v826, %v839
      %v844 = vmul.f32 %v465, %v835
      %v845 = vmul.f32 %v466, %v839
      %v846 = vmul.f32 %v467, %v835
      %v847 = vmul.f32 %v468, %v839
      %v848 = vmul.f32 %v469, %v835
      %v849 = vmul.f32 %v470, %v839
      %v850 = vmul.f32 %v471, %v835
      %v851 = vmul.f32 %v472, %v839
      %v852 = vmul.f32 %v473, %v835
      %v853 = vmul.f32 %v474, %v839
      %v854 = vmul.f32 %v475, %v835
      %v855 = vmul.f32 %v476, %v839
      %v856 = vmul.f32 %v626, %v835
      %v857 = vmul.f32 %v627, %v839
      %v858 = vmul.f32 %v827, %v835
      %v859 = vmul.f32 %v828, %v839
      %v878 = vrot.slane %v842, 7
      %v879 = vrot.slane %v844, 7
      %v880 = vsel %vm543, %v878, %v879
      %v881 = vrot.slane %v843, 7
      %v882 = vrot.slane %v845, 7
      %v883 = vsel %vm543, %v881, %v882
      %v884 = vrot.slane %v846, 7
      %v885 = vsel %vm543, %v879, %v884
      %v886 = vrot.slane %v847, 7
      %v887 = vsel %vm543, %v882, %v886
      %v888 = vrot.slane %v848, 7
      %v889 = vsel %vm543, %v884, %v888
      %v890 = vrot.slane %v849, 7
      %v891 = vsel %vm543, %v886, %v890
      %v892 = vrot.slane %v850, 7
      %v893 = vsel %vm543, %v888, %v892
      %v894 = vrot.slane %v851, 7
      %v895 = vsel %vm543, %v890, %v894
      %v896 = vrot.slane %v852, 7
      %v897 = vsel %vm543, %v892, %v896
      %v898 = vrot.slane %v853, 7
      %v899 = vsel %vm543, %v894, %v898
      %v900 = vrot.slane %v854, 7
      %v901 = vsel %vm543, %v896, %v900
      %v902 = vrot.slane %v855, 7
      %v903 = vsel %vm543, %v898, %v902
      %v904 = vrot.slane %v856, 7
      %v905 = vsel %vm543, %v900, %v904
      %v906 = vrot.slane %v857, 7
      %v907 = vsel %vm543, %v902, %v906
      %v908 = vrot.slane %v858, 7
      %v909 = vsel %vm543, %v904, %v908
      %v910 = vrot.slane %v859, 7
      %v911 = vsel %vm543, %v906, %v910
      %v928 = vsel %vm517, %v880, 0.0
      %v929 = vsel %vm517, %v883, 0.0
      %v930 = vsel %vm518, %v885, 0.0
      %v931 = vsel %vm518, %v887, 0.0
      %v932 = vsel %vm519, %v889, 0.0
      %v933 = vsel %vm519, %v891, 0.0
      %v934 = vsel %vm520, %v893, 0.0
      %v935 = vsel %vm520, %v895, 0.0
      %v936 = vsel %vm521, %v897, 0.0
      %v937 = vsel %vm521, %v899, 0.0
      %v938 = vsel %vm522, %v901, 0.0
      %v939 = vsel %vm522, %v903, 0.0
      %v940 = vsel %vm523, %v905, 0.0
      %v941 = vsel %vm523, %v907, 0.0
      %v942 = vsel %vm524, %v909, 0.0
      %v943 = vsel %vm524, %v911, 0.0
      %v944 = vadd.f32 %v809, %v928
      %v945 = vadd.f32 %v810, %v929
      %v946 = vadd.f32 %v811, %v930
      %v947 = vadd.f32 %v812, %v931
      %v948 = vadd.f32 %v813, %v932
      %v949 = vadd.f32 %v814, %v933
      %v950 = vadd.f32 %v815, %v934
      %v951 = vadd.f32 %v816, %v935
      %v952 = vadd.f32 %v817, %v936
      %v953 = vadd.f32 %v818, %v937
      %v954 = vadd.f32 %v819, %v938
      %v955 = vadd.f32 %v820, %v939
      %v956 = vadd.f32 %v821, %v940
      %v957 = vadd.f32 %v822, %v941
      %v958 = vadd.f32 %v823, %v942
      %v959 = vadd.f32 %v824, %v943
      %v960 = vld [vmem:[#allocation2 + $0x90] sm:$0xff]
      %v961 = vld [vmem:[#allocation2 + $0x98] sm:$0xff]
      %s962 = scalar_lea.vmem %s1, 4
      %v963 = vld [vmem:[%s962] ss:$8 sm:$0x3]
      %v965 = vlaneseq
      %v966 = vshrl.u32 %v965, 7
      %v967 = vsub.s32 0, %v966
      %v968 = vrot.slane %v963, %v967
      %v969 = vlaneseq
      %v970 = vshrl.u32 %v969, 7
      %v971 = vsub.s32 1, %v970
      %v972 = vrot.slane %v963, %v971
      %v975 = vmul.f32 %v465, %v968
      %v976 = vmul.f32 %v466, %v972
      %v977 = vmul.f32 %v467, %v968
      %v978 = vmul.f32 %v468, %v972
      %v979 = vmul.f32 %v469, %v968
      %v980 = vmul.f32 %v470, %v972
      %v981 = vmul.f32 %v471, %v968
      %v982 = vmul.f32 %v472, %v972
      %v983 = vmul.f32 %v473, %v968
      %v984 = vmul.f32 %v474, %v972
      %v985 = vmul.f32 %v475, %v968
      %v986 = vmul.f32 %v476, %v972
      %v987 = vmul.f32 %v626, %v968
      %v988 = vmul.f32 %v627, %v972
      %v989 = vmul.f32 %v960, %v968
      %v990 = vmul.f32 %v961, %v972
      %v991 = vadd.f32 %v944, %v975
      %v992 = vadd.f32 %v945, %v976
      %v993 = vadd.f32 %v946, %v977
      %v994 = vadd.f32 %v947, %v978
      %v995 = vadd.f32 %v948, %v979
      %v996 = vadd.f32 %v949, %v980
      %v997 = vadd.f32 %v950, %v981
      %v998 = vadd.f32 %v951, %v982
      %v999 = vadd.f32 %v952, %v983
      %v1000 = vadd.f32 %v953, %v984
      %v1001 = vadd.f32 %v954, %v985
      %v1002 = vadd.f32 %v955, %v986
      %v1003 = vadd.f32 %v956, %v987
      %v1004 = vadd.f32 %v957, %v988
      %v1005 = vadd.f32 %v958, %v989
      %v1006 = vadd.f32 %v959, %v990
      %v1007 = vld [vmem:[#allocation2 + $0x20] sm:$0xfe]
      %v1008 = vld [vmem:[#allocation2 + $0x28] sm:$0xfe]
      %v1009 = vld [vmem:[#allocation2 + $0xa0] sm:$0x1]
      %v1010 = vld [vmem:[#allocation2 + $0xa8] sm:$0x1]
      %s1011 = scalar_lea.vmem %s1, 5
      %v1012 = vld [vmem:[%s1011] ss:$8 sm:$0x3]
      %v1014 = vlaneseq
      %v1015 = vshrl.u32 %v1014, 7
      %v1016 = vsub.s32 0, %v1015
      %v1017 = vrot.slane %v1012, %v1016
      %v1018 = vlaneseq
      %v1019 = vshrl.u32 %v1018, 7
      %v1020 = vsub.s32 1, %v1019
      %v1021 = vrot.slane %v1012, %v1020
      %v1024 = vmul.f32 %v1007, %v1017
      %v1025 = vmul.f32 %v1008, %v1021
      %v1026 = vmul.f32 %v467, %v1017
      %v1027 = vmul.f32 %v468, %v1021
      %v1028 = vmul.f32 %v469, %v1017
      %v1029 = vmul.f32 %v470, %v1021
      %v1030 = vmul.f32 %v471, %v1017
      %v1031 = vmul.f32 %v472, %v1021
      %v1032 = vmul.f32 %v473, %v1017
      %v1033 = vmul.f32 %v474, %v1021
      %v1034 = vmul.f32 %v475, %v1017
      %v1035 = vmul.f32 %v476, %v1021
      %v1036 = vmul.f32 %v626, %v1017
      %v1037 = vmul.f32 %v627, %v1021
      %v1038 = vmul.f32 %v960, %v1017
      %v1039 = vmul.f32 %v961, %v1021
      %v1040 = vmul.f32 %v1009, %v1017
      %v1041 = vmul.f32 %v1010, %v1021
      %v1060 = vrot.slane %v1024, 1
      %v1061 = vrot.slane %v1026, 1
      %v1062 = vsel %vm742, %v1060, %v1061
      %v1063 = vrot.slane %v1025, 1
      %v1064 = vrot.slane %v1027, 1
      %v1065 = vsel %vm742, %v1063, %v1064
      %v1066 = vrot.slane %v1028, 1
      %v1067 = vsel %vm742, %v1061, %v1066
      %v1068 = vrot.slane %v1029, 1
      %v1069 = vsel %vm742, %v1064, %v1068
      %v1070 = vrot.slane %v1030, 1
      %v1071 = vsel %vm742, %v1066, %v1070
      %v1072 = vrot.slane %v1031, 1
      %v1073 = vsel %vm742, %v1068, %v1072
      %v1074 = vrot.slane %v1032, 1
      %v1075 = vsel %vm742, %v1070, %v1074
      %v1076 = vrot.slane %v1033, 1
      %v1077 = vsel %vm742, %v1072, %v1076
      %v1078 = vrot.slane %v1034, 1
      %v1079 = vsel %vm742, %v1074, %v1078
      %v1080 = vrot.slane %v1035, 1
      %v1081 = vsel %vm742, %v1076, %v1080
      %v1082 = vrot.slane %v1036, 1
      %v1083 = vsel %vm742, %v1078, %v1082
      %v1084 = vrot.slane %v1037, 1
      %v1085 = vsel %vm742, %v1080, %v1084
      %v1086 = vrot.slane %v1038, 1
      %v1087 = vsel %vm742, %v1082, %v1086
      %v1088 = vrot.slane %v1039, 1
      %v1089 = vsel %vm742, %v1084, %v1088
      %v1090 = vrot.slane %v1040, 1
      %v1091 = vsel %vm742, %v1086, %v1090
      %v1092 = vrot.slane %v1041, 1
      %v1093 = vsel %vm742, %v1088, %v1092
      %v1110 = vsel %vm716, %v1062, 0.0
      %v1111 = vsel %vm716, %v1065, 0.0
      %v1112 = vsel %vm717, %v1067, 0.0
      %v1113 = vsel %vm717, %v1069, 0.0
      %v1114 = vsel %vm718, %v1071, 0.0
      %v1115 = vsel %vm718, %v1073, 0.0
      %v1116 = vsel %vm719, %v1075, 0.0
      %v1117 = vsel %vm719, %v1077, 0.0
      %v1118 = vsel %vm720, %v1079, 0.0
      %v1119 = vsel %vm720, %v1081, 0.0
      %v1120 = vsel %vm721, %v1083, 0.0
      %v1121 = vsel %vm721, %v1085, 0.0
      %v1122 = vsel %vm722, %v1087, 0.0
      %v1123 = vsel %vm722, %v1089, 0.0
      %v1124 = vsel %vm723, %v1091, 0.0
      %v1125 = vsel %vm723, %v1093, 0.0
      %v1126 = vadd.f32 %v991, %v1110
      %v1127 = vadd.f32 %v992, %v1111
      %v1128 = vadd.f32 %v993, %v1112
      %v1129 = vadd.f32 %v994, %v1113
      %v1130 = vadd.f32 %v995, %v1114
      %v1131 = vadd.f32 %v996, %v1115
      %v1132 = vadd.f32 %v997, %v1116
      %v1133 = vadd.f32 %v998, %v1117
      %v1134 = vadd.f32 %v999, %v1118
      %v1135 = vadd.f32 %v1000, %v1119
      %v1136 = vadd.f32 %v1001, %v1120
      %v1137 = vadd.f32 %v1002, %v1121
      %v1138 = vadd.f32 %v1003, %v1122
      %v1139 = vadd.f32 %v1004, %v1123
      %v1140 = vadd.f32 %v1005, %v1124
      %v1141 = vadd.f32 %v1006, %v1125
      %v1142 = vld [vmem:[#allocation2 + $0x20] sm:$0x80]
      %v1143 = vld [vmem:[#allocation2 + $0x28] sm:$0x80]
      %v1144 = vld [vmem:[#allocation2 + $0xa0] sm:$0x7f]
      %v1145 = vld [vmem:[#allocation2 + $0xa8] sm:$0x7f]
      %s1146 = scalar_lea.vmem %s1, 6
      %v1147 = vld [vmem:[%s1146] ss:$8 sm:$0x3]
      %v1149 = vlaneseq
      %v1150 = vshrl.u32 %v1149, 7
      %v1151 = vsub.s32 0, %v1150
      %v1152 = vrot.slane %v1147, %v1151
      %v1153 = vlaneseq
      %v1154 = vshrl.u32 %v1153, 7
      %v1155 = vsub.s32 1, %v1154
      %v1156 = vrot.slane %v1147, %v1155
      %v1159 = vmul.f32 %v1142, %v1152
      %v1160 = vmul.f32 %v1143, %v1156
      %v1161 = vmul.f32 %v467, %v1152
      %v1162 = vmul.f32 %v468, %v1156
      %v1163 = vmul.f32 %v469, %v1152
      %v1164 = vmul.f32 %v470, %v1156
      %v1165 = vmul.f32 %v471, %v1152
      %v1166 = vmul.f32 %v472, %v1156
      %v1167 = vmul.f32 %v473, %v1152
      %v1168 = vmul.f32 %v474, %v1156
      %v1169 = vmul.f32 %v475, %v1152
      %v1170 = vmul.f32 %v476, %v1156
      %v1171 = vmul.f32 %v626, %v1152
      %v1172 = vmul.f32 %v627, %v1156
      %v1173 = vmul.f32 %v960, %v1152
      %v1174 = vmul.f32 %v961, %v1156
      %v1175 = vmul.f32 %v1144, %v1152
      %v1176 = vmul.f32 %v1145, %v1156
      %v1195 = vrot.slane %v1159, 7
      %v1196 = vrot.slane %v1161, 7
      %v1197 = vsel %vm543, %v1195, %v1196
      %v1198 = vrot.slane %v1160, 7
      %v1199 = vrot.slane %v1162, 7
      %v1200 = vsel %vm543, %v1198, %v1199
      %v1201 = vrot.slane %v1163, 7
      %v1202 = vsel %vm543, %v1196, %v1201
      %v1203 = vrot.slane %v1164, 7
      %v1204 = vsel %vm543, %v1199, %v1203
      %v1205 = vrot.slane %v1165, 7
      %v1206 = vsel %vm543, %v1201, %v1205
      %v1207 = vrot.slane %v1166, 7
      %v1208 = vsel %vm543, %v1203, %v1207
      %v1209 = vrot.slane %v1167, 7
      %v1210 = vsel %vm543, %v1205, %v1209
      %v1211 = vrot.slane %v1168, 7
      %v1212 = vsel %vm543, %v1207, %v1211
      %v1213 = vrot.slane %v1169, 7
      %v1214 = vsel %vm543, %v1209, %v1213
      %v1215 = vrot.slane %v1170, 7
      %v1216 = vsel %vm543, %v1211, %v1215
      %v1217 = vrot.slane %v1171, 7
      %v1218 = vsel %vm543, %v1213, %v1217
      %v1219 = vrot.slane %v1172, 7
      %v1220 = vsel %vm543, %v1215, %v1219
      %v1221 = vrot.slane %v1173, 7
      %v1222 = vsel %vm543, %v1217, %v1221
      %v1223 = vrot.slane %v1174, 7
      %v1224 = vsel %vm543, %v1219, %v1223
      %v1225 = vrot.slane %v1175, 7
      %v1226 = vsel %vm543, %v1221, %v1225
      %v1227 = vrot.slane %v1176, 7
      %v1228 = vsel %vm543, %v1223, %v1227
      %v1245 = vsel %vm517, %v1197, 0.0
      %v1246 = vsel %vm517, %v1200, 0.0
      %v1247 = vsel %vm518, %v1202, 0.0
      %v1248 = vsel %vm518, %v1204, 0.0
      %v1249 = vsel %vm519, %v1206, 0.0
      %v1250 = vsel %vm519, %v1208, 0.0
      %v1251 = vsel %vm520, %v1210, 0.0
      %v1252 = vsel %vm520, %v1212, 0.0
      %v1253 = vsel %vm521, %v1214, 0.0
      %v1254 = vsel %vm521, %v1216, 0.0
      %v1255 = vsel %vm522, %v1218, 0.0
      %v1256 = vsel %vm522, %v1220, 0.0
      %v1257 = vsel %vm523, %v1222, 0.0
      %v1258 = vsel %vm523, %v1224, 0.0
      %v1259 = vsel %vm524, %v1226, 0.0
      %v1260 = vsel %vm524, %v1228, 0.0
      %v1261 = vadd.f32 %v1126, %v1245
      %v1262 = vadd.f32 %v1127, %v1246
      %v1263 = vadd.f32 %v1128, %v1247
      %v1264 = vadd.f32 %v1129, %v1248
      %v1265 = vadd.f32 %v1130, %v1249
      %v1266 = vadd.f32 %v1131, %v1250
      %v1267 = vadd.f32 %v1132, %v1251
      %v1268 = vadd.f32 %v1133, %v1252
      %v1269 = vadd.f32 %v1134, %v1253
      %v1270 = vadd.f32 %v1135, %v1254
      %v1271 = vadd.f32 %v1136, %v1255
      %v1272 = vadd.f32 %v1137, %v1256
      %v1273 = vadd.f32 %v1138, %v1257
      %v1274 = vadd.f32 %v1139, %v1258
      %v1275 = vadd.f32 %v1140, %v1259
      %v1276 = vadd.f32 %v1141, %v1260
      %v1277 = vld [vmem:[#allocation2 + $0xa0] sm:$0xff]
      %v1278 = vld [vmem:[#allocation2 + $0xa8] sm:$0xff]
      %s1279 = scalar_lea.vmem %s1, 7
      %v1280 = vld [vmem:[%s1279] ss:$8 sm:$0x3]
      %v1282 = vlaneseq
      %v1283 = vshrl.u32 %v1282, 7
      %v1284 = vsub.s32 0, %v1283
      %v1285 = vrot.slane %v1280, %v1284
      %v1286 = vlaneseq
      %v1287 = vshrl.u32 %v1286, 7
      %v1288 = vsub.s32 1, %v1287
      %v1289 = vrot.slane %v1280, %v1288
      %v1292 = vmul.f32 %v467, %v1285
      %v1293 = vmul.f32 %v468, %v1289
      %v1294 = vmul.f32 %v469, %v1285
      %v1295 = vmul.f32 %v470, %v1289
      %v1296 = vmul.f32 %v471, %v1285
      %v1297 = vmul.f32 %v472, %v1289
      %v1298 = vmul.f32 %v473, %v1285
      %v1299 = vmul.f32 %v474, %v1289
      %v1300 = vmul.f32 %v475, %v1285
      %v1301 = vmul.f32 %v476, %v1289
      %v1302 = vmul.f32 %v626, %v1285
      %v1303 = vmul.f32 %v627, %v1289
      %v1304 = vmul.f32 %v960, %v1285
      %v1305 = vmul.f32 %v961, %v1289
      %v1306 = vmul.f32 %v1277, %v1285
      %v1307 = vmul.f32 %v1278, %v1289
      %v1308 = vadd.f32 %v1261, %v1292
      %v1309 = vadd.f32 %v1262, %v1293
      %v1310 = vadd.f32 %v1263, %v1294
      %v1311 = vadd.f32 %v1264, %v1295
      %v1312 = vadd.f32 %v1265, %v1296
      %v1313 = vadd.f32 %v1266, %v1297
      %v1314 = vadd.f32 %v1267, %v1298
      %v1315 = vadd.f32 %v1268, %v1299
      %v1316 = vadd.f32 %v1269, %v1300
      %v1317 = vadd.f32 %v1270, %v1301
      %v1318 = vadd.f32 %v1271, %v1302
      %v1319 = vadd.f32 %v1272, %v1303
      %v1320 = vadd.f32 %v1273, %v1304
      %v1321 = vadd.f32 %v1274, %v1305
      %v1322 = vadd.f32 %v1275, %v1306
      %v1323 = vadd.f32 %v1276, %v1307
      %v1324 = vld [vmem:[#allocation2 + $0x30] sm:$0xfe]
      %v1325 = vld [vmem:[#allocation2 + $0x38] sm:$0xfe]
      %v1326 = vld [vmem:[#allocation2 + $0xb0] sm:$0x1]
      %v1327 = vld [vmem:[#allocation2 + $0xb8] sm:$0x1]
      %s1328 = scalar_lea.vmem %s1, 16
      %v1329 = vld [vmem:[%s1328] ss:$8 sm:$0x3]
      %v1331 = vlaneseq
      %v1332 = vshrl.u32 %v1331, 7
      %v1333 = vsub.s32 0, %v1332
      %v1334 = vrot.slane %v1329, %v1333
      %v1335 = vlaneseq
      %v1336 = vshrl.u32 %v1335, 7
      %v1337 = vsub.s32 1, %v1336
      %v1338 = vrot.slane %v1329, %v1337
      %v1341 = vmul.f32 %v1324, %v1334
      %v1342 = vmul.f32 %v1325, %v1338
      %v1343 = vmul.f32 %v469, %v1334
      %v1344 = vmul.f32 %v470, %v1338
      %v1345 = vmul.f32 %v471, %v1334
      %v1346 = vmul.f32 %v472, %v1338
      %v1347 = vmul.f32 %v473, %v1334
      %v1348 = vmul.f32 %v474, %v1338
      %v1349 = vmul.f32 %v475, %v1334
      %v1350 = vmul.f32 %v476, %v1338
      %v1351 = vmul.f32 %v626, %v1334
      %v1352 = vmul.f32 %v627, %v1338
      %v1353 = vmul.f32 %v960, %v1334
      %v1354 = vmul.f32 %v961, %v1338
      %v1355 = vmul.f32 %v1277, %v1334
      %v1356 = vmul.f32 %v1278, %v1338
      %v1357 = vmul.f32 %v1326, %v1334
      %v1358 = vmul.f32 %v1327, %v1338
      %v1377 = vrot.slane %v1341, 1
      %v1378 = vrot.slane %v1343, 1
      %v1379 = vsel %vm742, %v1377, %v1378
      %v1380 = vrot.slane %v1342, 1
      %v1381 = vrot.slane %v1344, 1
      %v1382 = vsel %vm742, %v1380, %v1381
      %v1383 = vrot.slane %v1345, 1
      %v1384 = vsel %vm742, %v1378, %v1383
      %v1385 = vrot.slane %v1346, 1
      %v1386 = vsel %vm742, %v1381, %v1385
      %v1387 = vrot.slane %v1347, 1
      %v1388 = vsel %vm742, %v1383, %v1387
      %v1389 = vrot.slane %v1348, 1
      %v1390 = vsel %vm742, %v1385, %v1389
      %v1391 = vrot.slane %v1349, 1
      %v1392 = vsel %vm742, %v1387, %v1391
      %v1393 = vrot.slane %v1350, 1
      %v1394 = vsel %vm742, %v1389, %v1393
      %v1395 = vrot.slane %v1351, 1
      %v1396 = vsel %vm742, %v1391, %v1395
      %v1397 = vrot.slane %v1352, 1
      %v1398 = vsel %vm742, %v1393, %v1397
      %v1399 = vrot.slane %v1353, 1
      %v1400 = vsel %vm742, %v1395, %v1399
      %v1401 = vrot.slane %v1354, 1
      %v1402 = vsel %vm742, %v1397, %v1401
      %v1403 = vrot.slane %v1355, 1
      %v1404 = vsel %vm742, %v1399, %v1403
      %v1405 = vrot.slane %v1356, 1
      %v1406 = vsel %vm742, %v1401, %v1405
      %v1407 = vrot.slane %v1357, 1
      %v1408 = vsel %vm742, %v1403, %v1407
      %v1409 = vrot.slane %v1358, 1
      %v1410 = vsel %vm742, %v1405, %v1409
      %v1427 = vsel %vm716, %v1379, 0.0
      %v1428 = vsel %vm716, %v1382, 0.0
      %v1429 = vsel %vm717, %v1384, 0.0
      %v1430 = vsel %vm717, %v1386, 0.0
      %v1431 = vsel %vm718, %v1388, 0.0
      %v1432 = vsel %vm718, %v1390, 0.0
      %v1433 = vsel %vm719, %v1392, 0.0
      %v1434 = vsel %vm719, %v1394, 0.0
      %v1435 = vsel %vm720, %v1396, 0.0
      %v1436 = vsel %vm720, %v1398, 0.0
      %v1437 = vsel %vm721, %v1400, 0.0
      %v1438 = vsel %vm721, %v1402, 0.0
      %v1439 = vsel %vm722, %v1404, 0.0
      %v1440 = vsel %vm722, %v1406, 0.0
      %v1441 = vsel %vm723, %v1408, 0.0
      %v1442 = vsel %vm723, %v1410, 0.0
      %v1443 = vadd.f32 %v1308, %v1427
      %v1444 = vadd.f32 %v1309, %v1428
      %v1445 = vadd.f32 %v1310, %v1429
      %v1446 = vadd.f32 %v1311, %v1430
      %v1447 = vadd.f32 %v1312, %v1431
      %v1448 = vadd.f32 %v1313, %v1432
      %v1449 = vadd.f32 %v1314, %v1433
      %v1450 = vadd.f32 %v1315, %v1434
      %v1451 = vadd.f32 %v1316, %v1435
      %v1452 = vadd.f32 %v1317, %v1436
      %v1453 = vadd.f32 %v1318, %v1437
      %v1454 = vadd.f32 %v1319, %v1438
      %v1455 = vadd.f32 %v1320, %v1439
      %v1456 = vadd.f32 %v1321, %v1440
      %v1457 = vadd.f32 %v1322, %v1441
      %v1458 = vadd.f32 %v1323, %v1442
      %v1459 = vlaneseq
      %v1460 = vand.u32 %v1459, 127
      %vm1461 = vcmp.lt.s32.totalorder %v1460, 49
      %v1462 = vmul.f32 %v1443, %v1443
      %v1463 = vmul.f32 %v1445, %v1445
      %v1464 = vmul.f32 %v1447, %v1447
      %v1465 = vmul.f32 %v1449, %v1449
      %v1466 = vmul.f32 %v1451, %v1451
      %v1467 = vmul.f32 %v1453, %v1453
      %v1468 = vmul.f32 %v1455, %v1455
      %v1469 = vmul.f32 %v1457, %v1457
      %v1470 = vsel %vm300, %v1462, 0.0
      %v1471 = vsel %vm300, %v1463, 0.0
      %v1472 = vadd.f32 %v1470, %v1471
      %v1473 = vsel %vm300, %v1464, 0.0
      %v1474 = vadd.f32 %v1472, %v1473
      %v1475 = vsel %vm300, %v1465, 0.0
      %v1476 = vadd.f32 %v1474, %v1475
      %v1477 = vsel %vm300, %v1466, 0.0
      %v1478 = vadd.f32 %v1476, %v1477
      %v1479 = vsel %vm300, %v1467, 0.0
      %v1480 = vadd.f32 %v1478, %v1479
      %v1481 = vsel %vm300, %v1468, 0.0
      %v1482 = vadd.f32 %v1480, %v1481
      %v1483 = vsel %vm300, %v1469, 0.0
      %v1484 = vadd.f32 %v1482, %v1483
      %v1485 = vrot.slane %v1484, 4
      %v1486 = vadd.f32 %v1484, %v1485
      %v1487 = vrot.slane %v1486, 2
      %v1488 = vadd.f32 %v1486, %v1487
      %v1489 = vrot.slane %v1488, 1
      %v1490 = vadd.f32 %v1488, %v1489
      %v1491 = vrsqrt.pop %v1490
      %v1492 = vmul.f32 %v1490, %v1491
      %vm1493 = vcmp.eq.f32.partialorder %v1490, inf
      %v1494 = vsel %vm1493, %v1490, %v1492
      %vm1495 = vcmp.eq.f32.partialorder %v1490, 0.0
      %v1496 = vand.u32 %v1490, 2147483648
      %v1497 = vsel %vm1495, %v1496, %v1494
      %v1498 = vmax.f32 %v1497, 1e-12
      %vm1499 = vcmask 1048064
      %v1500 = vsel %vm1499, %v1462, 0.0
      %v1501 = vsel %vm1499, %v1463, 0.0
      %v1502 = vadd.f32 %v1500, %v1501
      %v1503 = vsel %vm1499, %v1464, 0.0
      %v1504 = vadd.f32 %v1502, %v1503
      %v1505 = vsel %vm1499, %v1465, 0.0
      %v1506 = vadd.f32 %v1504, %v1505
      %v1507 = vsel %vm1499, %v1466, 0.0
      %v1508 = vadd.f32 %v1506, %v1507
      %v1509 = vsel %vm1499, %v1467, 0.0
      %v1510 = vadd.f32 %v1508, %v1509
      %v1511 = vsel %vm1499, %v1468, 0.0
      %v1512 = vadd.f32 %v1510, %v1511
      %v1513 = vsel %vm1499, %v1469, 0.0
      %v1514 = vadd.f32 %v1512, %v1513
      %v1515 = vrot.slane %v1514, 4
      %v1516 = vadd.f32 %v1514, %v1515
      %v1517 = vrot.slane %v1516, 2
      %v1518 = vadd.f32 %v1516, %v1517
      %v1519 = vrot.slane %v1518, 1
      %v1520 = vadd.f32 %v1518, %v1519
      %v1521 = vrsqrt.pop %v1520
      %v1522 = vmul.f32 %v1520, %v1521
      %vm1523 = vcmp.eq.f32.partialorder %v1520, inf
      %v1524 = vsel %vm1523, %v1520, %v1522
      %vm1525 = vcmp.eq.f32.partialorder %v1520, 0.0
      %v1526 = vand.u32 %v1520, 2147483648
      %v1527 = vsel %vm1525, %v1526, %v1524
      %v1528 = vmax.f32 %v1527, 1e-12
      %v1529 = vrcp.pop %v1498
      %v1530 = vmul.f32 %v1443, %v1529
      %v1531 = vmul.f32 %v1445, %v1529
      %v1532 = vmul.f32 %v1447, %v1529
      %v1533 = vmul.f32 %v1449, %v1529
      %v1534 = vmul.f32 %v1451, %v1529
      %v1535 = vmul.f32 %v1453, %v1529
      %v1536 = vmul.f32 %v1455, %v1529
      %v1537 = vmul.f32 %v1457, %v1529
      %v1538 = vpack.c.bf16 %v1531, %v1530
      %v1539 = vpack.c.bf16 %v1533, %v1532
      %v1540 = vpack.c.bf16 %v1535, %v1534
      %v1541 = vpack.c.bf16 %v1537, %v1536
      %v1542 = vrcp.pop %v1528
      %v1543 = vmul.f32 %v1443, %v1542
      %v1544 = vmul.f32 %v1445, %v1542
      %v1545 = vmul.f32 %v1447, %v1542
      %v1546 = vmul.f32 %v1449, %v1542
      %v1547 = vmul.f32 %v1451, %v1542
      %v1548 = vmul.f32 %v1453, %v1542
      %v1549 = vmul.f32 %v1455, %v1542
      %v1550 = vmul.f32 %v1457, %v1542
      %v1551 = vpack.c.bf16 %v1544, %v1543
      %v1552 = vpack.c.bf16 %v1546, %v1545
      %v1553 = vpack.c.bf16 %v1548, %v1547
      %v1554 = vpack.c.bf16 %v1550, %v1549
      %v1555 = vld [vmem:[%s2] sm:$0xff]
      %v1556 = vld [vmem:[%s2 + $0x8] sm:$0xff]
      %v1557 = vld [vmem:[%s2 + $0x10] sm:$0xff]
      %v1558 = vld [vmem:[%s2 + $0x18] sm:$0xff]
      %v1559 = vld [vmem:[%s2 + $0x20] sm:$0xff]
      %v1560 = vld [vmem:[%s2 + $0x28] sm:$0xff]
      %v1561 = vld [vmem:[%s2 + $0x30] sm:$0xff]
      %v1562 = vld [vmem:[%s2 + $0x38] sm:$0xff]
      %1563 = vxpose.xlu0.c.b16.start [1/8] %v1538, 128
      %1564 = vxpose.xlu0.c.b16.cont [2/8] %v1539, 128
      %1565 = vxpose.xlu0.c.b16.cont [3/8] %v1540, 128
      %1566 = vxpose.xlu0.c.b16.cont [4/8] %v1541, 128
      %1567 = vxpose.xlu0.c.b16.cont [5/8] 0, 128
      %1568 = vxpose.xlu0.c.b16.cont [6/8] 0, 128
      %1569 = vxpose.xlu0.c.b16.cont [7/8] 0, 128
      %1570 = vxpose.xlu0.c.b16.end [8/8] 0, 128
      %v1571 = vpop.trf.xlu0
      %v1572 = vpop.trf.xlu0
      %v1573 = vpop.trf.xlu0
      %v1574 = vpop.trf.xlu0
      %v1575 = vpop.trf.xlu0
      %v1576 = vpop.trf.xlu0
      %v1577 = vpop.trf.xlu0
      %v1578 = vpop.trf.xlu0
      %1583 = vrot.lane.b32.xlu0 %v1551, 64
      %v1584 = vpop.permute.xlu0 %1583
      %1585 = vrot.lane.b32.xlu0 %v1552, 64
      %v1586 = vpop.permute.xlu0 %1585
      %1587 = vrot.lane.b32.xlu0 %v1553, 64
      %v1588 = vpop.permute.xlu0 %1587
      %1589 = vrot.lane.b32.xlu0 %v1554, 64
      %v1590 = vpop.permute.xlu0 %1589
      %v1596 = vsel %vm300, %v1571, 0
      %v1599 = vsel %vm300, %v1572, 0
      %v1602 = vsel %vm300, %v1573, 0
      %v1605 = vsel %vm300, %v1574, 0
      %1607 = vmatprep.subr.bf16.mxu0 0
      %1608 = vmatpush1.bf16.msra.mxu0 %v1584
      %1609 = vmatprep.subr.bf16.mxu0 0
      %1610 = vmatpush1.bf16.msra.mxu0 %v1586
      %1611 = vmatprep.subr.bf16.mxu0 0
      %1612 = vmatpush1.bf16.msra.mxu0 %v1588
      %1613 = vmatprep.subr.bf16.mxu0 0
      %1614 = vmatpush1.bf16.msra.mxu0 %v1590
      %1615 = vmatprep.subr.bf16.mxu0 0
      %1616 = vmatpush1.bf16.msra.mxu0 0
      %1617 = vmatprep.subr.bf16.mxu0 0
      %1618 = vmatpush1.bf16.msra.mxu0 0
      %1619 = vmatprep.subr.bf16.mxu0 0
      %1620 = vmatpush1.bf16.msra.mxu0 0
      %1621 = vmatprep.subr.bf16.mxu0 0
      %1622 = vmatpush1.bf16.msra.mxu0 0
      %1623 = vmatprep.subr.bf16.mxu0 0
      %1624 = vmatpush1.bf16.msra.mxu0 0
      %1625 = vmatprep.subr.bf16.mxu0 0
      %1626 = vmatpush1.bf16.msra.mxu0 0
      %1627 = vmatprep.subr.bf16.mxu0 0
      %1628 = vmatpush1.bf16.msra.mxu0 0
      %1629 = vmatprep.subr.bf16.mxu0 0
      %1630 = vmatpush1.bf16.msra.mxu0 0
      %1631 = vmatprep.subr.bf16.mxu0 0
      %1632 = vmatpush1.bf16.msra.mxu0 0
      %1633 = vmatprep.subr.bf16.mxu0 0
      %1634 = vmatpush1.bf16.msra.mxu0 0
      %1635 = vmatprep.subr.bf16.mxu0 0
      %1636 = vmatpush1.bf16.msra.mxu0 0
      %1637 = vmatprep.subr.bf16.mxu0 0
      %1638 = vmatpush1.bf16.msra.mxu0 0
      %1639 = vmatprep.mubr.bf16.mxu0 0
      %1640 = vmatmul.mubr.bf16.gmra.mrb[0].mxu0 %v1596
      %v1641 = vpop.f32.mrb[0].mxu0
      %v1642 = vadd.f32 %v1555, %v1641
      %v1643 = vpop.f32.mrb[0].mxu0
      %v1644 = vpop.f32.mrb[0].mxu0
      %v1645 = vadd.f32 %v1556, %v1644
      %v1646 = vpop.f32.mrb[0].mxu0
      %1647 = vmatprep.mubr.bf16.mxu0 0
      %1648 = vmatmul.mubr.bf16.gmra.mrb[0].mxu0 %v1599
      %v1649 = vpop.f32.mrb[0].mxu0
      %v1650 = vadd.f32 %v1557, %v1649
      %v1651 = vpop.f32.mrb[0].mxu0
      %v1652 = vpop.f32.mrb[0].mxu0
      %v1653 = vadd.f32 %v1558, %v1652
      %v1654 = vpop.f32.mrb[0].mxu0
      %1655 = vmatprep.mubr.bf16.mxu0 0
      %1656 = vmatmul.mubr.bf16.gmra.mrb[0].mxu0 %v1602
      %v1657 = vpop.f32.mrb[0].mxu0
      %v1658 = vadd.f32 %v1559, %v1657
      %v1659 = vpop.f32.mrb[0].mxu0
      %v1660 = vpop.f32.mrb[0].mxu0
      %v1661 = vadd.f32 %v1560, %v1660
      %v1662 = vpop.f32.mrb[0].mxu0
      %1663 = vmatprep.mubr.bf16.mxu0 0
      %1664 = vmatmul.mubr.bf16.gmra.mrb[0].mxu0 %v1605
      %v1665 = vpop.f32.mrb[0].mxu0
      %v1666 = vadd.f32 %v1561, %v1665
      %v1667 = vpop.f32.mrb[0].mxu0
      %v1668 = vpop.f32.mrb[0].mxu0
      %v1669 = vadd.f32 %v1562, %v1668
      %v1670 = vpop.f32.mrb[0].mxu0
      %1671 = vdwg.mxu0
      %v1672 = vld [vmem:[#allocation3] sm:$0x1]
      %v1674 = vlaneseq
      %v1675 = vshrl.u32 %v1674, 7
      %v1676 = vsub.s32 0, %v1675
      %v1677 = vrot.slane %v1672, %v1676
      %1678 = vset.pattern.permute.xlu0 0
      %1679 = vperm.xlu0 %1678, %v1677
      %v1680 = vpop.permute.xlu0 %1679
      %v1682 = vmul.f32 %v1642, %v1680
      %v1683 = vmul.f32 %v1645, %v1680
      %v1684 = vmul.f32 %v1650, %v1680
      %v1685 = vmul.f32 %v1653, %v1680
      %v1686 = vmul.f32 %v1658, %v1680
      %v1687 = vmul.f32 %v1661, %v1680
      %v1688 = vmul.f32 %v1666, %v1680
      %v1689 = vmul.f32 %v1669, %v1680
      %v1690 = vsel %vm1461, %v1682, -1e+30
      %v1691 = vsel %vm1461, %v1683, -1e+30
      %v1692 = vsel %vm1461, %v1684, -1e+30
      %v1693 = vsel %vm1461, %v1685, -1e+30
      %v1694 = vsel %vm1461, %v1686, -1e+30
      %v1695 = vsel %vm1461, %v1687, -1e+30
      %v1696 = vsel %vm1461, %v1688, -1e+30
      %v1697 = vsel %vm1461, %v1689, -1e+30
      %v1698 = vsel %vm300, %v1690, -inf
      %1699 = vmax.xlane.f32.xlu0 %v1698
      %v1700 = vpop.xlane.xlu0 %1699
      %v1701 = vsel %vm300, %v1691, -inf
      %1702 = vmax.xlane.f32.xlu0 %v1701
      %v1703 = vpop.xlane.xlu0 %1702
      %v1704 = vsel %vm300, %v1692, -inf
      %1705 = vmax.xlane.f32.xlu0 %v1704
      %v1706 = vpop.xlane.xlu0 %1705
      %v1707 = vsel %vm300, %v1693, -inf
      %1708 = vmax.xlane.f32.xlu0 %v1707
      %v1709 = vpop.xlane.xlu0 %1708
      %v1710 = vsel %vm300, %v1694, -inf
      %1711 = vmax.xlane.f32.xlu0 %v1710
      %v1712 = vpop.xlane.xlu0 %1711
      %v1713 = vsel %vm300, %v1695, -inf
      %1714 = vmax.xlane.f32.xlu0 %v1713
      %v1715 = vpop.xlane.xlu0 %1714
      %v1716 = vsel %vm300, %v1696, -inf
      %1717 = vmax.xlane.f32.xlu0 %v1716
      %v1718 = vpop.xlane.xlu0 %1717
      %v1719 = vsel %vm300, %v1697, -inf
      %1720 = vmax.xlane.f32.xlu0 %v1719
      %v1721 = vpop.xlane.xlu0 %1720
      %v1722 = vsub.f32 %v1690, %v1700
      %v1723 = vsub.f32 %v1691, %v1703
      %v1724 = vsub.f32 %v1692, %v1706
      %v1725 = vsub.f32 %v1693, %v1709
      %v1726 = vsub.f32 %v1694, %v1712
      %v1727 = vsub.f32 %v1695, %v1715
      %v1728 = vsub.f32 %v1696, %v1718
      %v1729 = vsub.f32 %v1697, %v1721
      %v1730 = vmul.f32 %v1722, 1.442695
      %v1731 = vpow.pop %v1730
      %v1732 = vmul.f32 %v1723, 1.442695
      %v1733 = vpow.pop %v1732
      %v1734 = vmul.f32 %v1724, 1.442695
      %v1735 = vpow.pop %v1734
      %v1736 = vmul.f32 %v1725, 1.442695
      %v1737 = vpow.pop %v1736
      %v1738 = vmul.f32 %v1726, 1.442695
      %v1739 = vpow.pop %v1738
      %v1740 = vmul.f32 %v1727, 1.442695
      %v1741 = vpow.pop %v1740
      %v1742 = vmul.f32 %v1728, 1.442695
      %v1743 = vpow.pop %v1742
      %v1744 = vmul.f32 %v1729, 1.442695
      %v1745 = vpow.pop %v1744
      %v1746 = vsel %vm300, %v1731, 0.0
      %1747 = vadd.xlane.f32.xlu0 %v1746
      %v1748 = vpop.xlane.xlu0 %1747
      %v1749 = vsel %vm300, %v1733, 0.0
      %1750 = vadd.xlane.f32.xlu0 %v1749
      %v1751 = vpop.xlane.xlu0 %1750
      %v1752 = vsel %vm300, %v1735, 0.0
      %1753 = vadd.xlane.f32.xlu0 %v1752
      %v1754 = vpop.xlane.xlu0 %1753
      %v1755 = vsel %vm300, %v1737, 0.0
      %1756 = vadd.xlane.f32.xlu0 %v1755
      %v1757 = vpop.xlane.xlu0 %1756
      %v1758 = vsel %vm300, %v1739, 0.0
      %1759 = vadd.xlane.f32.xlu0 %v1758
      %v1760 = vpop.xlane.xlu0 %1759
      %v1761 = vsel %vm300, %v1741, 0.0
      %1762 = vadd.xlane.f32.xlu0 %v1761
      %v1763 = vpop.xlane.xlu0 %1762
      %v1764 = vsel %vm300, %v1743, 0.0
      %1765 = vadd.xlane.f32.xlu0 %v1764
      %v1766 = vpop.xlane.xlu0 %1765
      %v1767 = vsel %vm300, %v1745, 0.0
      %1768 = vadd.xlane.f32.xlu0 %v1767
      %v1769 = vpop.xlane.xlu0 %1768
      %v1770 = vrcp.pop %v1748
      %v1771 = vrcp.pop %v1751
      %v1772 = vrcp.pop %v1754
      %v1773 = vrcp.pop %v1757
      %v1774 = vrcp.pop %v1760
      %v1775 = vrcp.pop %v1763
      %v1776 = vrcp.pop %v1766
      %v1777 = vrcp.pop %v1769
      %v1778 = vmul.f32 %v1731, %v1770
      %v1779 = vmul.f32 %v1733, %v1771
      %v1780 = vmul.f32 %v1735, %v1772
      %v1781 = vmul.f32 %v1737, %v1773
      %v1782 = vmul.f32 %v1739, %v1774
      %v1783 = vmul.f32 %v1741, %v1775
      %v1784 = vmul.f32 %v1743, %v1776
      %v1785 = vmul.f32 %v1745, %v1777
      %v1786 = vpack.c.bf16 %v1446, %v1444
      %v1787 = vpack.c.bf16 %v1450, %v1448
      %v1788 = vpack.c.bf16 %v1454, %v1452
      %v1789 = vpack.c.bf16 %v1458, %v1456
      %v1790 = vpack.c.bf16 %v1779, %v1778
      %v1791 = vpack.c.bf16 %v1781, %v1780
      %v1792 = vpack.c.bf16 %v1783, %v1782
      %v1793 = vpack.c.bf16 %v1785, %v1784
      %v1795 = vsel %vm300, %v1786, 0
      %v1798 = vsel %vm300, %v1787, 0
      %v1801 = vsel %vm300, %v1788, 0
      %v1804 = vsel %vm300, %v1789, 0
      %v1807 = vsel %vm300, %v1790, 0
      %v1810 = vsel %vm300, %v1791, 0
      %v1813 = vsel %vm300, %v1792, 0
      %v1816 = vsel %vm300, %v1793, 0
      %1818 = vmatprep.subr.bf16.mxu0 0
      %1819 = vmatpush1.bf16.xpose.msra.mxu0 %v1807
      %1820 = vmatprep.subr.bf16.mxu0 0
      %1821 = vmatpush1.bf16.xpose.msra.mxu0 %v1810
      %1822 = vmatprep.subr.bf16.mxu0 0
      %1823 = vmatpush1.bf16.xpose.msra.mxu0 %v1813
      %1824 = vmatprep.subr.bf16.mxu0 0
      %1825 = vmatpush1.bf16.xpose.msra.mxu0 %v1816
      %1826 = vmatprep.subr.bf16.mxu0 0
      %1827 = vmatpush1.bf16.xpose.msra.mxu0 0
      %1828 = vmatprep.subr.bf16.mxu0 0
      %1829 = vmatpush1.bf16.xpose.msra.mxu0 0
      %1830 = vmatprep.subr.bf16.mxu0 0
      %1831 = vmatpush1.bf16.xpose.msra.mxu0 0
      %1832 = vmatprep.subr.bf16.mxu0 0
      %1833 = vmatpush1.bf16.xpose.msra.mxu0 0
      %1834 = vmatprep.subr.bf16.mxu0 0
      %1835 = vmatpush1.bf16.xpose.msra.mxu0 0
      %1836 = vmatprep.subr.bf16.mxu0 0
      %1837 = vmatpush1.bf16.xpose.msra.mxu0 0
      %1838 = vmatprep.subr.bf16.mxu0 0
      %1839 = vmatpush1.bf16.xpose.msra.mxu0 0
      %1840 = vmatprep.subr.bf16.mxu0 0
      %1841 = vmatpush1.bf16.xpose.msra.mxu0 0
      %1842 = vmatprep.subr.bf16.mxu0 0
      %1843 = vmatpush1.bf16.xpose.msra.mxu0 0
      %1844 = vmatprep.subr.bf16.mxu0 0
      %1845 = vmatpush1.bf16.xpose.msra.mxu0 0
      %1846 = vmatprep.subr.bf16.mxu0 0
      %1847 = vmatpush1.bf16.xpose.msra.mxu0 0
      %1848 = vmatprep.subr.bf16.mxu0 0
      %1849 = vmatpush1.bf16.xpose.msra.mxu0 0
      %1850 = vmatprep.mubr.bf16.mxu0 0
      %1851 = vmatmul.mubr.bf16.gmra.mrb[0].mxu0 %v1795
      %v1852 = vpop.f32.mrb[0].mxu0
      %v1853 = vadd.f32 0.0, %v1852
      %v1854 = vpop.f32.mrb[0].mxu0
      %v1855 = vpop.f32.mrb[0].mxu0
      %v1856 = vadd.f32 0.0, %v1855
      %v1857 = vpop.f32.mrb[0].mxu0
      %1858 = vmatprep.mubr.bf16.mxu0 0
      %1859 = vmatmul.mubr.bf16.gmra.mrb[0].mxu0 %v1798
      %v1860 = vpop.f32.mrb[0].mxu0
      %v1861 = vadd.f32 0.0, %v1860
      %v1862 = vpop.f32.mrb[0].mxu0
      %v1863 = vpop.f32.mrb[0].mxu0
      %v1864 = vadd.f32 0.0, %v1863
      %v1865 = vpop.f32.mrb[0].mxu0
      %1866 = vmatprep.mubr.bf16.mxu0 0
      %1867 = vmatmul.mubr.bf16.gmra.mrb[0].mxu0 %v1801
      %v1868 = vpop.f32.mrb[0].mxu0
      %v1869 = vadd.f32 0.0, %v1868
      %v1870 = vpop.f32.mrb[0].mxu0
      %v1871 = vpop.f32.mrb[0].mxu0
      %v1872 = vadd.f32 0.0, %v1871
      %v1873 = vpop.f32.mrb[0].mxu0
      %1874 = vmatprep.mubr.bf16.mxu0 0
      %1875 = vmatmul.mubr.bf16.gmra.mrb[0].mxu0 %v1804
      %v1876 = vpop.f32.mrb[0].mxu0
      %v1877 = vadd.f32 0.0, %v1876
      %v1878 = vpop.f32.mrb[0].mxu0
      %v1879 = vpop.f32.mrb[0].mxu0
      %v1880 = vadd.f32 0.0, %v1879
      %v1881 = vpop.f32.mrb[0].mxu0
      %1882 = vdwg.mxu0
      %v1883 = vpack.c.bf16 %v1856, %v1853
      %v1884 = vpack.c.bf16 %v1864, %v1861
      %v1885 = vpack.c.bf16 %v1872, %v1869
      %v1886 = vpack.c.bf16 %v1880, %v1877
      %v1887 = vld [vmem:[%s4] sm:$0xf]
      %v1888 = vld [vmem:[%s4 + $0x4] sm:$0xf]
      %v1889 = vld [vmem:[%s4 + $0x8] sm:$0xf]
      %v1890 = vld [vmem:[%s4 + $0xc] sm:$0xf]
      %v1891 = vld [vmem:[%s4 + $0x10] sm:$0xf]
      %v1892 = vld [vmem:[%s4 + $0x14] sm:$0xf]
      %v1893 = vld [vmem:[%s4 + $0x18] sm:$0xf]
      %v1894 = vld [vmem:[%s4 + $0x1c] sm:$0xf]
      %v1903 = vunpack.c.l.b16 %v1887
      %v1904 = vunpack.c.l.b16 %v1888
      %v1905 = vunpack.c.l.b16 %v1889
      %v1906 = vunpack.c.l.b16 %v1890
      %v1907 = vunpack.c.l.b16 %v1891
      %v1908 = vunpack.c.l.b16 %v1892
      %v1909 = vunpack.c.l.b16 %v1893
      %v1910 = vunpack.c.l.b16 %v1894
      %v1911 = vpack.c.b16 %v1904, %v1903
      %v1912 = vpack.c.b16 %v1906, %v1905
      %v1913 = vpack.c.b16 %v1908, %v1907
      %v1914 = vpack.c.b16 %v1910, %v1909
      %v1920 = vsel %vm300, %v1883, 0
      %v1923 = vsel %vm300, %v1884, 0
      %v1926 = vsel %vm300, %v1885, 0
      %v1929 = vsel %vm300, %v1886, 0
      %1931 = vmatprep.subr.bf16.mxu0 0
      %1932 = vmatpush1.bf16.msra.mxu0 %v1911
      %1933 = vmatprep.subr.bf16.mxu0 0
      %1934 = vmatpush1.bf16.msra.mxu0 %v1912
      %1935 = vmatprep.subr.bf16.mxu0 0
      %1936 = vmatpush1.bf16.msra.mxu0 %v1913
      %1937 = vmatprep.subr.bf16.mxu0 0
      %1938 = vmatpush1.bf16.msra.mxu0 %v1914
      %1939 = vmatprep.subr.bf16.mxu0 0
      %1940 = vmatpush1.bf16.msra.mxu0 0
      %1941 = vmatprep.subr.bf16.mxu0 0
      %1942 = vmatpush1.bf16.msra.mxu0 0
      %1943 = vmatprep.subr.bf16.mxu0 0
      %1944 = vmatpush1.bf16.msra.mxu0 0
      %1945 = vmatprep.subr.bf16.mxu0 0
      %1946 = vmatpush1.bf16.msra.mxu0 0
      %1947 = vmatprep.subr.bf16.mxu0 0
      %1948 = vmatpush1.bf16.msra.mxu0 0
      %1949 = vmatprep.subr.bf16.mxu0 0
      %1950 = vmatpush1.bf16.msra.mxu0 0
      %1951 = vmatprep.subr.bf16.mxu0 0
      %1952 = vmatpush1.bf16.msra.mxu0 0
      %1953 = vmatprep.subr.bf16.mxu0 0
      %1954 = vmatpush1.bf16.msra.mxu0 0
      %1955 = vmatprep.subr.bf16.mxu0 0
      %1956 = vmatpush1.bf16.msra.mxu0 0
      %1957 = vmatprep.subr.bf16.mxu0 0
      %1958 = vmatpush1.bf16.msra.mxu0 0
      %1959 = vmatprep.subr.bf16.mxu0 0
      %1960 = vmatpush1.bf16.msra.mxu0 0
      %1961 = vmatprep.subr.bf16.mxu0 0
      %1962 = vmatpush1.bf16.msra.mxu0 0
      %1963 = vmatprep.mubr.bf16.mxu0 0
      %1964 = vmatmul.mubr.bf16.gmra.mrb[0].mxu0 %v1920
      %v1965 = vpop.f32.mrb[0].mxu0
      %v1966 = vadd.f32 0.0, %v1965
      %v1967 = vpop.f32.mrb[0].mxu0
      %v1968 = vpop.f32.mrb[0].mxu0
      %v1969 = vadd.f32 0.0, %v1968
      %v1970 = vpop.f32.mrb[0].mxu0
      %1971 = vmatprep.mubr.bf16.mxu0 0
      %1972 = vmatmul.mubr.bf16.gmra.mrb[0].mxu0 %v1923
      %v1973 = vpop.f32.mrb[0].mxu0
      %v1974 = vadd.f32 0.0, %v1973
      %v1975 = vpop.f32.mrb[0].mxu0
      %v1976 = vpop.f32.mrb[0].mxu0
      %v1977 = vadd.f32 0.0, %v1976
      %v1978 = vpop.f32.mrb[0].mxu0
      %1979 = vmatprep.mubr.bf16.mxu0 0
      %1980 = vmatmul.mubr.bf16.gmra.mrb[0].mxu0 %v1926
      %v1981 = vpop.f32.mrb[0].mxu0
      %v1982 = vadd.f32 0.0, %v1981
      %v1983 = vpop.f32.mrb[0].mxu0
      %v1984 = vpop.f32.mrb[0].mxu0
      %v1985 = vadd.f32 0.0, %v1984
      %v1986 = vpop.f32.mrb[0].mxu0
      %1987 = vmatprep.mubr.bf16.mxu0 0
      %1988 = vmatmul.mubr.bf16.gmra.mrb[0].mxu0 %v1929
      %v1989 = vpop.f32.mrb[0].mxu0
      %v1990 = vadd.f32 0.0, %v1989
      %v1991 = vpop.f32.mrb[0].mxu0
      %v1992 = vpop.f32.mrb[0].mxu0
      %v1993 = vadd.f32 0.0, %v1992
      %v1994 = vpop.f32.mrb[0].mxu0
      %1995 = vdwg.mxu0
      %v1996 = vld [vmem:[%s268] sm:$0xff]
      %v1997 = vld [vmem:[%s268 + $0x8] sm:$0xff]
      %v1998 = vld [vmem:[%s268 + $0x10] sm:$0xff]
      %v1999 = vld [vmem:[%s268 + $0x18] sm:$0xff]
      %v2000 = vld [vmem:[%s268 + $0x20] sm:$0xff]
      %v2001 = vld [vmem:[%s268 + $0x28] sm:$0xff]
      %v2002 = vld [vmem:[%s268 + $0x30] sm:$0xff]
      %v2003 = vld [vmem:[%s268 + $0x38] sm:$0xff]
      %v2004 = vadd.f32 %v1996, %v1966
      %v2005 = vadd.f32 %v1997, %v1969
      %v2006 = vadd.f32 %v1998, %v1974
      %v2007 = vadd.f32 %v1999, %v1977
      %v2008 = vadd.f32 %v2000, %v1982
      %v2009 = vadd.f32 %v2001, %v1985
      %v2010 = vadd.f32 %v2002, %v1990
      %v2011 = vadd.f32 %v2003, %v1993
      %2012 = vst.msk [vmem:[%s273] sm:$0xff] %vm300, %v2004
      %2013 = vst.msk [vmem:[%s273 + $0x8] sm:$0xff] %vm300, %v2005
      %2014 = vst.msk [vmem:[%s273 + $0x10] sm:$0xff] %vm300, %v2006
      %2015 = vst.msk [vmem:[%s273 + $0x18] sm:$0xff] %vm300, %v2007
      %2016 = vst.msk [vmem:[%s273 + $0x20] sm:$0xff] %vm300, %v2008
      %2017 = vst.msk [vmem:[%s273 + $0x28] sm:$0xff] %vm300, %v2009
      %2018 = vst.msk [vmem:[%s273 + $0x30] sm:$0xff] %vm300, %v2010
      %2019 = vst.msk [vmem:[%s273 + $0x38] sm:$0xff] %vm300, %v2011
      %p2020 = scmp.lt.s32.totalorder %s19, 1
      %s2021 = scalar_select %p2020, %s19, 1
      %s2022 = smul.addr %s2021, 8
      %s2023 = smul.addr %s2022, 8
      %s2024 = scalar_lea.vmem %s6, %s2023
      // Predicated region
      $region45: #{transformer_block_forward.5} parent=43 // pred_check
        %p2025 = pneg %p173
      $region46: #{transformer_block_forward.5} parent=43 // pred_check_branch
        %2027 = sbr.rel (%p2025) target = $region48
      $region47: #{transformer_block_forward.5} parent=43 // pred_region
        _
      $region48: #{transformer_block_forward.5} parent=43 // pred_fallthru
        _
    $region44: #{transformer_block_forward.5} parent=5 // pred_fallthru
      _
    %p2028 = scmp.le.s32.totalorder 2, %s14
    // Predicated region
    $region49: #{transformer_block_forward.5} parent=5 // pred_check
      %p2029 = pneg %p2028
    $region50: #{transformer_block_forward.5} parent=5 // pred_check_branch
      %2031 = sbr.rel (%p2029) target = $region52
    $region51: #{transformer_block_forward.5} parent=5 // pred_region
      %s2032 = ssub.s32 %s14, 2
      // Predicated region
      $region53: #{transformer_block_forward.5} parent=51 // pred_check
        %p2033 = pneg %p179
      $region54: #{transformer_block_forward.5} parent=51 // pred_check_branch
        %2035 = sbr.rel (%p2033) target = $region56
      $region55: #{transformer_block_forward.5} parent=51 // pred_region
        %p2036 = scmp.lt.s32.totalorder %s20, 1
        %s2037 = scalar_select %p2036, %s20, 1
        %s2038 = smul.addr %s2037, 8
        %s2039 = smul.addr %s2038, 8
        %s2040 = scalar_lea.vmem %s6, %s2039
      $region56: #{transformer_block_forward.5} parent=51 // pred_fallthru
        _
    $region52: #{transformer_block_forward.5} parent=5 // pred_fallthru
      _
  $region6: #{transformer_block_forward.5} parent=0 // loop_footer
    %s18 = sadd.s32 1, %s14
  $region7: #{transformer_block_forward.5} parent=0 // loop_footer_branch
    %13 = sbr.rel target = $region3
  $region8: #{transformer_block_forward.5} parent=0 // loop_exit
    _

// kernel: transformer_block_forward.7
$region0: #{transformer_block_forward.7}
  #allocation0 [shape = 'u32[]', space=smem, size = 0x4, offset = 0x4, fixed_abs, tag = 'smem constant byte address 0x4 - core index']
  #allocation1 [shape = 'u32[144,128]{1,0:T(1,128)}', space=vmem, size = 0x12000, scoped, tag = 'internal scratch']
  #allocation2 [shape = 'f32[96,256]{1,0:T(8,128)}', space=vmem, size = 0x18000, scoped, tag = 'scratch operand']
  %s0 = inlined_call_operand.vmem [shape: bf16[2,64,256], index: 0, kind: input, shape index: {}]
  %s1 = inlined_call_operand.vmem [shape: f32[9,256], index: 1, kind: input, shape index: {}]
  %s2 = inlined_call_operand.vmem [shape: bf16[128,64], index: 2, kind: input, shape index: {}]
  %s3 = inlined_call_operand.vmem [shape: f32[64,8], index: 3, kind: input, shape index: {}]
  %s4 = inlined_call_operand.vmem [shape: f32[8,64], index: 4, kind: input, shape index: {}]
  %s5 = inlined_call_operand.vmem [shape: f32[2,64,64], index: 5, kind: input, shape index: {}]
  %s6 = inlined_call_operand.vmem [shape: f32[2,64,64], index: 6, kind: output, shape index: {}]
  %s7 = sld [smem:[#allocation0]]
  $region57: #{transformer_block_forward.7} parent=0
    _
  %s9 = ssub.s32 1, %s7
  %s10 = scalar_select 0, %s9, %s7
  loop: start=0, step=1, limit=4
  $region2: #{transformer_block_forward.7} parent=0 // loop_pre_header
    _
  $region3: #{transformer_block_forward.7} parent=0 // loop_header
    %s12 = sphi 0, %s16
    %p13 = scmp.ge.s32.totalorder %s12, 4
    %s22 = sphi 0, %s24
    %s25 = sphi 0, %s22
    %s26 = sphi 0, %s25
    %s42 = sphi 0, %s26
    %s46 = sphi 0, %s46
    %s48 = sphi 0, %s46
    %s49 = sphi 0, %s48
    %s63 = sphi 0, %s49
    %s67 = sphi 0, %s67
    %s69 = sphi 0, %s67
    %s70 = sphi 0, %s69
    %s84 = sphi 0, %s70
    %s88 = sphi 0, %s88
    %s90 = sphi 0, %s88
    %s91 = sphi 0, %s90
    %s105 = sphi 0, %s91
    %s109 = sphi 0, %s109
    %s111 = sphi 0, %s109
    %s112 = sphi 0, %s111
    %s126 = sphi 0, %s112
    %s132 = sphi 0, %s134
    %s135 = sphi 0, %s132
    %s136 = sphi 0, %s135
    %s152 = sphi 0, %s136
    %s158 = sphi 0, %s160
    %s161 = sphi 0, %s158
    %s162 = sphi 0, %s161
    %s178 = sphi 0, %s162
  $region4: #{transformer_block_forward.7} parent=0 // loop_header_branch
    %15 = sbr.rel (%p13) target = $region8
  $region5: #{transformer_block_forward.7} parent=0 // loop_body
    %s17 = ssub.s32 %s12, 1
    %s18 = ssub.s32 %s12, 2
    %s19 = sadd.s32 %s12, 1
    %s20 = ssub.s32 %s12, %s19
    %p21 = scmp.eq.s32.totalorder %s20, 0
    %s23 = sadd.s32 %s22, 1
    %s24 = scalar_select %p21, %s22, %s23
    %p27 = pneg %p21
    %p28 = scmp.eq.s32.totalorder %s12, 1
    %p29 = por %p27, %p28
    %p30 = scmp.ne.s32.totalorder %s22, %s25
    %p31 = scmp.eq.s32.totalorder %s12, 0
    %p32 = por %p30, %p31
    %p33 = scmp.ne.s32.totalorder %s22, %s25
    %p34 = scmp.eq.s32.totalorder %s17, 1
    %p35 = por %p33, %p34
    %p36 = scmp.ne.s32.totalorder %s25, %s26
    %p37 = scmp.eq.s32.totalorder %s17, 0
    %p38 = por %p36, %p37
    %p39 = scmp.ne.s32.totalorder %s25, %s26
    %p40 = scmp.eq.s32.totalorder %s18, 1
    %p41 = por %p39, %p40
    %p43 = scmp.ne.s32.totalorder %s26, %s42
    %p44 = scmp.eq.s32.totalorder %s18, 0
    %p45 = por %p43, %p44
    %s47 = sadd.s32 %s46, 1
    %p50 = scmp.eq.s32.totalorder %s12, 1
    %p51 = scmp.ne.s32.totalorder %s46, %s48
    %p52 = scmp.eq.s32.totalorder %s12, 0
    %p53 = por %p51, %p52
    %p54 = scmp.ne.s32.totalorder %s46, %s48
    %p55 = scmp.eq.s32.totalorder %s17, 1
    %p56 = por %p54, %p55
    %p57 = scmp.ne.s32.totalorder %s48, %s49
    %p58 = scmp.eq.s32.totalorder %s17, 0
    %p59 = por %p57, %p58
    %p60 = scmp.ne.s32.totalorder %s48, %s49
    %p61 = scmp.eq.s32.totalorder %s18, 1
    %p62 = por %p60, %p61
    %p64 = scmp.ne.s32.totalorder %s49, %s63
    %p65 = scmp.eq.s32.totalorder %s18, 0
    %p66 = por %p64, %p65
    %s68 = sadd.s32 %s67, 1
    %p71 = scmp.eq.s32.totalorder %s12, 1
    %p72 = scmp.ne.s32.totalorder %s67, %s69
    %p73 = scmp.eq.s32.totalorder %s12, 0
    %p74 = por %p72, %p73
    %p75 = scmp.ne.s32.totalorder %s67, %s69
    %p76 = scmp.eq.s32.totalorder %s17, 1
    %p77 = por %p75, %p76
    %p78 = scmp.ne.s32.totalorder %s69, %s70
    %p79 = scmp.eq.s32.totalorder %s17, 0
    %p80 = por %p78, %p79
    %p81 = scmp.ne.s32.totalorder %s69, %s70
    %p82 = scmp.eq.s32.totalorder %s18, 1
    %p83 = por %p81, %p82
    %p85 = scmp.ne.s32.totalorder %s70, %s84
    %p86 = scmp.eq.s32.totalorder %s18, 0
    %p87 = por %p85, %p86
    %s89 = sadd.s32 %s88, 1
    %p92 = scmp.eq.s32.totalorder %s12, 1
    %p93 = scmp.ne.s32.totalorder %s88, %s90
    %p94 = scmp.eq.s32.totalorder %s12, 0
    %p95 = por %p93, %p94
    %p96 = scmp.ne.s32.totalorder %s88, %s90
    %p97 = scmp.eq.s32.totalorder %s17, 1
    %p98 = por %p96, %p97
    %p99 = scmp.ne.s32.totalorder %s90, %s91
    %p100 = scmp.eq.s32.totalorder %s17, 0
    %p101 = por %p99, %p100
    %p102 = scmp.ne.s32.totalorder %s90, %s91
    %p103 = scmp.eq.s32.totalorder %s18, 1
    %p104 = por %p102, %p103
    %p106 = scmp.ne.s32.totalorder %s91, %s105
    %p107 = scmp.eq.s32.totalorder %s18, 0
    %p108 = por %p106, %p107
    %s110 = sadd.s32 %s109, 1
    %p113 = scmp.eq.s32.totalorder %s12, 1
    %p114 = scmp.ne.s32.totalorder %s109, %s111
    %p115 = scmp.eq.s32.totalorder %s12, 0
    %p116 = por %p114, %p115
    %p117 = scmp.ne.s32.totalorder %s109, %s111
    %p118 = scmp.eq.s32.totalorder %s17, 1
    %p119 = por %p117, %p118
    %p120 = scmp.ne.s32.totalorder %s111, %s112
    %p121 = scmp.eq.s32.totalorder %s17, 0
    %p122 = por %p120, %p121
    %p123 = scmp.ne.s32.totalorder %s111, %s112
    %p124 = scmp.eq.s32.totalorder %s18, 1
    %p125 = por %p123, %p124
    %p127 = scmp.ne.s32.totalorder %s112, %s126
    %p128 = scmp.eq.s32.totalorder %s18, 0
    %p129 = por %p127, %p128
    %s130 = ssub.s32 %s12, %s19
    %p131 = scmp.eq.s32.totalorder %s130, 0
    %s133 = sadd.s32 %s132, 1
    %s134 = scalar_select %p131, %s132, %s133
    %p137 = pneg %p131
    %p138 = scmp.eq.s32.totalorder %s12, 1
    %p139 = por %p137, %p138
    %p140 = scmp.ne.s32.totalorder %s132, %s135
    %p141 = scmp.eq.s32.totalorder %s12, 0
    %p142 = por %p140, %p141
    %p143 = scmp.ne.s32.totalorder %s132, %s135
    %p144 = scmp.eq.s32.totalorder %s17, 1
    %p145 = por %p143, %p144
    %p146 = scmp.ne.s32.totalorder %s135, %s136
    %p147 = scmp.eq.s32.totalorder %s17, 0
    %p148 = por %p146, %p147
    %p149 = scmp.ne.s32.totalorder %s135, %s136
    %p150 = scmp.eq.s32.totalorder %s18, 1
    %p151 = por %p149, %p150
    %p153 = scmp.ne.s32.totalorder %s136, %s152
    %p154 = scmp.eq.s32.totalorder %s18, 0
    %p155 = por %p153, %p154
    %s156 = ssub.s32 %s12, %s19
    %p157 = scmp.eq.s32.totalorder %s156, 0
    %s159 = sadd.s32 %s158, 1
    %s160 = scalar_select %p157, %s158, %s159
    %p163 = pneg %p157
    %p164 = scmp.eq.s32.totalorder %s12, 1
    %p165 = por %p163, %p164
    %p166 = scmp.ne.s32.totalorder %s158, %s161
    %p167 = scmp.eq.s32.totalorder %s12, 0
    %p168 = por %p166, %p167
    %p169 = scmp.ne.s32.totalorder %s158, %s161
    %p170 = scmp.eq.s32.totalorder %s17, 1
    %p171 = por %p169, %p170
    %p172 = scmp.ne.s32.totalorder %s161, %s162
    %p173 = scmp.eq.s32.totalorder %s17, 0
    %p174 = por %p172, %p173
    %p175 = scmp.ne.s32.totalorder %s161, %s162
    %p176 = scmp.eq.s32.totalorder %s18, 1
    %p177 = por %p175, %p176
    %p179 = scmp.ne.s32.totalorder %s162, %s178
    %p180 = scmp.eq.s32.totalorder %s18, 0
    %p181 = por %p179, %p180
    %p182 = scmp.le.s32.totalorder 1, %s12
    %p183 = scmp.lt.s32.totalorder %s12, 3
    %p184 = pnand %p182, %p183
    %p185 = pneg %p184
    // Predicated region
    $region9: #{transformer_block_forward.7} parent=5 // pred_check
      _
    $region10: #{transformer_block_forward.7} parent=5 // pred_check_branch
      %187 = sbr.rel (%p184) target = $region12
    $region11: #{transformer_block_forward.7} parent=5 // pred_region
      %s188 = ssub.s32 %s12, 1
      // Predicated region
      $region13: #{transformer_block_forward.7} parent=11 // pred_check
        %p189 = pneg %p59
      $region14: #{transformer_block_forward.7} parent=11 // pred_check_branch
        %191 = sbr.rel (%p189) target = $region16
      $region15: #{transformer_block_forward.7} parent=11 // pred_region
        _
      $region16: #{transformer_block_forward.7} parent=11 // pred_fallthru
        _
      // Predicated region
      $region17: #{transformer_block_forward.7} parent=11 // pred_check
        %p192 = pneg %p80
      $region18: #{transformer_block_forward.7} parent=11 // pred_check_branch
        %194 = sbr.rel (%p192) target = $region20
      $region19: #{transformer_block_forward.7} parent=11 // pred_region
        _
      $region20: #{transformer_block_forward.7} parent=11 // pred_fallthru
        _
      // Predicated region
      $region21: #{transformer_block_forward.7} parent=11 // pred_check
        %p195 = pneg %p101
      $region22: #{transformer_block_forward.7} parent=11 // pred_check_branch
        %197 = sbr.rel (%p195) target = $region24
      $region23: #{transformer_block_forward.7} parent=11 // pred_region
        _
      $region24: #{transformer_block_forward.7} parent=11 // pred_fallthru
        _
      // Predicated region
      $region25: #{transformer_block_forward.7} parent=11 // pred_check
        %p198 = pneg %p122
      $region26: #{transformer_block_forward.7} parent=11 // pred_check_branch
        %200 = sbr.rel (%p198) target = $region28
      $region27: #{transformer_block_forward.7} parent=11 // pred_region
        _
      $region28: #{transformer_block_forward.7} parent=11 // pred_fallthru
        _
    $region12: #{transformer_block_forward.7} parent=5 // pred_fallthru
      _
    %p201 = scmp.lt.s32.totalorder %s12, 2
    // Predicated region
    $region29: #{transformer_block_forward.7} parent=5 // pred_check
      %p202 = pneg %p201
    $region30: #{transformer_block_forward.7} parent=5 // pred_check_branch
      %204 = sbr.rel (%p202) target = $region32
    $region31: #{transformer_block_forward.7} parent=5 // pred_region
      // Predicated region
      $region33: #{transformer_block_forward.7} parent=31 // pred_check
        %p205 = pneg %p32
      $region34: #{transformer_block_forward.7} parent=31 // pred_check_branch
        %207 = sbr.rel (%p205) target = $region36
      $region35: #{transformer_block_forward.7} parent=31 // pred_region
        %p208 = scmp.lt.s32.totalorder %s12, 1
        %s209 = scalar_select %p208, %s12, 1
        %s210 = smul.addr %s209, 16
        %s211 = smul.addr %s210, 4
        %s212 = scalar_lea.vmem %s0, %s211
      $region36: #{transformer_block_forward.7} parent=31 // pred_fallthru
        _
      // Predicated region
      $region37: #{transformer_block_forward.7} parent=31 // pred_check
        %p213 = pneg %p142
      $region38: #{transformer_block_forward.7} parent=31 // pred_check_branch
        %215 = sbr.rel (%p213) target = $region40
      $region39: #{transformer_block_forward.7} parent=31 // pred_region
        %p216 = scmp.lt.s32.totalorder %s12, 1
        %s217 = scalar_select %p216, %s12, 1
        %s218 = smul.addr %s217, 8
        %s219 = smul.addr %s218, 8
        %s220 = scalar_lea.vmem %s5, %s219
      $region40: #{transformer_block_forward.7} parent=31 // pred_fallthru
        _
    $region32: #{transformer_block_forward.7} parent=5 // pred_fallthru
      _
    %p221 = scmp.le.s32.totalorder 1, %s12
    %p222 = scmp.lt.s32.totalorder %s12, 3
    %p223 = pnand %p221, %p222
    %p224 = pneg %p223
    // Predicated region
    $region41: #{transformer_block_forward.7} parent=5 // pred_check
      _
    $region42: #{transformer_block_forward.7} parent=5 // pred_check_branch
      %226 = sbr.rel (%p223) target = $region44
    $region43: #{transformer_block_forward.7} parent=5 // pred_region
      %s227 = ssub.s32 %s12, 1
      %p228 = scmp.lt.s32.totalorder %s17, 1
      %s229 = scalar_select %p228, %s17, 1
      %s230 = smul.addr %s229, 16
      %s231 = smul.addr %s230, 4
      %s232 = scalar_lea.vmem %s0, %s231
      %p233 = pneg %p38
      %p234 = pneg %p35
      %p235 = pneg %p59
      %p236 = pneg %p56
      %p237 = pneg %p80
      %p238 = pneg %p77
      %p239 = pneg %p101
      %p240 = pneg %p98
      %p241 = pneg %p122
      %p242 = pneg %p119
      %p243 = scmp.lt.s32.totalorder %s17, 1
      %s244 = scalar_select %p243, %s17, 1
      %s245 = smul.addr %s244, 8
      %s246 = smul.addr %s245, 8
      %s247 = scalar_lea.vmem %s5, %s246
      %p248 = pneg %p148
      %p249 = pneg %p145
      %p250 = pneg %p174
      %p251 = pneg %p171
      %p252 = scmp.lt.s32.totalorder %s17, 1
      %s253 = scalar_select %p252, %s17, 1
      %s254 = smul.addr %s253, 8
      %s255 = smul.addr %s254, 8
      %s256 = scalar_lea.vmem %s6, %s255
      %p257 = scmp.lt.s32.totalorder %s17, 1
      %s258 = scalar_select %p257, %s17, 1
      %s259 = smul.addr %s258, 16
      %s260 = smul.addr %s259, 4
      %s261 = scalar_lea.vmem %s0, %s260
      %p262 = scmp.lt.s32.totalorder %s17, 1
      %s263 = scalar_select %p262, %s17, 1
      %s264 = smul.addr %s263, 8
      %s265 = smul.addr %s264, 8
      %s266 = scalar_lea.vmem %s5, %s265
      %p267 = scmp.lt.s32.totalorder %s17, 1
      %s268 = scalar_select %p267, %s17, 1
      %s269 = smul.addr %s268, 8
      %s270 = smul.addr %s269, 8
      %s271 = scalar_lea.vmem %s6, %s270
      %v273 = vld [vmem:[%s261] sm:$0xff]
      %v274 = vld [vmem:[%s261 + $0x8] sm:$0xff]
      %v275 = vld [vmem:[%s261 + $0x10] sm:$0xff]
      %v276 = vld [vmem:[%s261 + $0x18] sm:$0xff]
      %v277 = vld [vmem:[%s261 + $0x20] sm:$0xff]
      %v278 = vld [vmem:[%s261 + $0x28] sm:$0xff]
      %v279 = vld [vmem:[%s261 + $0x30] sm:$0xff]
      %v280 = vld [vmem:[%s261 + $0x38] sm:$0xff]
      %v281 = vunpack.c.l.bf16 %v273
      %v282 = vunpack.c.h.bf16 %v273
      %v283 = vunpack.c.l.bf16 %v274
      %v284 = vunpack.c.h.bf16 %v274
      %v285 = vunpack.c.l.bf16 %v275
      %v286 = vunpack.c.h.bf16 %v275
      %v287 = vunpack.c.l.bf16 %v276
      %v288 = vunpack.c.h.bf16 %v276
      %v289 = vunpack.c.l.bf16 %v277
      %v290 = vunpack.c.h.bf16 %v277
      %v291 = vunpack.c.l.bf16 %v278
      %v292 = vunpack.c.h.bf16 %v278
      %v293 = vunpack.c.l.bf16 %v279
      %v294 = vunpack.c.h.bf16 %v279
      %v295 = vunpack.c.l.bf16 %v280
      %v296 = vunpack.c.h.bf16 %v280
      %297 = vst [vmem:[#allocation2] sm:$0xff] 0.0
      %298 = vst [vmem:[#allocation2 + $0x8] sm:$0xff] 0.0
      %299 = vst [vmem:[#allocation2 + $0x10] sm:$0xff] 0.0
      %300 = vst [vmem:[#allocation2 + $0x18] sm:$0xff] 0.0
      %301 = vst [vmem:[#allocation2 + $0x20] sm:$0xff] 0.0
      %302 = vst [vmem:[#allocation2 + $0x28] sm:$0xff] 0.0
      %303 = vst [vmem:[#allocation2 + $0x30] sm:$0xff] 0.0
      %304 = vst [vmem:[#allocation2 + $0x38] sm:$0xff] 0.0
      %305 = vst [vmem:[#allocation2 + $0x40] sm:$0xff] 0.0
      %306 = vst [vmem:[#allocation2 + $0x48] sm:$0xff] 0.0
      %307 = vst [vmem:[#allocation2 + $0x50] sm:$0xff] 0.0
      %308 = vst [vmem:[#allocation2 + $0x58] sm:$0xff] 0.0
      %309 = vst [vmem:[#allocation2 + $0x60] sm:$0xff] 0.0
      %310 = vst [vmem:[#allocation2 + $0x68] sm:$0xff] 0.0
      %311 = vst [vmem:[#allocation2 + $0x70] sm:$0xff] 0.0
      %312 = vst [vmem:[#allocation2 + $0x78] sm:$0xff] 0.0
      %313 = vst [vmem:[#allocation2 + $0x80] sm:$0xff] 0.0
      %314 = vst [vmem:[#allocation2 + $0x88] sm:$0xff] 0.0
      %315 = vst [vmem:[#allocation2 + $0x90] sm:$0xff] 0.0
      %316 = vst [vmem:[#allocation2 + $0x98] sm:$0xff] 0.0
      %317 = vst [vmem:[#allocation2 + $0xa0] sm:$0xff] 0.0
      %318 = vst [vmem:[#allocation2 + $0xa8] sm:$0xff] 0.0
      %319 = vst [vmem:[#allocation2 + $0xb0] sm:$0xff] 0.0
      %320 = vst [vmem:[#allocation2 + $0xb8] sm:$0xff] 0.0
      %321 = vst [vmem:[#allocation2 + $0x20] sm:$0xff] %v281
      %322 = vst [vmem:[#allocation2 + $0x28] sm:$0xff] %v282
      %323 = vst [vmem:[#allocation2 + $0x30] sm:$0xff] %v283
      %324 = vst [vmem:[#allocation2 + $0x38] sm:$0xff] %v284
      %325 = vst [vmem:[#allocation2 + $0x40] sm:$0xff] %v285
      %326 = vst [vmem:[#allocation2 + $0x48] sm:$0xff] %v286
      %327 = vst [vmem:[#allocation2 + $0x50] sm:$0xff] %v287
      %328 = vst [vmem:[#allocation2 + $0x58] sm:$0xff] %v288
      %329 = vst [vmem:[#allocation2 + $0x60] sm:$0xff] %v289
      %330 = vst [vmem:[#allocation2 + $0x68] sm:$0xff] %v290
      %331 = vst [vmem:[#allocation2 + $0x70] sm:$0xff] %v291
      %332 = vst [vmem:[#allocation2 + $0x78] sm:$0xff] %v292
      %333 = vst [vmem:[#allocation2 + $0x80] sm:$0xff] %v293
      %334 = vst [vmem:[#allocation2 + $0x88] sm:$0xff] %v294
      %335 = vst [vmem:[#allocation2 + $0x90] sm:$0xff] %v295
      %336 = vst [vmem:[#allocation2 + $0x98] sm:$0xff] %v296
      %v337 = vlaneseq
      %v338 = vshrl.u32 %v337, 7
      %v339 = vadd.s32 %v338, 8
      %v340 = vadd.s32 %v338, 16
      %v341 = vadd.s32 %v338, 24
      %v342 = vadd.s32 %v338, 32
      %v343 = vadd.s32 %v338, 40
      %v344 = vadd.s32 %v338, 48
      %v345 = vadd.s32 %v338, 56
      %vm346 = vcmp.lt.s32.totalorder %v338, 0
      %v347 = vsub.s32 0, %v338
      %v348 = vsel %vm346, %v347, %v338
      %v349 = vshrl.u32 %v348, 3
      %v350 = vand.u32 %v348, 7
      %v351 = vsub.s32 0, %v350
      %v352 = vsel %vm346, %v351, %v350
      %vm353 = vcmp.lt.s32.totalorder %v339, 0
      %v354 = vsub.s32 0, %v339
      %v355 = vsel %vm353, %v354, %v339
      %v356 = vshrl.u32 %v355, 3
      %v357 = vand.u32 %v355, 7
      %v358 = vsub.s32 0, %v357
      %v359 = vsel %vm353, %v358, %v357
      %vm360 = vcmp.lt.s32.totalorder %v340, 0
      %v361 = vsub.s32 0, %v340
      %v362 = vsel %vm360, %v361, %v340
      %v363 = vshrl.u32 %v362, 3
      %v364 = vand.u32 %v362, 7
      %v365 = vsub.s32 0, %v364
      %v366 = vsel %vm360, %v365, %v364
      %vm367 = vcmp.lt.s32.totalorder %v341, 0
      %v368 = vsub.s32 0, %v341
      %v369 = vsel %vm367, %v368, %v341
      %v370 = vshrl.u32 %v369, 3
      %v371 = vand.u32 %v369, 7
      %v372 = vsub.s32 0, %v371
      %v373 = vsel %vm367, %v372, %v371
      %vm374 = vcmp.lt.s32.totalorder %v342, 0
      %v375 = vsub.s32 0, %v342
      %v376 = vsel %vm374, %v375, %v342
      %v377 = vshrl.u32 %v376, 3
      %v378 = vand.u32 %v376, 7
      %v379 = vsub.s32 0, %v378
      %v380 = vsel %vm374, %v379, %v378
      %vm381 = vcmp.lt.s32.totalorder %v343, 0
      %v382 = vsub.s32 0, %v343
      %v383 = vsel %vm381, %v382, %v343
      %v384 = vshrl.u32 %v383, 3
      %v385 = vand.u32 %v383, 7
      %v386 = vsub.s32 0, %v385
      %v387 = vsel %vm381, %v386, %v385
      %vm388 = vcmp.lt.s32.totalorder %v344, 0
      %v389 = vsub.s32 0, %v344
      %v390 = vsel %vm388, %v389, %v344
      %v391 = vshrl.u32 %v390, 3
      %v392 = vand.u32 %v390, 7
      %v393 = vsub.s32 0, %v392
      %v394 = vsel %vm388, %v393, %v392
      %vm395 = vcmp.lt.s32.totalorder %v345, 0
      %v396 = vsub.s32 0, %v345
      %v397 = vsel %vm395, %v396, %v345
      %v398 = vshrl.u32 %v397, 3
      %v399 = vand.u32 %v397, 7
      %v400 = vsub.s32 0, %v399
      %v401 = vsel %vm395, %v400, %v399
      %vm402 = vcmp.ne.s32.totalorder %v352, 0
      %vm403 = vcmp.ne.s32.totalorder %v359, 0
      %vm404 = vcmp.ne.s32.totalorder %v366, 0
      %vm405 = vcmp.ne.s32.totalorder %v373, 0
      %vm406 = vcmp.ne.s32.totalorder %v380, 0
      %vm407 = vcmp.ne.s32.totalorder %v387, 0
      %vm408 = vcmp.ne.s32.totalorder %v394, 0
      %vm409 = vcmp.ne.s32.totalorder %v401, 0
      %vm410 = vcmp.lt.s32.totalorder %v352, 0
      %vm411 = vcmp.lt.s32.totalorder %v359, 0
      %vm412 = vcmp.lt.s32.totalorder %v366, 0
      %vm413 = vcmp.lt.s32.totalorder %v373, 0
      %vm414 = vcmp.lt.s32.totalorder %v380, 0
      %vm415 = vcmp.lt.s32.totalorder %v387, 0
      %vm416 = vcmp.lt.s32.totalorder %v394, 0
      %vm417 = vcmp.lt.s32.totalorder %v401, 0
      %vm418 = vmand %vm410, %vm402
      %vm419 = vmand %vm411, %vm403
      %vm420 = vmand %vm412, %vm404
      %vm421 = vmand %vm413, %vm405
      %vm422 = vmand %vm414, %vm406
      %vm423 = vmand %vm415, %vm407
      %vm424 = vmand %vm416, %vm408
      %vm425 = vmand %vm417, %vm409
      %v426 = vadd.s32 %v352, 8
      %v427 = vadd.s32 %v359, 8
      %v428 = vadd.s32 %v366, 8
      %v429 = vadd.s32 %v373, 8
      %v430 = vadd.s32 %v380, 8
      %v431 = vadd.s32 %v387, 8
      %v432 = vadd.s32 %v394, 8
      %v433 = vadd.s32 %v401, 8
      %v434 = vsel %vm418, %v426, %v352
      %v435 = vsel %vm419, %v427, %v359
      %v436 = vsel %vm420, %v428, %v366
      %v437 = vsel %vm421, %v429, %v373
      %v438 = vsel %vm422, %v430, %v380
      %v439 = vsel %vm423, %v431, %v387
      %v440 = vsel %vm424, %v432, %v394
      %v441 = vsel %vm425, %v433, %v401
      %vm442 = vcmp.ge.s32.totalorder %v434, 1
      %vm443 = vcmp.ge.s32.totalorder %v435, 1
      %vm444 = vcmp.ge.s32.totalorder %v436, 1
      %vm445 = vcmp.ge.s32.totalorder %v437, 1
      %vm446 = vcmp.ge.s32.totalorder %v438, 1
      %vm447 = vcmp.ge.s32.totalorder %v439, 1
      %vm448 = vcmp.ge.s32.totalorder %v440, 1
      %vm449 = vcmp.ge.s32.totalorder %v441, 1
      %vm450 = vcmp.le.s32.totalorder %v434, 6
      %vm451 = vcmp.le.s32.totalorder %v435, 6
      %vm452 = vcmp.le.s32.totalorder %v436, 6
      %vm453 = vcmp.le.s32.totalorder %v437, 6
      %vm454 = vcmp.le.s32.totalorder %v438, 6
      %vm455 = vcmp.le.s32.totalorder %v439, 6
      %vm456 = vcmp.le.s32.totalorder %v440, 6
      %vm457 = vcmp.le.s32.totalorder %v441, 6
      %v458 = vld [vmem:[#allocation2] sm:$0x80]
      %v459 = vld [vmem:[#allocation2 + $0x8] sm:$0x80]
      %v460 = vld [vmem:[#allocation2 + $0x10] sm:$0xff]
      %v461 = vld [vmem:[#allocation2 + $0x18] sm:$0xff]
      %v462 = vld [vmem:[#allocation2 + $0x20] sm:$0xff]
      %v463 = vld [vmem:[#allocation2 + $0x28] sm:$0xff]
      %v464 = vld [vmem:[#allocation2 + $0x30] sm:$0xff]
      %v465 = vld [vmem:[#allocation2 + $0x38] sm:$0xff]
      %v466 = vld [vmem:[#allocation2 + $0x40] sm:$0xff]
      %v467 = vld [vmem:[#allocation2 + $0x48] sm:$0xff]
      %v468 = vld [vmem:[#allocation2 + $0x50] sm:$0xff]
      %v469 = vld [vmem:[#allocation2 + $0x58] sm:$0xff]
      %v470 = vld [vmem:[#allocation2 + $0x60] sm:$0xff]
      %v471 = vld [vmem:[#allocation2 + $0x68] sm:$0xff]
      %v472 = vld [vmem:[#allocation2 + $0x70] sm:$0xff]
      %v473 = vld [vmem:[#allocation2 + $0x78] sm:$0xff]
      %v474 = vld [vmem:[#allocation2 + $0x80] sm:$0x7f]
      %v475 = vld [vmem:[#allocation2 + $0x88] sm:$0x7f]
      %v476 = vld [vmem:[%s1] ss:$8 sm:$0x3]
      %v478 = vlaneseq
      %v479 = vshrl.u32 %v478, 7
      %v480 = vsub.s32 0, %v479
      %v481 = vrot.slane %v476, %v480
      %v482 = vlaneseq
      %v483 = vshrl.u32 %v482, 7
      %v484 = vsub.s32 1, %v483
      %v485 = vrot.slane %v476, %v484
      %v488 = vmul.f32 %v458, %v481
      %v489 = vmul.f32 %v459, %v485
      %v490 = vmul.f32 %v460, %v481
      %v491 = vmul.f32 %v461, %v485
      %v492 = vmul.f32 %v462, %v481
      %v493 = vmul.f32 %v463, %v485
      %v494 = vmul.f32 %v464, %v481
      %v495 = vmul.f32 %v465, %v485
      %v496 = vmul.f32 %v466, %v481
      %v497 = vmul.f32 %v467, %v485
      %v498 = vmul.f32 %v468, %v481
      %v499 = vmul.f32 %v469, %v485
      %v500 = vmul.f32 %v470, %v481
      %v501 = vmul.f32 %v471, %v485
      %v502 = vmul.f32 %v472, %v481
      %v503 = vmul.f32 %v473, %v485
      %v504 = vmul.f32 %v474, %v481
      %v505 = vmul.f32 %v475, %v485
      %v506 = vsel %vm442, 1, 0
      %v507 = vsel %vm443, 1, 0
      %v508 = vsel %vm444, 1, 0
      %v509 = vsel %vm445, 1, 0
      %v510 = vsel %vm446, 1, 0
      %v511 = vsel %vm447, 1, 0
      %v512 = vsel %vm448, 1, 0
      %v513 = vsel %vm449, 1, 0
      %vm514 = vcmp.eq.s32.totalorder %v506, 1
      %vm515 = vcmp.eq.s32.totalorder %v507, 1
      %vm516 = vcmp.eq.s32.totalorder %v508, 1
      %vm517 = vcmp.eq.s32.totalorder %v509, 1
      %vm518 = vcmp.eq.s32.totalorder %v510, 1
      %vm519 = vcmp.eq.s32.totalorder %v511, 1
      %vm520 = vcmp.eq.s32.totalorder %v512, 1
      %vm521 = vcmp.eq.s32.totalorder %v513, 1
      %vm540 = vcmask 1040384
      %v541 = vrot.slane %v488, 7
      %v542 = vrot.slane %v490, 7
      %v543 = vsel %vm540, %v541, %v542
      %v544 = vrot.slane %v489, 7
      %v545 = vrot.slane %v491, 7
      %v546 = vsel %vm540, %v544, %v545
      %v547 = vrot.slane %v492, 7
      %v548 = vsel %vm540, %v542, %v547
      %v549 = vrot.slane %v493, 7
      %v550 = vsel %vm540, %v545, %v549
      %v551 = vrot.slane %v494, 7
      %v552 = vsel %vm540, %v547, %v551
      %v553 = vrot.slane %v495, 7
      %v554 = vsel %vm540, %v549, %v553
      %v555 = vrot.slane %v496, 7
      %v556 = vsel %vm540, %v551, %v555
      %v557 = vrot.slane %v497, 7
      %v558 = vsel %vm540, %v553, %v557
      %v559 = vrot.slane %v498, 7
      %v560 = vsel %vm540, %v555, %v559
      %v561 = vrot.slane %v499, 7
      %v562 = vsel %vm540, %v557, %v561
      %v563 = vrot.slane %v500, 7
      %v564 = vsel %vm540, %v559, %v563
      %v565 = vrot.slane %v501, 7
      %v566 = vsel %vm540, %v561, %v565
      %v567 = vrot.slane %v502, 7
      %v568 = vsel %vm540, %v563, %v567
      %v569 = vrot.slane %v503, 7
      %v570 = vsel %vm540, %v565, %v569
      %v571 = vrot.slane %v504, 7
      %v572 = vsel %vm540, %v567, %v571
      %v573 = vrot.slane %v505, 7
      %v574 = vsel %vm540, %v569, %v573
      %v591 = vsel %vm514, %v543, 0.0
      %v592 = vsel %vm514, %v546, 0.0
      %v593 = vsel %vm515, %v548, 0.0
      %v594 = vsel %vm515, %v550, 0.0
      %v595 = vsel %vm516, %v552, 0.0
      %v596 = vsel %vm516, %v554, 0.0
      %v597 = vsel %vm517, %v556, 0.0
      %v598 = vsel %vm517, %v558, 0.0
      %v599 = vsel %vm518, %v560, 0.0
      %v600 = vsel %vm518, %v562, 0.0
      %v601 = vsel %vm519, %v564, 0.0
      %v602 = vsel %vm519, %v566, 0.0
      %v603 = vsel %vm520, %v568, 0.0
      %v604 = vsel %vm520, %v570, 0.0
      %v605 = vsel %vm521, %v572, 0.0
      %v606 = vsel %vm521, %v574, 0.0
      %v607 = vadd.f32 %v591, 0.0
      %v608 = vadd.f32 %v592, 0.0
      %v609 = vadd.f32 %v593, 0.0
      %v610 = vadd.f32 %v594, 0.0
      %v611 = vadd.f32 %v595, 0.0
      %v612 = vadd.f32 %v596, 0.0
      %v613 = vadd.f32 %v597, 0.0
      %v614 = vadd.f32 %v598, 0.0
      %v615 = vadd.f32 %v599, 0.0
      %v616 = vadd.f32 %v600, 0.0
      %v617 = vadd.f32 %v601, 0.0
      %v618 = vadd.f32 %v602, 0.0
      %v619 = vadd.f32 %v603, 0.0
      %v620 = vadd.f32 %v604, 0.0
      %v621 = vadd.f32 %v605, 0.0
      %v622 = vadd.f32 %v606, 0.0
      %v623 = vld [vmem:[#allocation2 + $0x80] sm:$0xff]
      %v624 = vld [vmem:[#allocation2 + $0x88] sm:$0xff]
      %s625 = scalar_lea.vmem %s1, 1
      %v626 = vld [vmem:[%s625] ss:$8 sm:$0x3]
      %v628 = vlaneseq
      %v629 = vshrl.u32 %v628, 7
      %v630 = vsub.s32 0, %v629
      %v631 = vrot.slane %v626, %v630
      %v632 = vlaneseq
      %v633 = vshrl.u32 %v632, 7
      %v634 = vsub.s32 1, %v633
      %v635 = vrot.slane %v626, %v634
      %v638 = vmul.f32 %v460, %v631
      %v639 = vmul.f32 %v461, %v635
      %v640 = vmul.f32 %v462, %v631
      %v641 = vmul.f32 %v463, %v635
      %v642 = vmul.f32 %v464, %v631
      %v643 = vmul.f32 %v465, %v635
      %v644 = vmul.f32 %v466, %v631
      %v645 = vmul.f32 %v467, %v635
      %v646 = vmul.f32 %v468, %v631
      %v647 = vmul.f32 %v469, %v635
      %v648 = vmul.f32 %v470, %v631
      %v649 = vmul.f32 %v471, %v635
      %v650 = vmul.f32 %v472, %v631
      %v651 = vmul.f32 %v473, %v635
      %v652 = vmul.f32 %v623, %v631
      %v653 = vmul.f32 %v624, %v635
      %v654 = vadd.f32 %v607, %v638
      %v655 = vadd.f32 %v608, %v639
      %v656 = vadd.f32 %v609, %v640
      %v657 = vadd.f32 %v610, %v641
      %v658 = vadd.f32 %v611, %v642
      %v659 = vadd.f32 %v612, %v643
      %v660 = vadd.f32 %v613, %v644
      %v661 = vadd.f32 %v614, %v645
      %v662 = vadd.f32 %v615, %v646
      %v663 = vadd.f32 %v616, %v647
      %v664 = vadd.f32 %v617, %v648
      %v665 = vadd.f32 %v618, %v649
      %v666 = vadd.f32 %v619, %v650
      %v667 = vadd.f32 %v620, %v651
      %v668 = vadd.f32 %v621, %v652
      %v669 = vadd.f32 %v622, %v653
      %v670 = vld [vmem:[#allocation2 + $0x10] sm:$0xfe]
      %v671 = vld [vmem:[#allocation2 + $0x18] sm:$0xfe]
      %v672 = vld [vmem:[#allocation2 + $0x90] sm:$0x1]
      %v673 = vld [vmem:[#allocation2 + $0x98] sm:$0x1]
      %s674 = scalar_lea.vmem %s1, 2
      %v675 = vld [vmem:[%s674] ss:$8 sm:$0x3]
      %v677 = vlaneseq
      %v678 = vshrl.u32 %v677, 7
      %v679 = vsub.s32 0, %v678
      %v680 = vrot.slane %v675, %v679
      %v681 = vlaneseq
      %v682 = vshrl.u32 %v681, 7
      %v683 = vsub.s32 1, %v682
      %v684 = vrot.slane %v675, %v683
      %v687 = vmul.f32 %v670, %v680
      %v688 = vmul.f32 %v671, %v684
      %v689 = vmul.f32 %v462, %v680
      %v690 = vmul.f32 %v463, %v684
      %v691 = vmul.f32 %v464, %v680
      %v692 = vmul.f32 %v465, %v684
      %v693 = vmul.f32 %v466, %v680
      %v694 = vmul.f32 %v467, %v684
      %v695 = vmul.f32 %v468, %v680
      %v696 = vmul.f32 %v469, %v684
      %v697 = vmul.f32 %v470, %v680
      %v698 = vmul.f32 %v471, %v684
      %v699 = vmul.f32 %v472, %v680
      %v700 = vmul.f32 %v473, %v684
      %v701 = vmul.f32 %v623, %v680
      %v702 = vmul.f32 %v624, %v684
      %v703 = vmul.f32 %v672, %v680
      %v704 = vmul.f32 %v673, %v684
      %v705 = vsel %vm450, 1, 0
      %v706 = vsel %vm451, 1, 0
      %v707 = vsel %vm452, 1, 0
      %v708 = vsel %vm453, 1, 0
      %v709 = vsel %vm454, 1, 0
      %v710 = vsel %vm455, 1, 0
      %v711 = vsel %vm456, 1, 0
      %v712 = vsel %vm457, 1, 0
      %vm713 = vcmp.eq.s32.totalorder %v705, 1
      %vm714 = vcmp.eq.s32.totalorder %v706, 1
      %vm715 = vcmp.eq.s32.totalorder %v707, 1
      %vm716 = vcmp.eq.s32.totalorder %v708, 1
      %vm717 = vcmp.eq.s32.totalorder %v709, 1
      %vm718 = vcmp.eq.s32.totalorder %v710, 1
      %vm719 = vcmp.eq.s32.totalorder %v711, 1
      %vm720 = vcmp.eq.s32.totalorder %v712, 1
      %vm739 = vcmask 1046528
      %v740 = vrot.slane %v687, 1
      %v741 = vrot.slane %v689, 1
      %v742 = vsel %vm739, %v740, %v741
      %v743 = vrot.slane %v688, 1
      %v744 = vrot.slane %v690, 1
      %v745 = vsel %vm739, %v743, %v744
      %v746 = vrot.slane %v691, 1
      %v747 = vsel %vm739, %v741, %v746
      %v748 = vrot.slane %v692, 1
      %v749 = vsel %vm739, %v744, %v748
      %v750 = vrot.slane %v693, 1
      %v751 = vsel %vm739, %v746, %v750
      %v752 = vrot.slane %v694, 1
      %v753 = vsel %vm739, %v748, %v752
      %v754 = vrot.slane %v695, 1
      %v755 = vsel %vm739, %v750, %v754
      %v756 = vrot.slane %v696, 1
      %v757 = vsel %vm739, %v752, %v756
      %v758 = vrot.slane %v697, 1
      %v759 = vsel %vm739, %v754, %v758
      %v760 = vrot.slane %v698, 1
      %v761 = vsel %vm739, %v756, %v760
      %v762 = vrot.slane %v699, 1
      %v763 = vsel %vm739, %v758, %v762
      %v764 = vrot.slane %v700, 1
      %v765 = vsel %vm739, %v760, %v764
      %v766 = vrot.slane %v701, 1
      %v767 = vsel %vm739, %v762, %v766
      %v768 = vrot.slane %v702, 1
      %v769 = vsel %vm739, %v764, %v768
      %v770 = vrot.slane %v703, 1
      %v771 = vsel %vm739, %v766, %v770
      %v772 = vrot.slane %v704, 1
      %v773 = vsel %vm739, %v768, %v772
      %v790 = vsel %vm713, %v742, 0.0
      %v791 = vsel %vm713, %v745, 0.0
      %v792 = vsel %vm714, %v747, 0.0
      %v793 = vsel %vm714, %v749, 0.0
      %v794 = vsel %vm715, %v751, 0.0
      %v795 = vsel %vm715, %v753, 0.0
      %v796 = vsel %vm716, %v755, 0.0
      %v797 = vsel %vm716, %v757, 0.0
      %v798 = vsel %vm717, %v759, 0.0
      %v799 = vsel %vm717, %v761, 0.0
      %v800 = vsel %vm718, %v763, 0.0
      %v801 = vsel %vm718, %v765, 0.0
      %v802 = vsel %vm719, %v767, 0.0
      %v803 = vsel %vm719, %v769, 0.0
      %v804 = vsel %vm720, %v771, 0.0
      %v805 = vsel %vm720, %v773, 0.0
      %v806 = vadd.f32 %v654, %v790
      %v807 = vadd.f32 %v655, %v791
      %v808 = vadd.f32 %v656, %v792
      %v809 = vadd.f32 %v657, %v793
      %v810 = vadd.f32 %v658, %v794
      %v811 = vadd.f32 %v659, %v795
      %v812 = vadd.f32 %v660, %v796
      %v813 = vadd.f32 %v661, %v797
      %v814 = vadd.f32 %v662, %v798
      %v815 = vadd.f32 %v663, %v799
      %v816 = vadd.f32 %v664, %v800
      %v817 = vadd.f32 %v665, %v801
      %v818 = vadd.f32 %v666, %v802
      %v819 = vadd.f32 %v667, %v803
      %v820 = vadd.f32 %v668, %v804
      %v821 = vadd.f32 %v669, %v805
      %v822 = vld [vmem:[#allocation2 + $0x10] sm:$0x80]
      %v823 = vld [vmem:[#allocation2 + $0x18] sm:$0x80]
      %v824 = vld [vmem:[#allocation2 + $0x90] sm:$0x7f]
      %v825 = vld [vmem:[#allocation2 + $0x98] sm:$0x7f]
      %s826 = scalar_lea.vmem %s1, 3
      %v827 = vld [vmem:[%s826] ss:$8 sm:$0x3]
      %v829 = vlaneseq
      %v830 = vshrl.u32 %v829, 7
      %v831 = vsub.s32 0, %v830
      %v832 = vrot.slane %v827, %v831
      %v833 = vlaneseq
      %v834 = vshrl.u32 %v833, 7
      %v835 = vsub.s32 1, %v834
      %v836 = vrot.slane %v827, %v835
      %v839 = vmul.f32 %v822, %v832
      %v840 = vmul.f32 %v823, %v836
      %v841 = vmul.f32 %v462, %v832
      %v842 = vmul.f32 %v463, %v836
      %v843 = vmul.f32 %v464, %v832
      %v844 = vmul.f32 %v465, %v836
      %v845 = vmul.f32 %v466, %v832
      %v846 = vmul.f32 %v467, %v836
      %v847 = vmul.f32 %v468, %v832
      %v848 = vmul.f32 %v469, %v836
      %v849 = vmul.f32 %v470, %v832
      %v850 = vmul.f32 %v471, %v836
      %v851 = vmul.f32 %v472, %v832
      %v852 = vmul.f32 %v473, %v836
      %v853 = vmul.f32 %v623, %v832
      %v854 = vmul.f32 %v624, %v836
      %v855 = vmul.f32 %v824, %v832
      %v856 = vmul.f32 %v825, %v836
      %v875 = vrot.slane %v839, 7
      %v876 = vrot.slane %v841, 7
      %v877 = vsel %vm540, %v875, %v876
      %v878 = vrot.slane %v840, 7
      %v879 = vrot.slane %v842, 7
      %v880 = vsel %vm540, %v878, %v879
      %v881 = vrot.slane %v843, 7
      %v882 = vsel %vm540, %v876, %v881
      %v883 = vrot.slane %v844, 7
      %v884 = vsel %vm540, %v879, %v883
      %v885 = vrot.slane %v845, 7
      %v886 = vsel %vm540, %v881, %v885
      %v887 = vrot.slane %v846, 7
      %v888 = vsel %vm540, %v883, %v887
      %v889 = vrot.slane %v847, 7
      %v890 = vsel %vm540, %v885, %v889
      %v891 = vrot.slane %v848, 7
      %v892 = vsel %vm540, %v887, %v891
      %v893 = vrot.slane %v849, 7
      %v894 = vsel %vm540, %v889, %v893
      %v895 = vrot.slane %v850, 7
      %v896 = vsel %vm540, %v891, %v895
      %v897 = vrot.slane %v851, 7
      %v898 = vsel %vm540, %v893, %v897
      %v899 = vrot.slane %v852, 7
      %v900 = vsel %vm540, %v895, %v899
      %v901 = vrot.slane %v853, 7
      %v902 = vsel %vm540, %v897, %v901
      %v903 = vrot.slane %v854, 7
      %v904 = vsel %vm540, %v899, %v903
      %v905 = vrot.slane %v855, 7
      %v906 = vsel %vm540, %v901, %v905
      %v907 = vrot.slane %v856, 7
      %v908 = vsel %vm540, %v903, %v907
      %v925 = vsel %vm514, %v877, 0.0
      %v926 = vsel %vm514, %v880, 0.0
      %v927 = vsel %vm515, %v882, 0.0
      %v928 = vsel %vm515, %v884, 0.0
      %v929 = vsel %vm516, %v886, 0.0
      %v930 = vsel %vm516, %v888, 0.0
      %v931 = vsel %vm517, %v890, 0.0
      %v932 = vsel %vm517, %v892, 0.0
      %v933 = vsel %vm518, %v894, 0.0
      %v934 = vsel %vm518, %v896, 0.0
      %v935 = vsel %vm519, %v898, 0.0
      %v936 = vsel %vm519, %v900, 0.0
      %v937 = vsel %vm520, %v902, 0.0
      %v938 = vsel %vm520, %v904, 0.0
      %v939 = vsel %vm521, %v906, 0.0
      %v940 = vsel %vm521, %v908, 0.0
      %v941 = vadd.f32 %v806, %v925
      %v942 = vadd.f32 %v807, %v926
      %v943 = vadd.f32 %v808, %v927
      %v944 = vadd.f32 %v809, %v928
      %v945 = vadd.f32 %v810, %v929
      %v946 = vadd.f32 %v811, %v930
      %v947 = vadd.f32 %v812, %v931
      %v948 = vadd.f32 %v813, %v932
      %v949 = vadd.f32 %v814, %v933
      %v950 = vadd.f32 %v815, %v934
      %v951 = vadd.f32 %v816, %v935
      %v952 = vadd.f32 %v817, %v936
      %v953 = vadd.f32 %v818, %v937
      %v954 = vadd.f32 %v819, %v938
      %v955 = vadd.f32 %v820, %v939
      %v956 = vadd.f32 %v821, %v940
      %v957 = vld [vmem:[#allocation2 + $0x90] sm:$0xff]
      %v958 = vld [vmem:[#allocation2 + $0x98] sm:$0xff]
      %s959 = scalar_lea.vmem %s1, 4
      %v960 = vld [vmem:[%s959] ss:$8 sm:$0x3]
      %v962 = vlaneseq
      %v963 = vshrl.u32 %v962, 7
      %v964 = vsub.s32 0, %v963
      %v965 = vrot.slane %v960, %v964
      %v966 = vlaneseq
      %v967 = vshrl.u32 %v966, 7
      %v968 = vsub.s32 1, %v967
      %v969 = vrot.slane %v960, %v968
      %v972 = vmul.f32 %v462, %v965
      %v973 = vmul.f32 %v463, %v969
      %v974 = vmul.f32 %v464, %v965
      %v975 = vmul.f32 %v465, %v969
      %v976 = vmul.f32 %v466, %v965
      %v977 = vmul.f32 %v467, %v969
      %v978 = vmul.f32 %v468, %v965
      %v979 = vmul.f32 %v469, %v969
      %v980 = vmul.f32 %v470, %v965
      %v981 = vmul.f32 %v471, %v969
      %v982 = vmul.f32 %v472, %v965
      %v983 = vmul.f32 %v473, %v969
      %v984 = vmul.f32 %v623, %v965
      %v985 = vmul.f32 %v624, %v969
      %v986 = vmul.f32 %v957, %v965
      %v987 = vmul.f32 %v958, %v969
      %v988 = vadd.f32 %v941, %v972
      %v989 = vadd.f32 %v942, %v973
      %v990 = vadd.f32 %v943, %v974
      %v991 = vadd.f32 %v944, %v975
      %v992 = vadd.f32 %v945, %v976
      %v993 = vadd.f32 %v946, %v977
      %v994 = vadd.f32 %v947, %v978
      %v995 = vadd.f32 %v948, %v979
      %v996 = vadd.f32 %v949, %v980
      %v997 = vadd.f32 %v950, %v981
      %v998 = vadd.f32 %v951, %v982
      %v999 = vadd.f32 %v952, %v983
      %v1000 = vadd.f32 %v953, %v984
      %v1001 = vadd.f32 %v954, %v985
      %v1002 = vadd.f32 %v955, %v986
      %v1003 = vadd.f32 %v956, %v987
      %v1004 = vld [vmem:[#allocation2 + $0x20] sm:$0xfe]
      %v1005 = vld [vmem:[#allocation2 + $0x28] sm:$0xfe]
      %v1006 = vld [vmem:[#allocation2 + $0xa0] sm:$0x1]
      %v1007 = vld [vmem:[#allocation2 + $0xa8] sm:$0x1]
      %s1008 = scalar_lea.vmem %s1, 5
      %v1009 = vld [vmem:[%s1008] ss:$8 sm:$0x3]
      %v1011 = vlaneseq
      %v1012 = vshrl.u32 %v1011, 7
      %v1013 = vsub.s32 0, %v1012
      %v1014 = vrot.slane %v1009, %v1013
      %v1015 = vlaneseq
      %v1016 = vshrl.u32 %v1015, 7
      %v1017 = vsub.s32 1, %v1016
      %v1018 = vrot.slane %v1009, %v1017
      %v1021 = vmul.f32 %v1004, %v1014
      %v1022 = vmul.f32 %v1005, %v1018
      %v1023 = vmul.f32 %v464, %v1014
      %v1024 = vmul.f32 %v465, %v1018
      %v1025 = vmul.f32 %v466, %v1014
      %v1026 = vmul.f32 %v467, %v1018
      %v1027 = vmul.f32 %v468, %v1014
      %v1028 = vmul.f32 %v469, %v1018
      %v1029 = vmul.f32 %v470, %v1014
      %v1030 = vmul.f32 %v471, %v1018
      %v1031 = vmul.f32 %v472, %v1014
      %v1032 = vmul.f32 %v473, %v1018
      %v1033 = vmul.f32 %v623, %v1014
      %v1034 = vmul.f32 %v624, %v1018
      %v1035 = vmul.f32 %v957, %v1014
      %v1036 = vmul.f32 %v958, %v1018
      %v1037 = vmul.f32 %v1006, %v1014
      %v1038 = vmul.f32 %v1007, %v1018
      %v1057 = vrot.slane %v1021, 1
      %v1058 = vrot.slane %v1023, 1
      %v1059 = vsel %vm739, %v1057, %v1058
      %v1060 = vrot.slane %v1022, 1
      %v1061 = vrot.slane %v1024, 1
      %v1062 = vsel %vm739, %v1060, %v1061
      %v1063 = vrot.slane %v1025, 1
      %v1064 = vsel %vm739, %v1058, %v1063
      %v1065 = vrot.slane %v1026, 1
      %v1066 = vsel %vm739, %v1061, %v1065
      %v1067 = vrot.slane %v1027, 1
      %v1068 = vsel %vm739, %v1063, %v1067
      %v1069 = vrot.slane %v1028, 1
      %v1070 = vsel %vm739, %v1065, %v1069
      %v1071 = vrot.slane %v1029, 1
      %v1072 = vsel %vm739, %v1067, %v1071
      %v1073 = vrot.slane %v1030, 1
      %v1074 = vsel %vm739, %v1069, %v1073
      %v1075 = vrot.slane %v1031, 1
      %v1076 = vsel %vm739, %v1071, %v1075
      %v1077 = vrot.slane %v1032, 1
      %v1078 = vsel %vm739, %v1073, %v1077
      %v1079 = vrot.slane %v1033, 1
      %v1080 = vsel %vm739, %v1075, %v1079
      %v1081 = vrot.slane %v1034, 1
      %v1082 = vsel %vm739, %v1077, %v1081
      %v1083 = vrot.slane %v1035, 1
      %v1084 = vsel %vm739, %v1079, %v1083
      %v1085 = vrot.slane %v1036, 1
      %v1086 = vsel %vm739, %v1081, %v1085
      %v1087 = vrot.slane %v1037, 1
      %v1088 = vsel %vm739, %v1083, %v1087
      %v1089 = vrot.slane %v1038, 1
      %v1090 = vsel %vm739, %v1085, %v1089
      %v1107 = vsel %vm713, %v1059, 0.0
      %v1108 = vsel %vm713, %v1062, 0.0
      %v1109 = vsel %vm714, %v1064, 0.0
      %v1110 = vsel %vm714, %v1066, 0.0
      %v1111 = vsel %vm715, %v1068, 0.0
      %v1112 = vsel %vm715, %v1070, 0.0
      %v1113 = vsel %vm716, %v1072, 0.0
      %v1114 = vsel %vm716, %v1074, 0.0
      %v1115 = vsel %vm717, %v1076, 0.0
      %v1116 = vsel %vm717, %v1078, 0.0
      %v1117 = vsel %vm718, %v1080, 0.0
      %v1118 = vsel %vm718, %v1082, 0.0
      %v1119 = vsel %vm719, %v1084, 0.0
      %v1120 = vsel %vm719, %v1086, 0.0
      %v1121 = vsel %vm720, %v1088, 0.0
      %v1122 = vsel %vm720, %v1090, 0.0
      %v1123 = vadd.f32 %v988, %v1107
      %v1124 = vadd.f32 %v989, %v1108
      %v1125 = vadd.f32 %v990, %v1109
      %v1126 = vadd.f32 %v991, %v1110
      %v1127 = vadd.f32 %v992, %v1111
      %v1128 = vadd.f32 %v993, %v1112
      %v1129 = vadd.f32 %v994, %v1113
      %v1130 = vadd.f32 %v995, %v1114
      %v1131 = vadd.f32 %v996, %v1115
      %v1132 = vadd.f32 %v997, %v1116
      %v1133 = vadd.f32 %v998, %v1117
      %v1134 = vadd.f32 %v999, %v1118
      %v1135 = vadd.f32 %v1000, %v1119
      %v1136 = vadd.f32 %v1001, %v1120
      %v1137 = vadd.f32 %v1002, %v1121
      %v1138 = vadd.f32 %v1003, %v1122
      %v1139 = vld [vmem:[#allocation2 + $0x20] sm:$0x80]
      %v1140 = vld [vmem:[#allocation2 + $0x28] sm:$0x80]
      %v1141 = vld [vmem:[#allocation2 + $0xa0] sm:$0x7f]
      %v1142 = vld [vmem:[#allocation2 + $0xa8] sm:$0x7f]
      %s1143 = scalar_lea.vmem %s1, 6
      %v1144 = vld [vmem:[%s1143] ss:$8 sm:$0x3]
      %v1146 = vlaneseq
      %v1147 = vshrl.u32 %v1146, 7
      %v1148 = vsub.s32 0, %v1147
      %v1149 = vrot.slane %v1144, %v1148
      %v1150 = vlaneseq
      %v1151 = vshrl.u32 %v1150, 7
      %v1152 = vsub.s32 1, %v1151
      %v1153 = vrot.slane %v1144, %v1152
      %v1156 = vmul.f32 %v1139, %v1149
      %v1157 = vmul.f32 %v1140, %v1153
      %v1158 = vmul.f32 %v464, %v1149
      %v1159 = vmul.f32 %v465, %v1153
      %v1160 = vmul.f32 %v466, %v1149
      %v1161 = vmul.f32 %v467, %v1153
      %v1162 = vmul.f32 %v468, %v1149
      %v1163 = vmul.f32 %v469, %v1153
      %v1164 = vmul.f32 %v470, %v1149
      %v1165 = vmul.f32 %v471, %v1153
      %v1166 = vmul.f32 %v472, %v1149
      %v1167 = vmul.f32 %v473, %v1153
      %v1168 = vmul.f32 %v623, %v1149
      %v1169 = vmul.f32 %v624, %v1153
      %v1170 = vmul.f32 %v957, %v1149
      %v1171 = vmul.f32 %v958, %v1153
      %v1172 = vmul.f32 %v1141, %v1149
      %v1173 = vmul.f32 %v1142, %v1153
      %v1192 = vrot.slane %v1156, 7
      %v1193 = vrot.slane %v1158, 7
      %v1194 = vsel %vm540, %v1192, %v1193
      %v1195 = vrot.slane %v1157, 7
      %v1196 = vrot.slane %v1159, 7
      %v1197 = vsel %vm540, %v1195, %v1196
      %v1198 = vrot.slane %v1160, 7
      %v1199 = vsel %vm540, %v1193, %v1198
      %v1200 = vrot.slane %v1161, 7
      %v1201 = vsel %vm540, %v1196, %v1200
      %v1202 = vrot.slane %v1162, 7
      %v1203 = vsel %vm540, %v1198, %v1202
      %v1204 = vrot.slane %v1163, 7
      %v1205 = vsel %vm540, %v1200, %v1204
      %v1206 = vrot.slane %v1164, 7
      %v1207 = vsel %vm540, %v1202, %v1206
      %v1208 = vrot.slane %v1165, 7
      %v1209 = vsel %vm540, %v1204, %v1208
      %v1210 = vrot.slane %v1166, 7
      %v1211 = vsel %vm540, %v1206, %v1210
      %v1212 = vrot.slane %v1167, 7
      %v1213 = vsel %vm540, %v1208, %v1212
      %v1214 = vrot.slane %v1168, 7
      %v1215 = vsel %vm540, %v1210, %v1214
      %v1216 = vrot.slane %v1169, 7
      %v1217 = vsel %vm540, %v1212, %v1216
      %v1218 = vrot.slane %v1170, 7
      %v1219 = vsel %vm540, %v1214, %v1218
      %v1220 = vrot.slane %v1171, 7
      %v1221 = vsel %vm540, %v1216, %v1220
      %v1222 = vrot.slane %v1172, 7
      %v1223 = vsel %vm540, %v1218, %v1222
      %v1224 = vrot.slane %v1173, 7
      %v1225 = vsel %vm540, %v1220, %v1224
      %v1242 = vsel %vm514, %v1194, 0.0
      %v1243 = vsel %vm514, %v1197, 0.0
      %v1244 = vsel %vm515, %v1199, 0.0
      %v1245 = vsel %vm515, %v1201, 0.0
      %v1246 = vsel %vm516, %v1203, 0.0
      %v1247 = vsel %vm516, %v1205, 0.0
      %v1248 = vsel %vm517, %v1207, 0.0
      %v1249 = vsel %vm517, %v1209, 0.0
      %v1250 = vsel %vm518, %v1211, 0.0
      %v1251 = vsel %vm518, %v1213, 0.0
      %v1252 = vsel %vm519, %v1215, 0.0
      %v1253 = vsel %vm519, %v1217, 0.0
      %v1254 = vsel %vm520, %v1219, 0.0
      %v1255 = vsel %vm520, %v1221, 0.0
      %v1256 = vsel %vm521, %v1223, 0.0
      %v1257 = vsel %vm521, %v1225, 0.0
      %v1258 = vadd.f32 %v1123, %v1242
      %v1259 = vadd.f32 %v1124, %v1243
      %v1260 = vadd.f32 %v1125, %v1244
      %v1261 = vadd.f32 %v1126, %v1245
      %v1262 = vadd.f32 %v1127, %v1246
      %v1263 = vadd.f32 %v1128, %v1247
      %v1264 = vadd.f32 %v1129, %v1248
      %v1265 = vadd.f32 %v1130, %v1249
      %v1266 = vadd.f32 %v1131, %v1250
      %v1267 = vadd.f32 %v1132, %v1251
      %v1268 = vadd.f32 %v1133, %v1252
      %v1269 = vadd.f32 %v1134, %v1253
      %v1270 = vadd.f32 %v1135, %v1254
      %v1271 = vadd.f32 %v1136, %v1255
      %v1272 = vadd.f32 %v1137, %v1256
      %v1273 = vadd.f32 %v1138, %v1257
      %v1274 = vld [vmem:[#allocation2 + $0xa0] sm:$0xff]
      %v1275 = vld [vmem:[#allocation2 + $0xa8] sm:$0xff]
      %s1276 = scalar_lea.vmem %s1, 7
      %v1277 = vld [vmem:[%s1276] ss:$8 sm:$0x3]
      %v1279 = vlaneseq
      %v1280 = vshrl.u32 %v1279, 7
      %v1281 = vsub.s32 0, %v1280
      %v1282 = vrot.slane %v1277, %v1281
      %v1283 = vlaneseq
      %v1284 = vshrl.u32 %v1283, 7
      %v1285 = vsub.s32 1, %v1284
      %v1286 = vrot.slane %v1277, %v1285
      %v1289 = vmul.f32 %v464, %v1282
      %v1290 = vmul.f32 %v465, %v1286
      %v1291 = vmul.f32 %v466, %v1282
      %v1292 = vmul.f32 %v467, %v1286
      %v1293 = vmul.f32 %v468, %v1282
      %v1294 = vmul.f32 %v469, %v1286
      %v1295 = vmul.f32 %v470, %v1282
      %v1296 = vmul.f32 %v471, %v1286
      %v1297 = vmul.f32 %v472, %v1282
      %v1298 = vmul.f32 %v473, %v1286
      %v1299 = vmul.f32 %v623, %v1282
      %v1300 = vmul.f32 %v624, %v1286
      %v1301 = vmul.f32 %v957, %v1282
      %v1302 = vmul.f32 %v958, %v1286
      %v1303 = vmul.f32 %v1274, %v1282
      %v1304 = vmul.f32 %v1275, %v1286
      %v1305 = vadd.f32 %v1258, %v1289
      %v1306 = vadd.f32 %v1259, %v1290
      %v1307 = vadd.f32 %v1260, %v1291
      %v1308 = vadd.f32 %v1261, %v1292
      %v1309 = vadd.f32 %v1262, %v1293
      %v1310 = vadd.f32 %v1263, %v1294
      %v1311 = vadd.f32 %v1264, %v1295
      %v1312 = vadd.f32 %v1265, %v1296
      %v1313 = vadd.f32 %v1266, %v1297
      %v1314 = vadd.f32 %v1267, %v1298
      %v1315 = vadd.f32 %v1268, %v1299
      %v1316 = vadd.f32 %v1269, %v1300
      %v1317 = vadd.f32 %v1270, %v1301
      %v1318 = vadd.f32 %v1271, %v1302
      %v1319 = vadd.f32 %v1272, %v1303
      %v1320 = vadd.f32 %v1273, %v1304
      %v1321 = vld [vmem:[#allocation2 + $0x30] sm:$0xfe]
      %v1322 = vld [vmem:[#allocation2 + $0x38] sm:$0xfe]
      %v1323 = vld [vmem:[#allocation2 + $0x40] sm:$0xff]
      %v1324 = vld [vmem:[#allocation2 + $0x48] sm:$0xff]
      %v1325 = vld [vmem:[#allocation2 + $0x50] sm:$0xff]
      %v1326 = vld [vmem:[#allocation2 + $0x58] sm:$0xff]
      %v1327 = vld [vmem:[#allocation2 + $0x60] sm:$0xff]
      %v1328 = vld [vmem:[#allocation2 + $0x68] sm:$0xff]
      %v1329 = vld [vmem:[#allocation2 + $0x70] sm:$0xff]
      %v1330 = vld [vmem:[#allocation2 + $0x78] sm:$0xff]
      %v1331 = vld [vmem:[#allocation2 + $0x80] sm:$0xff]
      %v1332 = vld [vmem:[#allocation2 + $0x88] sm:$0xff]
      %v1333 = vld [vmem:[#allocation2 + $0x90] sm:$0xff]
      %v1334 = vld [vmem:[#allocation2 + $0x98] sm:$0xff]
      %v1335 = vld [vmem:[#allocation2 + $0xa0] sm:$0xff]
      %v1336 = vld [vmem:[#allocation2 + $0xa8] sm:$0xff]
      %v1337 = vld [vmem:[#allocation2 + $0xb0] sm:$0x1]
      %v1338 = vld [vmem:[#allocation2 + $0xb8] sm:$0x1]
      %s1339 = scalar_lea.vmem %s1, 16
      %v1340 = vld [vmem:[%s1339] ss:$8 sm:$0x3]
      %v1342 = vlaneseq
      %v1343 = vshrl.u32 %v1342, 7
      %v1344 = vsub.s32 0, %v1343
      %v1345 = vrot.slane %v1340, %v1344
      %v1346 = vlaneseq
      %v1347 = vshrl.u32 %v1346, 7
      %v1348 = vsub.s32 1, %v1347
      %v1349 = vrot.slane %v1340, %v1348
      %v1352 = vmul.f32 %v1321, %v1345
      %v1353 = vmul.f32 %v1322, %v1349
      %v1354 = vmul.f32 %v1323, %v1345
      %v1355 = vmul.f32 %v1324, %v1349
      %v1356 = vmul.f32 %v1325, %v1345
      %v1357 = vmul.f32 %v1326, %v1349
      %v1358 = vmul.f32 %v1327, %v1345
      %v1359 = vmul.f32 %v1328, %v1349
      %v1360 = vmul.f32 %v1329, %v1345
      %v1361 = vmul.f32 %v1330, %v1349
      %v1362 = vmul.f32 %v1331, %v1345
      %v1363 = vmul.f32 %v1332, %v1349
      %v1364 = vmul.f32 %v1333, %v1345
      %v1365 = vmul.f32 %v1334, %v1349
      %v1366 = vmul.f32 %v1335, %v1345
      %v1367 = vmul.f32 %v1336, %v1349
      %v1368 = vmul.f32 %v1337, %v1345
      %v1369 = vmul.f32 %v1338, %v1349
      %v1388 = vrot.slane %v1352, 1
      %v1389 = vrot.slane %v1354, 1
      %v1390 = vsel %vm739, %v1388, %v1389
      %v1391 = vrot.slane %v1353, 1
      %v1392 = vrot.slane %v1355, 1
      %v1393 = vsel %vm739, %v1391, %v1392
      %v1394 = vrot.slane %v1356, 1
      %v1395 = vsel %vm739, %v1389, %v1394
      %v1396 = vrot.slane %v1357, 1
      %v1397 = vsel %vm739, %v1392, %v1396
      %v1398 = vrot.slane %v1358, 1
      %v1399 = vsel %vm739, %v1394, %v1398
      %v1400 = vrot.slane %v1359, 1
      %v1401 = vsel %vm739, %v1396, %v1400
      %v1402 = vrot.slane %v1360, 1
      %v1403 = vsel %vm739, %v1398, %v1402
      %v1404 = vrot.slane %v1361, 1
      %v1405 = vsel %vm739, %v1400, %v1404
      %v1406 = vrot.slane %v1362, 1
      %v1407 = vsel %vm739, %v1402, %v1406
      %v1408 = vrot.slane %v1363, 1
      %v1409 = vsel %vm739, %v1404, %v1408
      %v1410 = vrot.slane %v1364, 1
      %v1411 = vsel %vm739, %v1406, %v1410
      %v1412 = vrot.slane %v1365, 1
      %v1413 = vsel %vm739, %v1408, %v1412
      %v1414 = vrot.slane %v1366, 1
      %v1415 = vsel %vm739, %v1410, %v1414
      %v1416 = vrot.slane %v1367, 1
      %v1417 = vsel %vm739, %v1412, %v1416
      %v1418 = vrot.slane %v1368, 1
      %v1419 = vsel %vm739, %v1414, %v1418
      %v1420 = vrot.slane %v1369, 1
      %v1421 = vsel %vm739, %v1416, %v1420
      %v1438 = vsel %vm713, %v1390, 0.0
      %v1439 = vsel %vm713, %v1393, 0.0
      %v1440 = vsel %vm714, %v1395, 0.0
      %v1441 = vsel %vm714, %v1397, 0.0
      %v1442 = vsel %vm715, %v1399, 0.0
      %v1443 = vsel %vm715, %v1401, 0.0
      %v1444 = vsel %vm716, %v1403, 0.0
      %v1445 = vsel %vm716, %v1405, 0.0
      %v1446 = vsel %vm717, %v1407, 0.0
      %v1447 = vsel %vm717, %v1409, 0.0
      %v1448 = vsel %vm718, %v1411, 0.0
      %v1449 = vsel %vm718, %v1413, 0.0
      %v1450 = vsel %vm719, %v1415, 0.0
      %v1451 = vsel %vm719, %v1417, 0.0
      %v1452 = vsel %vm720, %v1419, 0.0
      %v1453 = vsel %vm720, %v1421, 0.0
      %v1454 = vadd.f32 %v1305, %v1438
      %v1455 = vadd.f32 %v1306, %v1439
      %v1456 = vadd.f32 %v1307, %v1440
      %v1457 = vadd.f32 %v1308, %v1441
      %v1458 = vadd.f32 %v1309, %v1442
      %v1459 = vadd.f32 %v1310, %v1443
      %v1460 = vadd.f32 %v1311, %v1444
      %v1461 = vadd.f32 %v1312, %v1445
      %v1462 = vadd.f32 %v1313, %v1446
      %v1463 = vadd.f32 %v1314, %v1447
      %v1464 = vadd.f32 %v1315, %v1448
      %v1465 = vadd.f32 %v1316, %v1449
      %v1466 = vadd.f32 %v1317, %v1450
      %v1467 = vadd.f32 %v1318, %v1451
      %v1468 = vadd.f32 %v1319, %v1452
      %v1469 = vadd.f32 %v1320, %v1453
      %v1470 = vmul.f32 %v1454, 0.5
      %v1471 = vmul.f32 %v1456, 0.5
      %v1472 = vmul.f32 %v1458, 0.5
      %v1473 = vmul.f32 %v1460, 0.5
      %v1474 = vmul.f32 %v1462, 0.5
      %v1475 = vmul.f32 %v1464, 0.5
      %v1476 = vmul.f32 %v1466, 0.5
      %v1477 = vmul.f32 %v1468, 0.5
      %v1478 = vmul.f32 %v1454, 0.70710677
      %v1479 = vmul.f32 %v1456, 0.70710677
      %v1480 = vmul.f32 %v1458, 0.70710677
      %v1481 = vmul.f32 %v1460, 0.70710677
      %v1482 = vmul.f32 %v1462, 0.70710677
      %v1483 = vmul.f32 %v1464, 0.70710677
      %v1484 = vmul.f32 %v1466, 0.70710677
      %v1485 = vmul.f32 %v1468, 0.70710677
      %v1486 = verf.f32.pop %v1478
      %v1487 = verf.f32.pop %v1479
      %v1488 = verf.f32.pop %v1480
      %v1489 = verf.f32.pop %v1481
      %v1490 = verf.f32.pop %v1482
      %v1491 = verf.f32.pop %v1483
      %v1492 = verf.f32.pop %v1484
      %v1493 = verf.f32.pop %v1485
      %v1494 = vadd.f32 %v1486, 1.0
      %v1495 = vadd.f32 %v1487, 1.0
      %v1496 = vadd.f32 %v1488, 1.0
      %v1497 = vadd.f32 %v1489, 1.0
      %v1498 = vadd.f32 %v1490, 1.0
      %v1499 = vadd.f32 %v1491, 1.0
      %v1500 = vadd.f32 %v1492, 1.0
      %v1501 = vadd.f32 %v1493, 1.0
      %v1502 = vmul.f32 %v1470, %v1494
      %v1503 = vmul.f32 %v1471, %v1495
      %v1504 = vmul.f32 %v1472, %v1496
      %v1505 = vmul.f32 %v1473, %v1497
      %v1506 = vmul.f32 %v1474, %v1498
      %v1507 = vmul.f32 %v1475, %v1499
      %v1508 = vmul.f32 %v1476, %v1500
      %v1509 = vmul.f32 %v1477, %v1501
      %v1510 = vmul.f32 %v1502, %v1455
      %v1511 = vmul.f32 %v1503, %v1457
      %v1512 = vmul.f32 %v1504, %v1459
      %v1513 = vmul.f32 %v1505, %v1461
      %v1514 = vmul.f32 %v1506, %v1463
      %v1515 = vmul.f32 %v1507, %v1465
      %v1516 = vmul.f32 %v1508, %v1467
      %v1517 = vmul.f32 %v1509, %v1469
      %v1518 = vpack.c.bf16 %v1511, %v1510
      %v1519 = vpack.c.bf16 %v1513, %v1512
      %v1520 = vpack.c.bf16 %v1515, %v1514
      %v1521 = vpack.c.bf16 %v1517, %v1516
      %v1522 = vld [vmem:[%s2] sm:$0xf]
      %v1523 = vld [vmem:[%s2 + $0x4] sm:$0xf]
      %v1524 = vld [vmem:[%s2 + $0x8] sm:$0xf]
      %v1525 = vld [vmem:[%s2 + $0xc] sm:$0xf]
      %v1526 = vld [vmem:[%s2 + $0x10] sm:$0xf]
      %v1527 = vld [vmem:[%s2 + $0x14] sm:$0xf]
      %v1528 = vld [vmem:[%s2 + $0x18] sm:$0xf]
      %v1529 = vld [vmem:[%s2 + $0x1c] sm:$0xf]
      %v1530 = vld [vmem:[%s2 + $0x20] sm:$0xf]
      %v1531 = vld [vmem:[%s2 + $0x24] sm:$0xf]
      %v1532 = vld [vmem:[%s2 + $0x28] sm:$0xf]
      %v1533 = vld [vmem:[%s2 + $0x2c] sm:$0xf]
      %v1534 = vld [vmem:[%s2 + $0x30] sm:$0xf]
      %v1535 = vld [vmem:[%s2 + $0x34] sm:$0xf]
      %v1536 = vld [vmem:[%s2 + $0x38] sm:$0xf]
      %v1537 = vld [vmem:[%s2 + $0x3c] sm:$0xf]
      %v1554 = vunpack.c.l.b16 %v1522
      %v1555 = vunpack.c.l.b16 %v1523
      %v1556 = vunpack.c.l.b16 %v1524
      %v1557 = vunpack.c.l.b16 %v1525
      %v1558 = vunpack.c.l.b16 %v1526
      %v1559 = vunpack.c.l.b16 %v1527
      %v1560 = vunpack.c.l.b16 %v1528
      %v1561 = vunpack.c.l.b16 %v1529
      %v1562 = vunpack.c.l.b16 %v1530
      %v1563 = vunpack.c.l.b16 %v1531
      %v1564 = vunpack.c.l.b16 %v1532
      %v1565 = vunpack.c.l.b16 %v1533
      %v1566 = vunpack.c.l.b16 %v1534
      %v1567 = vunpack.c.l.b16 %v1535
      %v1568 = vunpack.c.l.b16 %v1536
      %v1569 = vunpack.c.l.b16 %v1537
      %v1570 = vpack.c.b16 %v1555, %v1554
      %v1571 = vpack.c.b16 %v1557, %v1556
      %v1572 = vpack.c.b16 %v1559, %v1558
      %v1573 = vpack.c.b16 %v1561, %v1560
      %v1574 = vpack.c.b16 %v1563, %v1562
      %v1575 = vpack.c.b16 %v1565, %v1564
      %v1576 = vpack.c.b16 %v1567, %v1566
      %v1577 = vpack.c.b16 %v1569, %v1568
      %1586 = vmatprep.subr.bf16.mxu0 0
      %1587 = vmatpush1.bf16.msra.mxu0 %v1570
      %1588 = vmatprep.subr.bf16.mxu0 0
      %1589 = vmatpush1.bf16.msra.mxu0 %v1571
      %1590 = vmatprep.subr.bf16.mxu0 0
      %1591 = vmatpush1.bf16.msra.mxu0 %v1572
      %1592 = vmatprep.subr.bf16.mxu0 0
      %1593 = vmatpush1.bf16.msra.mxu0 %v1573
      %1594 = vmatprep.subr.bf16.mxu0 0
      %1595 = vmatpush1.bf16.msra.mxu0 %v1574
      %1596 = vmatprep.subr.bf16.mxu0 0
      %1597 = vmatpush1.bf16.msra.mxu0 %v1575
      %1598 = vmatprep.subr.bf16.mxu0 0
      %1599 = vmatpush1.bf16.msra.mxu0 %v1576
      %1600 = vmatprep.subr.bf16.mxu0 0
      %1601 = vmatpush1.bf16.msra.mxu0 %v1577
      %1602 = vmatprep.subr.bf16.mxu0 0
      %1603 = vmatpush1.bf16.msra.mxu0 0
      %1604 = vmatprep.subr.bf16.mxu0 0
      %1605 = vmatpush1.bf16.msra.mxu0 0
      %1606 = vmatprep.subr.bf16.mxu0 0
      %1607 = vmatpush1.bf16.msra.mxu0 0
      %1608 = vmatprep.subr.bf16.mxu0 0
      %1609 = vmatpush1.bf16.msra.mxu0 0
      %1610 = vmatprep.subr.bf16.mxu0 0
      %1611 = vmatpush1.bf16.msra.mxu0 0
      %1612 = vmatprep.subr.bf16.mxu0 0
      %1613 = vmatpush1.bf16.msra.mxu0 0
      %1614 = vmatprep.subr.bf16.mxu0 0
      %1615 = vmatpush1.bf16.msra.mxu0 0
      %1616 = vmatprep.subr.bf16.mxu0 0
      %1617 = vmatpush1.bf16.msra.mxu0 0
      %1618 = vmatprep.mubr.bf16.mxu0 0
      %1619 = vmatmul.mubr.bf16.gmra.mrb[0].mxu0 %v1518
      %v1620 = vpop.f32.mrb[0].mxu0
      %v1621 = vadd.f32 0.0, %v1620
      %v1622 = vpop.f32.mrb[0].mxu0
      %v1623 = vpop.f32.mrb[0].mxu0
      %v1624 = vadd.f32 0.0, %v1623
      %v1625 = vpop.f32.mrb[0].mxu0
      %1626 = vmatprep.mubr.bf16.mxu0 0
      %1627 = vmatmul.mubr.bf16.gmra.mrb[0].mxu0 %v1519
      %v1628 = vpop.f32.mrb[0].mxu0
      %v1629 = vadd.f32 0.0, %v1628
      %v1630 = vpop.f32.mrb[0].mxu0
      %v1631 = vpop.f32.mrb[0].mxu0
      %v1632 = vadd.f32 0.0, %v1631
      %v1633 = vpop.f32.mrb[0].mxu0
      %1634 = vmatprep.mubr.bf16.mxu0 0
      %1635 = vmatmul.mubr.bf16.gmra.mrb[0].mxu0 %v1520
      %v1636 = vpop.f32.mrb[0].mxu0
      %v1637 = vadd.f32 0.0, %v1636
      %v1638 = vpop.f32.mrb[0].mxu0
      %v1639 = vpop.f32.mrb[0].mxu0
      %v1640 = vadd.f32 0.0, %v1639
      %v1641 = vpop.f32.mrb[0].mxu0
      %1642 = vmatprep.mubr.bf16.mxu0 0
      %1643 = vmatmul.mubr.bf16.gmra.mrb[0].mxu0 %v1521
      %v1644 = vpop.f32.mrb[0].mxu0
      %v1645 = vadd.f32 0.0, %v1644
      %v1646 = vpop.f32.mrb[0].mxu0
      %v1647 = vpop.f32.mrb[0].mxu0
      %v1648 = vadd.f32 0.0, %v1647
      %v1649 = vpop.f32.mrb[0].mxu0
      %1650 = vdwg.mxu0
      %vm1651 = vcmask 523264
      %v1652 = vsel %vm1651, %v1621, 0.0
      %v1653 = vsel %vm1651, %v1624, 0.0
      %v1654 = vadd.f32 %v1652, %v1653
      %v1655 = vsel %vm1651, %v1629, 0.0
      %v1656 = vadd.f32 %v1654, %v1655
      %v1657 = vsel %vm1651, %v1632, 0.0
      %v1658 = vadd.f32 %v1656, %v1657
      %v1659 = vsel %vm1651, %v1637, 0.0
      %v1660 = vadd.f32 %v1658, %v1659
      %v1661 = vsel %vm1651, %v1640, 0.0
      %v1662 = vadd.f32 %v1660, %v1661
      %v1663 = vsel %vm1651, %v1645, 0.0
      %v1664 = vadd.f32 %v1662, %v1663
      %v1665 = vsel %vm1651, %v1648, 0.0
      %v1666 = vadd.f32 %v1664, %v1665
      %v1667 = vrot.slane %v1666, 4
      %v1668 = vadd.f32 %v1666, %v1667
      %v1669 = vrot.slane %v1668, 2
      %v1670 = vadd.f32 %v1668, %v1669
      %v1671 = vrot.slane %v1670, 1
      %v1672 = vadd.f32 %v1670, %v1671
      %v1673 = vmul.f32 %v1672, 0.015625
      %v1674 = vld [vmem:[%s3] sm:$0xff]
      %v1675 = vld [vmem:[%s3 + $0x8] sm:$0xff]
      %v1676 = vld [vmem:[%s3 + $0x10] sm:$0xff]
      %v1677 = vld [vmem:[%s3 + $0x18] sm:$0xff]
      %v1678 = vld [vmem:[%s3 + $0x20] sm:$0xff]
      %v1679 = vld [vmem:[%s3 + $0x28] sm:$0xff]
      %v1680 = vld [vmem:[%s3 + $0x30] sm:$0xff]
      %v1681 = vld [vmem:[%s3 + $0x38] sm:$0xff]
      %v1683 = vsel %vm1651, %v1673, 0
      %1685 = vmatprep.subr.mxu0 0.0
      %1686 = vmatpush1.msra.mxu0 %v1674
      %1687 = vmatprep.subr.mxu0 0.0
      %1688 = vmatpush1.msra.mxu0 %v1675
      %1689 = vmatprep.subr.mxu0 0.0
      %1690 = vmatpush1.msra.mxu0 %v1676
      %1691 = vmatprep.subr.mxu0 0.0
      %1692 = vmatpush1.msra.mxu0 %v1677
      %1693 = vmatprep.subr.mxu0 0.0
      %1694 = vmatpush1.msra.mxu0 %v1678
      %1695 = vmatprep.subr.mxu0 0.0
      %1696 = vmatpush1.msra.mxu0 %v1679
      %1697 = vmatprep.subr.mxu0 0.0
      %1698 = vmatpush1.msra.mxu0 %v1680
      %1699 = vmatprep.subr.mxu0 0.0
      %1700 = vmatpush1.msra.mxu0 %v1681
      %1701 = vmatprep.subr.mxu0 0.0
      %1702 = vmatpush1.msra.mxu0 0.0
      %1703 = vmatprep.subr.mxu0 0.0
      %1704 = vmatpush1.msra.mxu0 0.0
      %1705 = vmatprep.subr.mxu0 0.0
      %1706 = vmatpush1.msra.mxu0 0.0
      %1707 = vmatprep.subr.mxu0 0.0
      %1708 = vmatpush1.msra.mxu0 0.0
      %1709 = vmatprep.subr.mxu0 0.0
      %1710 = vmatpush1.msra.mxu0 0.0
      %1711 = vmatprep.subr.mxu0 0.0
      %1712 = vmatpush1.msra.mxu0 0.0
      %1713 = vmatprep.subr.mxu0 0.0
      %1714 = vmatpush1.msra.mxu0 0.0
      %1715 = vmatprep.subr.mxu0 0.0
      %1716 = vmatpush1.msra.mxu0 0.0
      %1717 = vmatprep.subr.mxu0 0.0
      %1718 = vmatpush1.msra.mxu0 0.0
      %1719 = vmatprep.subr.mxu0 0.0
      %1720 = vmatpush1.msra.mxu0 0.0
      %1721 = vmatprep.subr.mxu0 0.0
      %1722 = vmatpush1.msra.mxu0 0.0
      %1723 = vmatprep.subr.mxu0 0.0
      %1724 = vmatpush1.msra.mxu0 0.0
      %1725 = vmatprep.subr.mxu0 0.0
      %1726 = vmatpush1.msra.mxu0 0.0
      %1727 = vmatprep.subr.mxu0 0.0
      %1728 = vmatpush1.msra.mxu0 0.0
      %1729 = vmatprep.subr.mxu0 0.0
      %1730 = vmatpush1.msra.mxu0 0.0
      %1731 = vmatprep.subr.mxu0 0.0
      %1732 = vmatpush1.msra.mxu0 0.0
      %1733 = vmatprep.subr.mxu0 0.0
      %1734 = vmatpush1.msra.mxu0 0.0
      %1735 = vmatprep.subr.mxu0 0.0
      %1736 = vmatpush1.msra.mxu0 0.0
      %1737 = vmatprep.subr.mxu0 0.0
      %1738 = vmatpush1.msra.mxu0 0.0
      %1739 = vmatprep.subr.mxu0 0.0
      %1740 = vmatpush1.msra.mxu0 0.0
      %1741 = vmatprep.subr.mxu0 0.0
      %1742 = vmatpush1.msra.mxu0 0.0
      %1743 = vmatprep.subr.mxu0 0.0
      %1744 = vmatpush1.msra.mxu0 0.0
      %1745 = vmatprep.subr.mxu0 0.0
      %1746 = vmatpush1.msra.mxu0 0.0
      %1747 = vmatprep.subr.mxu0 0.0
      %1748 = vmatpush1.msra.mxu0 0.0
      %1749 = vmatprep.mubr.f32.mxu0 0.0
      %1750 = vmatmul.mubr.f32.gmra.mrb[0].mxu0 %v1683
      %v1751 = vpop.f32.mrb[0].mxu0
      %v1752 = vadd.f32 0.0, %v1751
      %v1753 = vpop.f32.mrb[0].mxu0
      %1754 = vdwg.mxu0
      %v1755 = vmax.f32 %v1752, 0.0
      %v1756 = vld [vmem:[%s4] sm:$0xff]
      %vm1757 = vcmask 64512
      %v1759 = vsel %vm1757, %v1755, 0
      %1761 = vmatprep.subr.mxu0 0.0
      %1762 = vmatpush1.msra.mxu0 %v1756
      %1763 = vmatprep.subr.mxu0 0.0
      %1764 = vmatpush1.msra.mxu0 0.0
      %1765 = vmatprep.subr.mxu0 0.0
      %1766 = vmatpush1.msra.mxu0 0.0
      %1767 = vmatprep.subr.mxu0 0.0
      %1768 = vmatpush1.msra.mxu0 0.0
      %1769 = vmatprep.subr.mxu0 0.0
      %1770 = vmatpush1.msra.mxu0 0.0
      %1771 = vmatprep.subr.mxu0 0.0
      %1772 = vmatpush1.msra.mxu0 0.0
      %1773 = vmatprep.subr.mxu0 0.0
      %1774 = vmatpush1.msra.mxu0 0.0
      %1775 = vmatprep.subr.mxu0 0.0
      %1776 = vmatpush1.msra.mxu0 0.0
      %1777 = vmatprep.subr.mxu0 0.0
      %1778 = vmatpush1.msra.mxu0 0.0
      %1779 = vmatprep.subr.mxu0 0.0
      %1780 = vmatpush1.msra.mxu0 0.0
      %1781 = vmatprep.subr.mxu0 0.0
      %1782 = vmatpush1.msra.mxu0 0.0
      %1783 = vmatprep.subr.mxu0 0.0
      %1784 = vmatpush1.msra.mxu0 0.0
      %1785 = vmatprep.subr.mxu0 0.0
      %1786 = vmatpush1.msra.mxu0 0.0
      %1787 = vmatprep.subr.mxu0 0.0
      %1788 = vmatpush1.msra.mxu0 0.0
      %1789 = vmatprep.subr.mxu0 0.0
      %1790 = vmatpush1.msra.mxu0 0.0
      %1791 = vmatprep.subr.mxu0 0.0
      %1792 = vmatpush1.msra.mxu0 0.0
      %1793 = vmatprep.subr.mxu0 0.0
      %1794 = vmatpush1.msra.mxu0 0.0
      %1795 = vmatprep.subr.mxu0 0.0
      %1796 = vmatpush1.msra.mxu0 0.0
      %1797 = vmatprep.subr.mxu0 0.0
      %1798 = vmatpush1.msra.mxu0 0.0
      %1799 = vmatprep.subr.mxu0 0.0
      %1800 = vmatpush1.msra.mxu0 0.0
      %1801 = vmatprep.subr.mxu0 0.0
      %1802 = vmatpush1.msra.mxu0 0.0
      %1803 = vmatprep.subr.mxu0 0.0
      %1804 = vmatpush1.msra.mxu0 0.0
      %1805 = vmatprep.subr.mxu0 0.0
      %1806 = vmatpush1.msra.mxu0 0.0
      %1807 = vmatprep.subr.mxu0 0.0
      %1808 = vmatpush1.msra.mxu0 0.0
      %1809 = vmatprep.subr.mxu0 0.0
      %1810 = vmatpush1.msra.mxu0 0.0
      %1811 = vmatprep.subr.mxu0 0.0
      %1812 = vmatpush1.msra.mxu0 0.0
      %1813 = vmatprep.subr.mxu0 0.0
      %1814 = vmatpush1.msra.mxu0 0.0
      %1815 = vmatprep.subr.mxu0 0.0
      %1816 = vmatpush1.msra.mxu0 0.0
      %1817 = vmatprep.subr.mxu0 0.0
      %1818 = vmatpush1.msra.mxu0 0.0
      %1819 = vmatprep.subr.mxu0 0.0
      %1820 = vmatpush1.msra.mxu0 0.0
      %1821 = vmatprep.subr.mxu0 0.0
      %1822 = vmatpush1.msra.mxu0 0.0
      %1823 = vmatprep.subr.mxu0 0.0
      %1824 = vmatpush1.msra.mxu0 0.0
      %1825 = vmatprep.mubr.f32.mxu0 0.0
      %1826 = vmatmul.mubr.f32.gmra.mrb[0].mxu0 %v1759
      %v1827 = vpop.f32.mrb[0].mxu0
      %v1828 = vadd.f32 0.0, %v1827
      %v1829 = vpop.f32.mrb[0].mxu0
      %1830 = vdwg.mxu0
      %v1831 = vxor.u32 %v1828, 2147483648
      %v1832 = vmul.f32 %v1831, 1.442695
      %v1833 = vpow.pop %v1832
      %v1834 = vadd.f32 %v1833, 1.0
      %v1835 = vrcp.pop %v1834
      %v1836 = vmul.f32 1.0, %v1835
      %v1837 = vld [vmem:[%s266] sm:$0xff]
      %v1838 = vld [vmem:[%s266 + $0x8] sm:$0xff]
      %v1839 = vld [vmem:[%s266 + $0x10] sm:$0xff]
      %v1840 = vld [vmem:[%s266 + $0x18] sm:$0xff]
      %v1841 = vld [vmem:[%s266 + $0x20] sm:$0xff]
      %v1842 = vld [vmem:[%s266 + $0x28] sm:$0xff]
      %v1843 = vld [vmem:[%s266 + $0x30] sm:$0xff]
      %v1844 = vld [vmem:[%s266 + $0x38] sm:$0xff]
      %v1845 = vlaneseq
      %v1846 = vshrl.u32 %v1845, 7
      %v1847 = vsub.s32 0, %v1846
      %v1848 = vrot.slane %v1836, %v1847
      %v1849 = vmul.f32 %v1621, %v1848
      %v1850 = vmul.f32 %v1624, %v1848
      %v1851 = vmul.f32 %v1629, %v1848
      %v1852 = vmul.f32 %v1632, %v1848
      %v1853 = vmul.f32 %v1637, %v1848
      %v1854 = vmul.f32 %v1640, %v1848
      %v1855 = vmul.f32 %v1645, %v1848
      %v1856 = vmul.f32 %v1648, %v1848
      %v1857 = vadd.f32 %v1837, %v1849
      %v1858 = vadd.f32 %v1838, %v1850
      %v1859 = vadd.f32 %v1839, %v1851
      %v1860 = vadd.f32 %v1840, %v1852
      %v1861 = vadd.f32 %v1841, %v1853
      %v1862 = vadd.f32 %v1842, %v1854
      %v1863 = vadd.f32 %v1843, %v1855
      %v1864 = vadd.f32 %v1844, %v1856
      %1865 = vst.msk [vmem:[%s271] sm:$0xff] %vm1651, %v1857
      %1866 = vst.msk [vmem:[%s271 + $0x8] sm:$0xff] %vm1651, %v1858
      %1867 = vst.msk [vmem:[%s271 + $0x10] sm:$0xff] %vm1651, %v1859
      %1868 = vst.msk [vmem:[%s271 + $0x18] sm:$0xff] %vm1651, %v1860
      %1869 = vst.msk [vmem:[%s271 + $0x20] sm:$0xff] %vm1651, %v1861
      %1870 = vst.msk [vmem:[%s271 + $0x28] sm:$0xff] %vm1651, %v1862
      %1871 = vst.msk [vmem:[%s271 + $0x30] sm:$0xff] %vm1651, %v1863
      %1872 = vst.msk [vmem:[%s271 + $0x38] sm:$0xff] %vm1651, %v1864
      %p1873 = scmp.lt.s32.totalorder %s17, 1
      %s1874 = scalar_select %p1873, %s17, 1
      %s1875 = smul.addr %s1874, 8
      %s1876 = smul.addr %s1875, 8
      %s1877 = scalar_lea.vmem %s6, %s1876
      // Predicated region
      $region45: #{transformer_block_forward.7} parent=43 // pred_check
        %p1878 = pneg %p171
      $region46: #{transformer_block_forward.7} parent=43 // pred_check_branch
        %1880 = sbr.rel (%p1878) target = $region48
      $region47: #{transformer_block_forward.7} parent=43 // pred_region
        _
      $region48: #{transformer_block_forward.7} parent=43 // pred_fallthru
        _
    $region44: #{transformer_block_forward.7} parent=5 // pred_fallthru
      _
    %p1881 = scmp.le.s32.totalorder 2, %s12
    // Predicated region
    $region49: #{transformer_block_forward.7} parent=5 // pred_check
      %p1882 = pneg %p1881
    $region50: #{transformer_block_forward.7} parent=5 // pred_check_branch
      %1884 = sbr.rel (%p1882) target = $region52
    $region51: #{transformer_block_forward.7} parent=5 // pred_region
      %s1885 = ssub.s32 %s12, 2
      // Predicated region
      $region53: #{transformer_block_forward.7} parent=51 // pred_check
        %p1886 = pneg %p177
      $region54: #{transformer_block_forward.7} parent=51 // pred_check_branch
        %1888 = sbr.rel (%p1886) target = $region56
      $region55: #{transformer_block_forward.7} parent=51 // pred_region
        %p1889 = scmp.lt.s32.totalorder %s18, 1
        %s1890 = scalar_select %p1889, %s18, 1
        %s1891 = smul.addr %s1890, 8
        %s1892 = smul.addr %s1891, 8
        %s1893 = scalar_lea.vmem %s6, %s1892
      $region56: #{transformer_block_forward.7} parent=51 // pred_fallthru
        _
    $region52: #{transformer_block_forward.7} parent=5 // pred_fallthru
      _
  $region6: #{transformer_block_forward.7} parent=0 // loop_footer
    %s16 = sadd.s32 1, %s12
  $region7: #{transformer_block_forward.7} parent=0 // loop_footer_branch
    %11 = sbr.rel target = $region3
  $region8: #{transformer_block_forward.7} parent=0 // loop_exit
    _

</llo_original>
